<compile_context>
chip_gen: v6e
topology: v6e:2x2x1
jax: 0.10.0
libtpu: 0.0.40
codegen_flags: <defaults>
</compile_context>

<pallas_src>
import jax
import jax.numpy as jnp
from jax.experimental import pallas as pl
from jax.experimental.pallas import tpu as pltpu


KH = KW = 3
COUT_SPLIT = 2  # grid steps over C_out: 2 -> both v7x TensorCores; on v5e/v6e
                # the 2nd weight half's DMA overlaps the 1st half's compute.


def _make_tap_kernel(tap_offsets, rows_out):
    """Nine-tap shifted-slice conv kernel (all 2-D MXU matmuls, f32 accum)."""

    def kernel(x_ref, w_ref, o_ref):
        # x_ref: (rows_in, Cin)   f32  flattened, zero-padded, ReLU'd image (resident).
        # w_ref: (9, Cin, Nblk)   bf16 tap-major weight slice for this Cout block.
        # o_ref: (rows_out, Nblk) f32  output block (lane-dense, Nblk >= 128).
        for t, off in enumerate(tap_offsets):
            lhs = x_ref[off:off + rows_out, :].astype(jnp.bfloat16)      # (rows_out, Cin)
            contrib = jnp.dot(lhs, w_ref[t], preferred_element_type=jnp.float32)
            if t == 0:
                o_ref[...] = contrib
            else:
                o_ref[...] += contrib

    return kernel


def prepare_weight(w_oihw, compute_dtype=jnp.bfloat16):
    """One-time: (Cout, Cin, KH, KW) -> (KH*KW, Cin, Cout) tap-major, bf16."""
    c_out, c_in, kh, kw = w_oihw.shape
    w_taps = jnp.transpose(w_oihw, (2, 3, 1, 0)).reshape(kh * kw, c_in, c_out)
    return w_taps.astype(compute_dtype)


@jax.jit
def relu_conv2d(x_nchw, w_taps):
    """x_nchw: (1, Cin, H, W) f32;  w_taps: (9, Cin, Cout) bf16 (pre-transposed)."""
    n, c_in, h, w = x_nchw.shape
    n_taps, c_in_w, c_out = w_taps.shape
    assert n == 1 and n_taps == KH * KW and c_in_w == c_in
    assert c_out % COUT_SPLIT == 0
    n_blk = c_out // COUT_SPLIT

    wpad = w + 1                      # left-pad-only padded width (8)
    rows_out = h * wpad               # 56 = 49 real pixels + 7 wrap rows (discarded)
    rows_in = (h + KH) * wpad         # 80 = (1 top pad + H + 2 bottom pad) * wpad
    # max row read in-kernel: (KH-1)*wpad + (KW-1) + rows_out = 18 + 56 = 74 <= 80

    # ---- input glue (single small XLA fusion): NCHW->HWC, ReLU, pad, flatten ----
    x_hwc = jnp.maximum(jnp.transpose(x_nchw, (0, 2, 3, 1))[0], 0.0)       # (H, W, Cin)
    xp = jnp.pad(x_hwc, ((1, KH - 1), (1, 0), (0, 0)))                     # (H+3, W+1, Cin)
    x_flat = xp.reshape(rows_in, c_in)                                     # (80, 512) f32

    tap_offsets = tuple(kh * wpad + kw for kh in range(KH) for kw in range(KW))

    # ---- hot path: nine shifted 2-D bf16 matmuls, Cout split across the grid ----
    out_flat = pl.pallas_call(
        _make_tap_kernel(tap_offsets, rows_out),
        out_shape=jax.ShapeDtypeStruct((rows_out, c_out), jnp.float32),
        grid=(COUT_SPLIT,),
        in_specs=[
            pl.BlockSpec((rows_in, c_in), lambda j: (0, 0)),        # resident flat image
            pl.BlockSpec((n_taps, c_in, n_blk), lambda j: (0, 0, j)),
        ],
        out_specs=pl.BlockSpec((rows_out, n_blk), lambda j: (0, j)),
        compiler_params=pltpu.CompilerParams(
            dimension_semantics=("parallel",),
        ),
    )(x_flat, w_taps)

    # ---- output glue: drop the wrap column, back to NCHW ----
    out_hwc = out_flat.reshape(h, wpad, c_out)[:, :w, :]                   # (H, W, Cout)
    return jnp.transpose(out_hwc, (2, 0, 1))[None]                         # (1, Cout, H, W)


if __name__ == "__main__":
    key = jax.random.PRNGKey(0)
    kx, kw_ = jax.random.split(key)

    # shapes implied by the module's forward: x114 ~ (1, 512, 7, 7)
    x = jax.random.normal(kx, (1, 512, 7, 7), dtype=jnp.float32)
    # Conv2d(512, 512, 3, 3, bias=False) weight
    w = jax.random.normal(kw_, (512, 512, 3, 3), dtype=jnp.float32) * 0.02

    # one-time weight prep (outside the per-call path)
    w_taps = prepare_weight(w)

    out = jax.block_until_ready(relu_conv2d(x, w_taps))
    assert out.shape == (1, 512, 7, 7)

    # --- check 1 (tight): against an f32 conv of the same bf16-quantized
    #     operands the kernel consumes (verifies the kernel math exactly). ---
    xq = jnp.maximum(x, 0.0).astype(jnp.bfloat16).astype(jnp.float32)
    wq = w.astype(jnp.bfloat16).astype(jnp.float32)
    ref_q = jax.lax.conv_general_dilated(
        xq, wq, window_strides=(1, 1), padding=((1, 1), (1, 1)),
        dimension_numbers=("NCHW", "OIHW", "NCHW"),
        precision=jax.lax.Precision.HIGHEST,
    )
    assert jnp.allclose(out, ref_q, atol=1e-3, rtol=1e-3)

    # --- check 2 (loose): against the exact f32 module output; tolerance
    #     accounts for bf16 input/weight quantization over the K=4608 reduction. ---
    ref_f32 = jax.lax.conv_general_dilated(
        jnp.maximum(x, 0.0), w, window_strides=(1, 1), padding=((1, 1), (1, 1)),
        dimension_numbers=("NCHW", "OIHW", "NCHW"),
        precision=jax.lax.Precision.HIGHEST,
    )
    assert jnp.allclose(out, ref_f32, atol=1e-1, rtol=5e-2)

    print("KERNEL_OK")
</pallas_src>

<mosaic_0001>
module attributes {stable_mosaic.version = 11 : i64} {
  func.func @kernel(%arg0: i32, %arg1: memref<80x512xf32, #tpu.memory_space<vmem>>, %arg2: memref<9x512x256xbf16, #tpu.memory_space<vmem>>, %arg3: memref<56x256xf32, #tpu.memory_space<vmem>>) attributes {dimension_semantics = [#tpu.dimension_semantics<parallel>], iteration_bounds = array<i64: 2>, scalar_prefetch = 0 : i64, scratch_operands = 0 : i64, tpu.core_type = #tpu.core_type<tc>, window_params = [{pipeline_mode = #tpu.pipeline_mode<synchronous>, transform_indices = @transform_0, window_bounds = array<i64: 80, 512>}, {transform_indices = @transform_1, window_bounds = array<i64: 9, 512, 256>}, {transform_indices = @transform_2, window_bounds = array<i64: 56, 256>}]} {
    %c0 = arith.constant 0 : index
    %c0_0 = arith.constant 0 : index
    %0 = vector.load %arg1[%c0, %c0_0] : memref<80x512xf32, #tpu.memory_space<vmem>>, vector<56x512xf32>
    %1 = arith.truncf %0 : vector<56x512xf32> to vector<56x512xbf16>
    %c0_1 = arith.constant 0 : index
    %c0_2 = arith.constant 0 : index
    %c0_3 = arith.constant 0 : index
    %2 = vector.load %arg2[%c0_1, %c0_2, %c0_3] : memref<9x512x256xbf16, #tpu.memory_space<vmem>>, vector<1x512x256xbf16>
    %3 = vector.shape_cast %2 : vector<1x512x256xbf16> to vector<512x256xbf16>
    %cst = arith.constant dense<0.000000e+00> : vector<56x256xf32>
    %4 = tpu.matmul %1, %3, %cst {dimension_numbers = #tpu.dot_dimension_numbers<[1], [0], [0], [1], [0, 0, 1, 1], [], []>} : vector<56x512xbf16>, vector<512x256xbf16>, vector<56x256xf32> -> vector<56x256xf32>
    %c0_4 = arith.constant 0 : index
    %c0_5 = arith.constant 0 : index
    %5 = vector.load %arg3[%c0_4, %c0_5] : memref<56x256xf32, #tpu.memory_space<vmem>>, vector<56x256xf32>
    tpu.vector_store %arg3[%c0_4, %c0_5], %4 {strides = array<i32>} : memref<56x256xf32, #tpu.memory_space<vmem>>, vector<56x256xf32>,
    %c1 = arith.constant 1 : index
    %c0_6 = arith.constant 0 : index
    %6 = vector.load %arg1[%c1, %c0_6] : memref<80x512xf32, #tpu.memory_space<vmem>>, vector<56x512xf32>
    %7 = arith.truncf %6 : vector<56x512xf32> to vector<56x512xbf16>
    %c1_7 = arith.constant 1 : index
    %c0_8 = arith.constant 0 : index
    %c0_9 = arith.constant 0 : index
    %8 = vector.load %arg2[%c1_7, %c0_8, %c0_9] : memref<9x512x256xbf16, #tpu.memory_space<vmem>>, vector<1x512x256xbf16>
    %9 = vector.shape_cast %8 : vector<1x512x256xbf16> to vector<512x256xbf16>
    %cst_10 = arith.constant dense<0.000000e+00> : vector<56x256xf32>
    %10 = tpu.matmul %7, %9, %cst_10 {dimension_numbers = #tpu.dot_dimension_numbers<[1], [0], [0], [1], [0, 0, 1, 1], [], []>} : vector<56x512xbf16>, vector<512x256xbf16>, vector<56x256xf32> -> vector<56x256xf32>
    %c0_11 = arith.constant 0 : index
    %c0_12 = arith.constant 0 : index
    %11 = vector.load %arg3[%c0_11, %c0_12] : memref<56x256xf32, #tpu.memory_space<vmem>>, vector<56x256xf32>
    %12 = arith.addf %11, %10 : vector<56x256xf32>
    %c0_13 = arith.constant 0 : index
    %c0_14 = arith.constant 0 : index
    %13 = vector.load %arg3[%c0_13, %c0_14] : memref<56x256xf32, #tpu.memory_space<vmem>>, vector<56x256xf32>
    tpu.vector_store %arg3[%c0_13, %c0_14], %12 {strides = array<i32>} : memref<56x256xf32, #tpu.memory_space<vmem>>, vector<56x256xf32>,
    %c2 = arith.constant 2 : index
    %c0_15 = arith.constant 0 : index
    %14 = vector.load %arg1[%c2, %c0_15] : memref<80x512xf32, #tpu.memory_space<vmem>>, vector<56x512xf32>
    %15 = arith.truncf %14 : vector<56x512xf32> to vector<56x512xbf16>
    %c2_16 = arith.constant 2 : index
    %c0_17 = arith.constant 0 : index
    %c0_18 = arith.constant 0 : index
    %16 = vector.load %arg2[%c2_16, %c0_17, %c0_18] : memref<9x512x256xbf16, #tpu.memory_space<vmem>>, vector<1x512x256xbf16>
    %17 = vector.shape_cast %16 : vector<1x512x256xbf16> to vector<512x256xbf16>
    %cst_19 = arith.constant dense<0.000000e+00> : vector<56x256xf32>
    %18 = tpu.matmul %15, %17, %cst_19 {dimension_numbers = #tpu.dot_dimension_numbers<[1], [0], [0], [1], [0, 0, 1, 1], [], []>} : vector<56x512xbf16>, vector<512x256xbf16>, vector<56x256xf32> -> vector<56x256xf32>
    %c0_20 = arith.constant 0 : index
    %c0_21 = arith.constant 0 : index
    %19 = vector.load %arg3[%c0_20, %c0_21] : memref<56x256xf32, #tpu.memory_space<vmem>>, vector<56x256xf32>
    %20 = arith.addf %19, %18 : vector<56x256xf32>
    %c0_22 = arith.constant 0 : index
    %c0_23 = arith.constant 0 : index
    %21 = vector.load %arg3[%c0_22, %c0_23] : memref<56x256xf32, #tpu.memory_space<vmem>>, vector<56x256xf32>
    tpu.vector_store %arg3[%c0_22, %c0_23], %20 {strides = array<i32>} : memref<56x256xf32, #tpu.memory_space<vmem>>, vector<56x256xf32>,
    %c8 = arith.constant 8 : index
    %c0_24 = arith.constant 0 : index
    %22 = vector.load %arg1[%c8, %c0_24] : memref<80x512xf32, #tpu.memory_space<vmem>>, vector<56x512xf32>
    %23 = arith.truncf %22 : vector<56x512xf32> to vector<56x512xbf16>
    %c3 = arith.constant 3 : index
    %c0_25 = arith.constant 0 : index
    %c0_26 = arith.constant 0 : index
    %24 = vector.load %arg2[%c3, %c0_25, %c0_26] : memref<9x512x256xbf16, #tpu.memory_space<vmem>>, vector<1x512x256xbf16>
    %25 = vector.shape_cast %24 : vector<1x512x256xbf16> to vector<512x256xbf16>
    %cst_27 = arith.constant dense<0.000000e+00> : vector<56x256xf32>
    %26 = tpu.matmul %23, %25, %cst_27 {dimension_numbers = #tpu.dot_dimension_numbers<[1], [0], [0], [1], [0, 0, 1, 1], [], []>} : vector<56x512xbf16>, vector<512x256xbf16>, vector<56x256xf32> -> vector<56x256xf32>
    %c0_28 = arith.constant 0 : index
    %c0_29 = arith.constant 0 : index
    %27 = vector.load %arg3[%c0_28, %c0_29] : memref<56x256xf32, #tpu.memory_space<vmem>>, vector<56x256xf32>
    %28 = arith.addf %27, %26 : vector<56x256xf32>
    %c0_30 = arith.constant 0 : index
    %c0_31 = arith.constant 0 : index
    %29 = vector.load %arg3[%c0_30, %c0_31] : memref<56x256xf32, #tpu.memory_space<vmem>>, vector<56x256xf32>
    tpu.vector_store %arg3[%c0_30, %c0_31], %28 {strides = array<i32>} : memref<56x256xf32, #tpu.memory_space<vmem>>, vector<56x256xf32>,
    %c9 = arith.constant 9 : index
    %c0_32 = arith.constant 0 : index
    %30 = vector.load %arg1[%c9, %c0_32] : memref<80x512xf32, #tpu.memory_space<vmem>>, vector<56x512xf32>
    %31 = arith.truncf %30 : vector<56x512xf32> to vector<56x512xbf16>
    %c4 = arith.constant 4 : index
    %c0_33 = arith.constant 0 : index
    %c0_34 = arith.constant 0 : index
    %32 = vector.load %arg2[%c4, %c0_33, %c0_34] : memref<9x512x256xbf16, #tpu.memory_space<vmem>>, vector<1x512x256xbf16>
    %33 = vector.shape_cast %32 : vector<1x512x256xbf16> to vector<512x256xbf16>
    %cst_35 = arith.constant dense<0.000000e+00> : vector<56x256xf32>
    %34 = tpu.matmul %31, %33, %cst_35 {dimension_numbers = #tpu.dot_dimension_numbers<[1], [0], [0], [1], [0, 0, 1, 1], [], []>} : vector<56x512xbf16>, vector<512x256xbf16>, vector<56x256xf32> -> vector<56x256xf32>
    %c0_36 = arith.constant 0 : index
    %c0_37 = arith.constant 0 : index
    %35 = vector.load %arg3[%c0_36, %c0_37] : memref<56x256xf32, #tpu.memory_space<vmem>>, vector<56x256xf32>
    %36 = arith.addf %35, %34 : vector<56x256xf32>
    %c0_38 = arith.constant 0 : index
    %c0_39 = arith.constant 0 : index
    %37 = vector.load %arg3[%c0_38, %c0_39] : memref<56x256xf32, #tpu.memory_space<vmem>>, vector<56x256xf32>
    tpu.vector_store %arg3[%c0_38, %c0_39], %36 {strides = array<i32>} : memref<56x256xf32, #tpu.memory_space<vmem>>, vector<56x256xf32>,
    %c10 = arith.constant 10 : index
    %c0_40 = arith.constant 0 : index
    %38 = vector.load %arg1[%c10, %c0_40] : memref<80x512xf32, #tpu.memory_space<vmem>>, vector<56x512xf32>
    %39 = arith.truncf %38 : vector<56x512xf32> to vector<56x512xbf16>
    %c5 = arith.constant 5 : index
    %c0_41 = arith.constant 0 : index
    %c0_42 = arith.constant 0 : index
    %40 = vector.load %arg2[%c5, %c0_41, %c0_42] : memref<9x512x256xbf16, #tpu.memory_space<vmem>>, vector<1x512x256xbf16>
    %41 = vector.shape_cast %40 : vector<1x512x256xbf16> to vector<512x256xbf16>
    %cst_43 = arith.constant dense<0.000000e+00> : vector<56x256xf32>
    %42 = tpu.matmul %39, %41, %cst_43 {dimension_numbers = #tpu.dot_dimension_numbers<[1], [0], [0], [1], [0, 0, 1, 1], [], []>} : vector<56x512xbf16>, vector<512x256xbf16>, vector<56x256xf32> -> vector<56x256xf32>
    %c0_44 = arith.constant 0 : index
    %c0_45 = arith.constant 0 : index
    %43 = vector.load %arg3[%c0_44, %c0_45] : memref<56x256xf32, #tpu.memory_space<vmem>>, vector<56x256xf32>
    %44 = arith.addf %43, %42 : vector<56x256xf32>
    %c0_46 = arith.constant 0 : index
    %c0_47 = arith.constant 0 : index
    %45 = vector.load %arg3[%c0_46, %c0_47] : memref<56x256xf32, #tpu.memory_space<vmem>>, vector<56x256xf32>
    tpu.vector_store %arg3[%c0_46, %c0_47], %44 {strides = array<i32>} : memref<56x256xf32, #tpu.memory_space<vmem>>, vector<56x256xf32>,
    %c16 = arith.constant 16 : index
    %c0_48 = arith.constant 0 : index
    %46 = vector.load %arg1[%c16, %c0_48] : memref<80x512xf32, #tpu.memory_space<vmem>>, vector<56x512xf32>
    %47 = arith.truncf %46 : vector<56x512xf32> to vector<56x512xbf16>
    %c6 = arith.constant 6 : index
    %c0_49 = arith.constant 0 : index
    %c0_50 = arith.constant 0 : index
    %48 = vector.load %arg2[%c6, %c0_49, %c0_50] : memref<9x512x256xbf16, #tpu.memory_space<vmem>>, vector<1x512x256xbf16>
    %49 = vector.shape_cast %48 : vector<1x512x256xbf16> to vector<512x256xbf16>
    %cst_51 = arith.constant dense<0.000000e+00> : vector<56x256xf32>
    %50 = tpu.matmul %47, %49, %cst_51 {dimension_numbers = #tpu.dot_dimension_numbers<[1], [0], [0], [1], [0, 0, 1, 1], [], []>} : vector<56x512xbf16>, vector<512x256xbf16>, vector<56x256xf32> -> vector<56x256xf32>
    %c0_52 = arith.constant 0 : index
    %c0_53 = arith.constant 0 : index
    %51 = vector.load %arg3[%c0_52, %c0_53] : memref<56x256xf32, #tpu.memory_space<vmem>>, vector<56x256xf32>
    %52 = arith.addf %51, %50 : vector<56x256xf32>
    %c0_54 = arith.constant 0 : index
    %c0_55 = arith.constant 0 : index
    %53 = vector.load %arg3[%c0_54, %c0_55] : memref<56x256xf32, #tpu.memory_space<vmem>>, vector<56x256xf32>
    tpu.vector_store %arg3[%c0_54, %c0_55], %52 {strides = array<i32>} : memref<56x256xf32, #tpu.memory_space<vmem>>, vector<56x256xf32>,
    %c17 = arith.constant 17 : index
    %c0_56 = arith.constant 0 : index
    %54 = vector.load %arg1[%c17, %c0_56] : memref<80x512xf32, #tpu.memory_space<vmem>>, vector<56x512xf32>
    %55 = arith.truncf %54 : vector<56x512xf32> to vector<56x512xbf16>
    %c7 = arith.constant 7 : index
    %c0_57 = arith.constant 0 : index
    %c0_58 = arith.constant 0 : index
    %56 = vector.load %arg2[%c7, %c0_57, %c0_58] : memref<9x512x256xbf16, #tpu.memory_space<vmem>>, vector<1x512x256xbf16>
    %57 = vector.shape_cast %56 : vector<1x512x256xbf16> to vector<512x256xbf16>
    %cst_59 = arith.constant dense<0.000000e+00> : vector<56x256xf32>
    %58 = tpu.matmul %55, %57, %cst_59 {dimension_numbers = #tpu.dot_dimension_numbers<[1], [0], [0], [1], [0, 0, 1, 1], [], []>} : vector<56x512xbf16>, vector<512x256xbf16>, vector<56x256xf32> -> vector<56x256xf32>
    %c0_60 = arith.constant 0 : index
    %c0_61 = arith.constant 0 : index
    %59 = vector.load %arg3[%c0_60, %c0_61] : memref<56x256xf32, #tpu.memory_space<vmem>>, vector<56x256xf32>
    %60 = arith.addf %59, %58 : vector<56x256xf32>
    %c0_62 = arith.constant 0 : index
    %c0_63 = arith.constant 0 : index
    %61 = vector.load %arg3[%c0_62, %c0_63] : memref<56x256xf32, #tpu.memory_space<vmem>>, vector<56x256xf32>
    tpu.vector_store %arg3[%c0_62, %c0_63], %60 {strides = array<i32>} : memref<56x256xf32, #tpu.memory_space<vmem>>, vector<56x256xf32>,
    %c18 = arith.constant 18 : index
    %c0_64 = arith.constant 0 : index
    %62 = vector.load %arg1[%c18, %c0_64] : memref<80x512xf32, #tpu.memory_space<vmem>>, vector<56x512xf32>
    %63 = arith.truncf %62 : vector<56x512xf32> to vector<56x512xbf16>
    %c8_65 = arith.constant 8 : index
    %c0_66 = arith.constant 0 : index
    %c0_67 = arith.constant 0 : index
    %64 = vector.load %arg2[%c8_65, %c0_66, %c0_67] : memref<9x512x256xbf16, #tpu.memory_space<vmem>>, vector<1x512x256xbf16>
    %65 = vector.shape_cast %64 : vector<1x512x256xbf16> to vector<512x256xbf16>
    %cst_68 = arith.constant dense<0.000000e+00> : vector<56x256xf32>
    %66 = tpu.matmul %63, %65, %cst_68 {dimension_numbers = #tpu.dot_dimension_numbers<[1], [0], [0], [1], [0, 0, 1, 1], [], []>} : vector<56x512xbf16>, vector<512x256xbf16>, vector<56x256xf32> -> vector<56x256xf32>
    %c0_69 = arith.constant 0 : index
    %c0_70 = arith.constant 0 : index
    %67 = vector.load %arg3[%c0_69, %c0_70] : memref<56x256xf32, #tpu.memory_space<vmem>>, vector<56x256xf32>
    %68 = arith.addf %67, %66 : vector<56x256xf32>
    %c0_71 = arith.constant 0 : index
    %c0_72 = arith.constant 0 : index
    %69 = vector.load %arg3[%c0_71, %c0_72] : memref<56x256xf32, #tpu.memory_space<vmem>>, vector<56x256xf32>
    tpu.vector_store %arg3[%c0_71, %c0_72], %68 {strides = array<i32>} : memref<56x256xf32, #tpu.memory_space<vmem>>, vector<56x256xf32>,
    return
  }
  func.func @transform_0(%arg0: i32) -> (i32, i32) {
    %c0_i32 = arith.constant 0 : i32
    %c0_i32_0 = arith.constant 0 : i32
    %c0_i32_1 = arith.constant 0 : i32
    return %c0_i32, %c0_i32_0 : i32, i32
  }
  func.func @transform_1(%arg0: i32) -> (i32, i32, i32) {
    %c0_i32 = arith.constant 0 : i32
    %c0_i32_0 = arith.constant 0 : i32
    %c0_i32_1 = arith.constant 0 : i32
    return %c0_i32, %c0_i32_0, %arg0 : i32, i32, i32
  }
  func.func @transform_2(%arg0: i32) -> (i32, i32) {
    %c0_i32 = arith.constant 0 : i32
    %c0_i32_0 = arith.constant 0 : i32
    return %c0_i32, %arg0 : i32, i32
  }
}

</mosaic_0001>

<llo_original>
// kernel: relu_conv2d.1
$region0: #{relu_conv2d.1}
  #allocation0 [shape = 'u32[]', space=smem, size = 0x4, offset = 0x4, fixed_abs, tag = 'smem constant byte address 0x4 - core index']
  #allocation1 [shape = 'u32[144,128]{1,0:T(1,128)}', space=vmem, size = 0x12000, scoped, tag = 'internal scratch']
  %s0 = inlined_call_operand.vmem [shape: f32[80,512], index: 0, kind: input, shape index: {}]
  %s1 = inlined_call_operand.hbm [shape: bf16[9,512,512], index: 1, kind: input, shape index: {}]
  %s2 = inlined_call_operand.vmem [shape: f32[56,512], index: 2, kind: output, shape index: {}]
  %s3 = sld [smem:[#allocation0]]
  $region64: #{relu_conv2d.1} parent=0
    _
  %s5 = ssub.s32 1, %s3
  %s6 = scalar_select 0, %s5, %s3
  $region1: #{relu_conv2d.1} parent=0
    #allocation2 [shape = 'u8[4718592]{0}', space=vmem, size = 0x480000, scoped, tag = 'input window, operand 1']
    #allocation3 [shape = 's32[2]{0}', space=sflag, size = 0x8, scoped, tag = 'scoped memory for relu_conv2d.1']
    #allocation4 [shape = 'u8[114688]{0}', space=vmem, size = 0x1c000, scoped, tag = 'output window, operand 0']
    %7 = vsyncpa [#allocation3], 0
    %s8 = scalar_lea.sflag [#allocation3], 1
    %9 = vsyncpa %s8, 0
    loop: start=0, step=1, limit=4
    $region2: #{relu_conv2d.1} parent=1 // loop_pre_header
      _
    $region3: #{relu_conv2d.1} parent=1 // loop_header
      %s11 = sphi 0, %s15
      %p12 = scmp.ge.s32.totalorder %s11, 4
      %s19 = sphi 0, %s19
      %s21 = sphi 0, %s19
      %s22 = sphi 0, %s21
      %s36 = sphi 0, %s22
      %s42 = sphi 0, %s44
      %s45 = sphi 0, %s42
      %s46 = sphi 0, %s45
      %s62 = sphi 0, %s46
      %s68 = sphi 0, %s70
      %s71 = sphi 0, %s68
      %s72 = sphi 0, %s71
      %s88 = sphi 0, %s72
    $region4: #{relu_conv2d.1} parent=1 // loop_header_branch
      %14 = sbr.rel (%p12) target = $region8
    $region5: #{relu_conv2d.1} parent=1 // loop_body
      %s16 = ssub.s32 %s11, 1
      %s17 = ssub.s32 %s11, 2
      %s18 = sadd.s32 %s11, 1
      %s20 = sadd.s32 %s19, 1
      %p23 = scmp.eq.s32.totalorder %s11, 1
      %p24 = scmp.ne.s32.totalorder %s19, %s21
      %p25 = scmp.eq.s32.totalorder %s11, 0
      %p26 = por %p24, %p25
      %p27 = scmp.ne.s32.totalorder %s19, %s21
      %p28 = scmp.eq.s32.totalorder %s16, 1
      %p29 = por %p27, %p28
      %p30 = scmp.ne.s32.totalorder %s21, %s22
      %p31 = scmp.eq.s32.totalorder %s16, 0
      %p32 = por %p30, %p31
      %p33 = scmp.ne.s32.totalorder %s21, %s22
      %p34 = scmp.eq.s32.totalorder %s17, 1
      %p35 = por %p33, %p34
      %p37 = scmp.ne.s32.totalorder %s22, %s36
      %p38 = scmp.eq.s32.totalorder %s17, 0
      %p39 = por %p37, %p38
      %s40 = ssub.s32 %s11, %s18
      %p41 = scmp.eq.s32.totalorder %s40, 0
      %s43 = sadd.s32 %s42, 1
      %s44 = scalar_select %p41, %s42, %s43
      %p47 = pneg %p41
      %p48 = scmp.eq.s32.totalorder %s11, 1
      %p49 = por %p47, %p48
      %p50 = scmp.ne.s32.totalorder %s42, %s45
      %p51 = scmp.eq.s32.totalorder %s11, 0
      %p52 = por %p50, %p51
      %p53 = scmp.ne.s32.totalorder %s42, %s45
      %p54 = scmp.eq.s32.totalorder %s16, 1
      %p55 = por %p53, %p54
      %p56 = scmp.ne.s32.totalorder %s45, %s46
      %p57 = scmp.eq.s32.totalorder %s16, 0
      %p58 = por %p56, %p57
      %p59 = scmp.ne.s32.totalorder %s45, %s46
      %p60 = scmp.eq.s32.totalorder %s17, 1
      %p61 = por %p59, %p60
      %p63 = scmp.ne.s32.totalorder %s46, %s62
      %p64 = scmp.eq.s32.totalorder %s17, 0
      %p65 = por %p63, %p64
      %s66 = ssub.s32 %s11, %s18
      %p67 = scmp.eq.s32.totalorder %s66, 0
      %s69 = sadd.s32 %s68, 1
      %s70 = scalar_select %p67, %s68, %s69
      %p73 = pneg %p67
      %p74 = scmp.eq.s32.totalorder %s11, 1
      %p75 = por %p73, %p74
      %p76 = scmp.ne.s32.totalorder %s68, %s71
      %p77 = scmp.eq.s32.totalorder %s11, 0
      %p78 = por %p76, %p77
      %p79 = scmp.ne.s32.totalorder %s68, %s71
      %p80 = scmp.eq.s32.totalorder %s16, 1
      %p81 = por %p79, %p80
      %p82 = scmp.ne.s32.totalorder %s71, %s72
      %p83 = scmp.eq.s32.totalorder %s16, 0
      %p84 = por %p82, %p83
      %p85 = scmp.ne.s32.totalorder %s71, %s72
      %p86 = scmp.eq.s32.totalorder %s17, 1
      %p87 = por %p85, %p86
      %p89 = scmp.ne.s32.totalorder %s72, %s88
      %p90 = scmp.eq.s32.totalorder %s17, 0
      %p91 = por %p89, %p90
      %p92 = scmp.le.s32.totalorder 1, %s11
      %p93 = scmp.lt.s32.totalorder %s11, 3
      %p94 = pnand %p92, %p93
      %p95 = pneg %p94
      // Predicated region
      $region9: #{relu_conv2d.1} parent=5 // pred_check
        _
      $region10: #{relu_conv2d.1} parent=5 // pred_check_branch
        %97 = sbr.rel (%p94) target = $region12
      $region11: #{relu_conv2d.1} parent=5 // pred_region
        %s98 = ssub.s32 %s11, 1
        // Predicated region
        $region13: #{relu_conv2d.1} parent=11 // pred_check
          %p99 = pneg %p32
        $region14: #{relu_conv2d.1} parent=11 // pred_check_branch
          %101 = sbr.rel (%p99) target = $region16
        $region15: #{relu_conv2d.1} parent=11 // pred_region
          _
        $region16: #{relu_conv2d.1} parent=11 // pred_fallthru
          _
      $region12: #{relu_conv2d.1} parent=5 // pred_fallthru
        _
      %p102 = scmp.lt.s32.totalorder %s11, 2
      // Predicated region
      $region17: #{relu_conv2d.1} parent=5 // pred_check
        %p103 = pneg %p102
      $region18: #{relu_conv2d.1} parent=5 // pred_check_branch
        %105 = sbr.rel (%p103) target = $region20
      $region19: #{relu_conv2d.1} parent=5 // pred_region
        // Predicated region
        $region21: #{relu_conv2d.1} parent=19 // pred_check
          %p106 = pneg %p52
        $region22: #{relu_conv2d.1} parent=19 // pred_check_branch
          %108 = sbr.rel (%p106) target = $region24
        $region23: #{relu_conv2d.1} parent=19 // pred_region
          %s109 = sand.u32 %s42, 1
          %s110 = scalar_lea.sflag [#allocation3], %s109
          %s111 = sand.u32 %s42, 1
          %s112 = smul.addr %s111, 4608
          %s113 = scalar_lea.vmem [#allocation2], %s112
          %s114 = smul.u32 2, %s11
          %s116 = ssub.s32 73728, 73728
          %117 = vsyncadd %s110, %s116
          %s118 = smul.addr %s114, 64
          %s119 = scalar_lea.hbm %s1, %s118
          %s120 = sshll.u32 %s113, 4
          %s121 = int_to_ptr.vmem [resolvable:$true] %s120
          %126 = dma.hbm_to_vmem [thread:$0]  %s119, 73728, %s121, %s110, 256, 128, 8
        $region24: #{relu_conv2d.1} parent=19 // pred_fallthru
          _
      $region20: #{relu_conv2d.1} parent=5 // pred_fallthru
        _
      %p127 = scmp.le.s32.totalorder 1, %s11
      %p128 = scmp.lt.s32.totalorder %s11, 3
      %p129 = pnand %p127, %p128
      %p130 = pneg %p129
      // Predicated region
      $region25: #{relu_conv2d.1} parent=5 // pred_check
        _
      $region26: #{relu_conv2d.1} parent=5 // pred_check_branch
        %132 = sbr.rel (%p129) target = $region28
      $region27: #{relu_conv2d.1} parent=5 // pred_region
        %s133 = ssub.s32 %s11, 1
        %s134 = sand.u32 %s45, 1
        %s135 = scalar_lea.sflag [#allocation3], %s134
        %s136 = sand.u32 %s45, 1
        %s137 = smul.addr %s136, 4608
        %s138 = scalar_lea.vmem [#allocation2], %s137
        // Predicated region
        $region29: #{relu_conv2d.1} parent=27 // pred_check
          %p139 = pneg %p58
        $region30: #{relu_conv2d.1} parent=27 // pred_check_branch
          %141 = sbr.rel (%p139) target = $region32
        $region31: #{relu_conv2d.1} parent=27 // pred_region
          %142 = dma.done %s135, 73728
        $region32: #{relu_conv2d.1} parent=27 // pred_fallthru
          _
        %p143 = pneg %p32
        %p144 = pneg %p29
        %s145 = sand.u32 %s45, 1
        %s146 = scalar_lea.sflag [#allocation3], %s145
        %s147 = sand.u32 %s45, 1
        %s148 = smul.addr %s147, 4608
        %s149 = scalar_lea.vmem [#allocation2], %s148
        %p150 = pneg %p58
        %p151 = pneg %p55
        %p152 = pneg %p84
        %p153 = pneg %p81
        %s154 = sand.u32 %s71, 1
        %s155 = sand.u32 %s71, 1
        %s156 = smul.addr %s155, 112
        %s157 = scalar_lea.vmem [#allocation4], %s156
        %s158 = smul.u32 2, %s16
        %s159 = smul.u32 2, %s16
        %v160 = vld [vmem:[%s0] sm:$0xff]
        %v161 = vld [vmem:[%s0 + $0x8] sm:$0xff]
        %v162 = vld [vmem:[%s0 + $0x10] sm:$0xff]
        %v163 = vld [vmem:[%s0 + $0x18] sm:$0xff]
        %v164 = vld [vmem:[%s0 + $0x20] sm:$0xff]
        %v165 = vld [vmem:[%s0 + $0x28] sm:$0xff]
        %v166 = vld [vmem:[%s0 + $0x30] sm:$0xff]
        %v167 = vld [vmem:[%s0 + $0x38] sm:$0xff]
        %v168 = vld [vmem:[%s0 + $0x40] sm:$0xff]
        %v169 = vld [vmem:[%s0 + $0x48] sm:$0xff]
        %v170 = vld [vmem:[%s0 + $0x50] sm:$0xff]
        %v171 = vld [vmem:[%s0 + $0x58] sm:$0xff]
        %v172 = vld [vmem:[%s0 + $0x60] sm:$0xff]
        %v173 = vld [vmem:[%s0 + $0x68] sm:$0xff]
        %v174 = vld [vmem:[%s0 + $0x70] sm:$0xff]
        %v175 = vld [vmem:[%s0 + $0x78] sm:$0xff]
        %v176 = vld [vmem:[%s0 + $0x80] sm:$0xff]
        %v177 = vld [vmem:[%s0 + $0x88] sm:$0xff]
        %v178 = vld [vmem:[%s0 + $0x90] sm:$0xff]
        %v179 = vld [vmem:[%s0 + $0x98] sm:$0xff]
        %v180 = vld [vmem:[%s0 + $0xa0] sm:$0xff]
        %v181 = vld [vmem:[%s0 + $0xa8] sm:$0xff]
        %v182 = vld [vmem:[%s0 + $0xb0] sm:$0xff]
        %v183 = vld [vmem:[%s0 + $0xb8] sm:$0xff]
        %v184 = vld [vmem:[%s0 + $0xc0] sm:$0xff]
        %v185 = vld [vmem:[%s0 + $0xc8] sm:$0xff]
        %v186 = vld [vmem:[%s0 + $0xd0] sm:$0xff]
        %v187 = vld [vmem:[%s0 + $0xd8] sm:$0xff]
        %v188 = vpack.c.bf16 %v164, %v160
        %v189 = vpack.c.bf16 %v165, %v161
        %v190 = vpack.c.bf16 %v166, %v162
        %v191 = vpack.c.bf16 %v167, %v163
        %v192 = vpack.c.bf16 %v172, %v168
        %v193 = vpack.c.bf16 %v173, %v169
        %v194 = vpack.c.bf16 %v174, %v170
        %v195 = vpack.c.bf16 %v175, %v171
        %v196 = vpack.c.bf16 %v180, %v176
        %v197 = vpack.c.bf16 %v181, %v177
        %v198 = vpack.c.bf16 %v182, %v178
        %v199 = vpack.c.bf16 %v183, %v179
        %v200 = vpack.c.bf16 %v184, %v184
        %v201 = vpack.c.bf16 %v185, %v185
        %v202 = vpack.c.bf16 %v186, %v186
        %v203 = vpack.c.bf16 %v187, %v187
        %v204 = vld [vmem:[%s138] sm:$0xff]
        %v205 = vld [vmem:[%s138 + $0x8] sm:$0xff]
        %v206 = vld [vmem:[%s138 + $0x10] sm:$0xff]
        %v207 = vld [vmem:[%s138 + $0x18] sm:$0xff]
        %v208 = vld [vmem:[%s138 + $0x20] sm:$0xff]
        %v209 = vld [vmem:[%s138 + $0x28] sm:$0xff]
        %v210 = vld [vmem:[%s138 + $0x30] sm:$0xff]
        %v211 = vld [vmem:[%s138 + $0x38] sm:$0xff]
        %v212 = vld [vmem:[%s138 + $0x40] sm:$0xff]
        %v213 = vld [vmem:[%s138 + $0x48] sm:$0xff]
        %v214 = vld [vmem:[%s138 + $0x50] sm:$0xff]
        %v215 = vld [vmem:[%s138 + $0x58] sm:$0xff]
        %v216 = vld [vmem:[%s138 + $0x60] sm:$0xff]
        %v217 = vld [vmem:[%s138 + $0x68] sm:$0xff]
        %v218 = vld [vmem:[%s138 + $0x70] sm:$0xff]
        %v219 = vld [vmem:[%s138 + $0x78] sm:$0xff]
        %v220 = vld [vmem:[%s138 + $0x80] sm:$0xff]
        %v221 = vld [vmem:[%s138 + $0x88] sm:$0xff]
        %v222 = vld [vmem:[%s138 + $0x90] sm:$0xff]
        %v223 = vld [vmem:[%s138 + $0x98] sm:$0xff]
        %v224 = vld [vmem:[%s138 + $0xa0] sm:$0xff]
        %v225 = vld [vmem:[%s138 + $0xa8] sm:$0xff]
        %v226 = vld [vmem:[%s138 + $0xb0] sm:$0xff]
        %v227 = vld [vmem:[%s138 + $0xb8] sm:$0xff]
        %v228 = vld [vmem:[%s138 + $0xc0] sm:$0xff]
        %v229 = vld [vmem:[%s138 + $0xc8] sm:$0xff]
        %v230 = vld [vmem:[%s138 + $0xd0] sm:$0xff]
        %v231 = vld [vmem:[%s138 + $0xd8] sm:$0xff]
        %v232 = vld [vmem:[%s138 + $0xe0] sm:$0xff]
        %v233 = vld [vmem:[%s138 + $0xe8] sm:$0xff]
        %v234 = vld [vmem:[%s138 + $0xf0] sm:$0xff]
        %v235 = vld [vmem:[%s138 + $0xf8] sm:$0xff]
        %v236 = vld [vmem:[%s138 + $0x100] sm:$0xff]
        %v237 = vld [vmem:[%s138 + $0x108] sm:$0xff]
        %v238 = vld [vmem:[%s138 + $0x110] sm:$0xff]
        %v239 = vld [vmem:[%s138 + $0x118] sm:$0xff]
        %v240 = vld [vmem:[%s138 + $0x120] sm:$0xff]
        %v241 = vld [vmem:[%s138 + $0x128] sm:$0xff]
        %v242 = vld [vmem:[%s138 + $0x130] sm:$0xff]
        %v243 = vld [vmem:[%s138 + $0x138] sm:$0xff]
        %v244 = vld [vmem:[%s138 + $0x140] sm:$0xff]
        %v245 = vld [vmem:[%s138 + $0x148] sm:$0xff]
        %v246 = vld [vmem:[%s138 + $0x150] sm:$0xff]
        %v247 = vld [vmem:[%s138 + $0x158] sm:$0xff]
        %v248 = vld [vmem:[%s138 + $0x160] sm:$0xff]
        %v249 = vld [vmem:[%s138 + $0x168] sm:$0xff]
        %v250 = vld [vmem:[%s138 + $0x170] sm:$0xff]
        %v251 = vld [vmem:[%s138 + $0x178] sm:$0xff]
        %v252 = vld [vmem:[%s138 + $0x180] sm:$0xff]
        %v253 = vld [vmem:[%s138 + $0x188] sm:$0xff]
        %v254 = vld [vmem:[%s138 + $0x190] sm:$0xff]
        %v255 = vld [vmem:[%s138 + $0x198] sm:$0xff]
        %v256 = vld [vmem:[%s138 + $0x1a0] sm:$0xff]
        %v257 = vld [vmem:[%s138 + $0x1a8] sm:$0xff]
        %v258 = vld [vmem:[%s138 + $0x1b0] sm:$0xff]
        %v259 = vld [vmem:[%s138 + $0x1b8] sm:$0xff]
        %v260 = vld [vmem:[%s138 + $0x1c0] sm:$0xff]
        %v261 = vld [vmem:[%s138 + $0x1c8] sm:$0xff]
        %v262 = vld [vmem:[%s138 + $0x1d0] sm:$0xff]
        %v263 = vld [vmem:[%s138 + $0x1d8] sm:$0xff]
        %v264 = vld [vmem:[%s138 + $0x1e0] sm:$0xff]
        %v265 = vld [vmem:[%s138 + $0x1e8] sm:$0xff]
        %v266 = vld [vmem:[%s138 + $0x1f0] sm:$0xff]
        %v267 = vld [vmem:[%s138 + $0x1f8] sm:$0xff]
        %v332 = vunpack.c.l.b16 %v204
        %v333 = vunpack.c.h.b16 %v204
        %v334 = vunpack.c.l.b16 %v205
        %v335 = vunpack.c.h.b16 %v205
        %v336 = vunpack.c.l.b16 %v206
        %v337 = vunpack.c.h.b16 %v206
        %v338 = vunpack.c.l.b16 %v207
        %v339 = vunpack.c.h.b16 %v207
        %v340 = vunpack.c.l.b16 %v208
        %v341 = vunpack.c.h.b16 %v208
        %v342 = vunpack.c.l.b16 %v209
        %v343 = vunpack.c.h.b16 %v209
        %v344 = vunpack.c.l.b16 %v210
        %v345 = vunpack.c.h.b16 %v210
        %v346 = vunpack.c.l.b16 %v211
        %v347 = vunpack.c.h.b16 %v211
        %v348 = vunpack.c.l.b16 %v212
        %v349 = vunpack.c.h.b16 %v212
        %v350 = vunpack.c.l.b16 %v213
        %v351 = vunpack.c.h.b16 %v213
        %v352 = vunpack.c.l.b16 %v214
        %v353 = vunpack.c.h.b16 %v214
        %v354 = vunpack.c.l.b16 %v215
        %v355 = vunpack.c.h.b16 %v215
        %v356 = vunpack.c.l.b16 %v216
        %v357 = vunpack.c.h.b16 %v216
        %v358 = vunpack.c.l.b16 %v217
        %v359 = vunpack.c.h.b16 %v217
        %v360 = vunpack.c.l.b16 %v218
        %v361 = vunpack.c.h.b16 %v218
        %v362 = vunpack.c.l.b16 %v219
        %v363 = vunpack.c.h.b16 %v219
        %v364 = vunpack.c.l.b16 %v220
        %v365 = vunpack.c.h.b16 %v220
        %v366 = vunpack.c.l.b16 %v221
        %v367 = vunpack.c.h.b16 %v221
        %v368 = vunpack.c.l.b16 %v222
        %v369 = vunpack.c.h.b16 %v222
        %v370 = vunpack.c.l.b16 %v223
        %v371 = vunpack.c.h.b16 %v223
        %v372 = vunpack.c.l.b16 %v224
        %v373 = vunpack.c.h.b16 %v224
        %v374 = vunpack.c.l.b16 %v225
        %v375 = vunpack.c.h.b16 %v225
        %v376 = vunpack.c.l.b16 %v226
        %v377 = vunpack.c.h.b16 %v226
        %v378 = vunpack.c.l.b16 %v227
        %v379 = vunpack.c.h.b16 %v227
        %v380 = vunpack.c.l.b16 %v228
        %v381 = vunpack.c.h.b16 %v228
        %v382 = vunpack.c.l.b16 %v229
        %v383 = vunpack.c.h.b16 %v229
        %v384 = vunpack.c.l.b16 %v230
        %v385 = vunpack.c.h.b16 %v230
        %v386 = vunpack.c.l.b16 %v231
        %v387 = vunpack.c.h.b16 %v231
        %v388 = vunpack.c.l.b16 %v232
        %v389 = vunpack.c.h.b16 %v232
        %v390 = vunpack.c.l.b16 %v233
        %v391 = vunpack.c.h.b16 %v233
        %v392 = vunpack.c.l.b16 %v234
        %v393 = vunpack.c.h.b16 %v234
        %v394 = vunpack.c.l.b16 %v235
        %v395 = vunpack.c.h.b16 %v235
        %v396 = vunpack.c.l.b16 %v236
        %v397 = vunpack.c.h.b16 %v236
        %v398 = vunpack.c.l.b16 %v237
        %v399 = vunpack.c.h.b16 %v237
        %v400 = vunpack.c.l.b16 %v238
        %v401 = vunpack.c.h.b16 %v238
        %v402 = vunpack.c.l.b16 %v239
        %v403 = vunpack.c.h.b16 %v239
        %v404 = vunpack.c.l.b16 %v240
        %v405 = vunpack.c.h.b16 %v240
        %v406 = vunpack.c.l.b16 %v241
        %v407 = vunpack.c.h.b16 %v241
        %v408 = vunpack.c.l.b16 %v242
        %v409 = vunpack.c.h.b16 %v242
        %v410 = vunpack.c.l.b16 %v243
        %v411 = vunpack.c.h.b16 %v243
        %v412 = vunpack.c.l.b16 %v244
        %v413 = vunpack.c.h.b16 %v244
        %v414 = vunpack.c.l.b16 %v245
        %v415 = vunpack.c.h.b16 %v245
        %v416 = vunpack.c.l.b16 %v246
        %v417 = vunpack.c.h.b16 %v246
        %v418 = vunpack.c.l.b16 %v247
        %v419 = vunpack.c.h.b16 %v247
        %v420 = vunpack.c.l.b16 %v248
        %v421 = vunpack.c.h.b16 %v248
        %v422 = vunpack.c.l.b16 %v249
        %v423 = vunpack.c.h.b16 %v249
        %v424 = vunpack.c.l.b16 %v250
        %v425 = vunpack.c.h.b16 %v250
        %v426 = vunpack.c.l.b16 %v251
        %v427 = vunpack.c.h.b16 %v251
        %v428 = vunpack.c.l.b16 %v252
        %v429 = vunpack.c.h.b16 %v252
        %v430 = vunpack.c.l.b16 %v253
        %v431 = vunpack.c.h.b16 %v253
        %v432 = vunpack.c.l.b16 %v254
        %v433 = vunpack.c.h.b16 %v254
        %v434 = vunpack.c.l.b16 %v255
        %v435 = vunpack.c.h.b16 %v255
        %v436 = vunpack.c.l.b16 %v256
        %v437 = vunpack.c.h.b16 %v256
        %v438 = vunpack.c.l.b16 %v257
        %v439 = vunpack.c.h.b16 %v257
        %v440 = vunpack.c.l.b16 %v258
        %v441 = vunpack.c.h.b16 %v258
        %v442 = vunpack.c.l.b16 %v259
        %v443 = vunpack.c.h.b16 %v259
        %v444 = vunpack.c.l.b16 %v260
        %v445 = vunpack.c.h.b16 %v260
        %v446 = vunpack.c.l.b16 %v261
        %v447 = vunpack.c.h.b16 %v261
        %v448 = vunpack.c.l.b16 %v262
        %v449 = vunpack.c.h.b16 %v262
        %v450 = vunpack.c.l.b16 %v263
        %v451 = vunpack.c.h.b16 %v263
        %v452 = vunpack.c.l.b16 %v264
        %v453 = vunpack.c.h.b16 %v264
        %v454 = vunpack.c.l.b16 %v265
        %v455 = vunpack.c.h.b16 %v265
        %v456 = vunpack.c.l.b16 %v266
        %v457 = vunpack.c.h.b16 %v266
        %v458 = vunpack.c.l.b16 %v267
        %v459 = vunpack.c.h.b16 %v267
        %v460 = vpack.c.b16 %v334, %v332
        %v461 = vpack.c.b16 %v335, %v333
        %v462 = vpack.c.b16 %v338, %v336
        %v463 = vpack.c.b16 %v339, %v337
        %v464 = vpack.c.b16 %v342, %v340
        %v465 = vpack.c.b16 %v343, %v341
        %v466 = vpack.c.b16 %v346, %v344
        %v467 = vpack.c.b16 %v347, %v345
        %v468 = vpack.c.b16 %v350, %v348
        %v469 = vpack.c.b16 %v351, %v349
        %v470 = vpack.c.b16 %v354, %v352
        %v471 = vpack.c.b16 %v355, %v353
        %v472 = vpack.c.b16 %v358, %v356
        %v473 = vpack.c.b16 %v359, %v357
        %v474 = vpack.c.b16 %v362, %v360
        %v475 = vpack.c.b16 %v363, %v361
        %v476 = vpack.c.b16 %v366, %v364
        %v477 = vpack.c.b16 %v367, %v365
        %v478 = vpack.c.b16 %v370, %v368
        %v479 = vpack.c.b16 %v371, %v369
        %v480 = vpack.c.b16 %v374, %v372
        %v481 = vpack.c.b16 %v375, %v373
        %v482 = vpack.c.b16 %v378, %v376
        %v483 = vpack.c.b16 %v379, %v377
        %v484 = vpack.c.b16 %v382, %v380
        %v485 = vpack.c.b16 %v383, %v381
        %v486 = vpack.c.b16 %v386, %v384
        %v487 = vpack.c.b16 %v387, %v385
        %v488 = vpack.c.b16 %v390, %v388
        %v489 = vpack.c.b16 %v391, %v389
        %v490 = vpack.c.b16 %v394, %v392
        %v491 = vpack.c.b16 %v395, %v393
        %v492 = vpack.c.b16 %v398, %v396
        %v493 = vpack.c.b16 %v399, %v397
        %v494 = vpack.c.b16 %v402, %v400
        %v495 = vpack.c.b16 %v403, %v401
        %v496 = vpack.c.b16 %v406, %v404
        %v497 = vpack.c.b16 %v407, %v405
        %v498 = vpack.c.b16 %v410, %v408
        %v499 = vpack.c.b16 %v411, %v409
        %v500 = vpack.c.b16 %v414, %v412
        %v501 = vpack.c.b16 %v415, %v413
        %v502 = vpack.c.b16 %v418, %v416
        %v503 = vpack.c.b16 %v419, %v417
        %v504 = vpack.c.b16 %v422, %v420
        %v505 = vpack.c.b16 %v423, %v421
        %v506 = vpack.c.b16 %v426, %v424
        %v507 = vpack.c.b16 %v427, %v425
        %v508 = vpack.c.b16 %v430, %v428
        %v509 = vpack.c.b16 %v431, %v429
        %v510 = vpack.c.b16 %v434, %v432
        %v511 = vpack.c.b16 %v435, %v433
        %v512 = vpack.c.b16 %v438, %v436
        %v513 = vpack.c.b16 %v439, %v437
        %v514 = vpack.c.b16 %v442, %v440
        %v515 = vpack.c.b16 %v443, %v441
        %v516 = vpack.c.b16 %v446, %v444
        %v517 = vpack.c.b16 %v447, %v445
        %v518 = vpack.c.b16 %v450, %v448
        %v519 = vpack.c.b16 %v451, %v449
        %v520 = vpack.c.b16 %v454, %v452
        %v521 = vpack.c.b16 %v455, %v453
        %v522 = vpack.c.b16 %v458, %v456
        %v523 = vpack.c.b16 %v459, %v457
        %588 = vmatprep.subr.bf16.mxu0 %v475
        %589 = vmatpush1.bf16.msra.mxu0 %v474
        %590 = vmatprep.subr.bf16.mxu0 %v473
        %591 = vmatpush1.bf16.msra.mxu0 %v472
        %592 = vmatprep.subr.bf16.mxu0 %v471
        %593 = vmatpush1.bf16.msra.mxu0 %v470
        %594 = vmatprep.subr.bf16.mxu0 %v469
        %595 = vmatpush1.bf16.msra.mxu0 %v468
        %596 = vmatprep.subr.bf16.mxu0 %v467
        %597 = vmatpush1.bf16.msra.mxu0 %v466
        %598 = vmatprep.subr.bf16.mxu0 %v465
        %599 = vmatpush1.bf16.msra.mxu0 %v464
        %600 = vmatprep.subr.bf16.mxu0 %v463
        %601 = vmatpush1.bf16.msra.mxu0 %v462
        %602 = vmatprep.subr.bf16.mxu0 %v461
        %603 = vmatpush1.bf16.msra.mxu0 %v460
        %604 = vmatprep.subr.bf16.mxu0 %v491
        %605 = vmatpush2.bf16.msra.mxu0 %v490
        %606 = vmatprep.subr.bf16.mxu0 %v489
        %607 = vmatpush2.bf16.msra.mxu0 %v488
        %608 = vmatprep.subr.bf16.mxu0 %v487
        %609 = vmatpush2.bf16.msra.mxu0 %v486
        %610 = vmatprep.subr.bf16.mxu0 %v485
        %611 = vmatpush2.bf16.msra.mxu0 %v484
        %612 = vmatprep.subr.bf16.mxu0 %v483
        %613 = vmatpush2.bf16.msra.mxu0 %v482
        %614 = vmatprep.subr.bf16.mxu0 %v481
        %615 = vmatpush2.bf16.msra.mxu0 %v480
        %616 = vmatprep.subr.bf16.mxu0 %v479
        %617 = vmatpush2.bf16.msra.mxu0 %v478
        %618 = vmatprep.subr.bf16.mxu0 %v477
        %619 = vmatpush2.bf16.msra.mxu0 %v476
        %620 = vmatprep.mubr.bf16.mxu0 %v189
        %621 = vmatmul.mubr.bf16.gmra.mxu0 %v188
        %v622 = vpop.f32.mrf.mxu0
        %v623 = vadd.f32 0.0, %v622
        %v624 = vpop.f32.mrf.mxu0
        %v625 = vadd.f32 0.0, %v624
        %v626 = vpop.f32.mrf.mxu0
        %v627 = vadd.f32 0.0, %v626
        %v628 = vpop.f32.mrf.mxu0
        %v629 = vadd.f32 0.0, %v628
        %630 = vmatprep.mubr.bf16.mxu0 %v193
        %631 = vmatmul.mubr.bf16.gmra.mxu0 %v192
        %v632 = vpop.f32.mrf.mxu0
        %v633 = vadd.f32 0.0, %v632
        %v634 = vpop.f32.mrf.mxu0
        %v635 = vadd.f32 0.0, %v634
        %v636 = vpop.f32.mrf.mxu0
        %v637 = vadd.f32 0.0, %v636
        %v638 = vpop.f32.mrf.mxu0
        %v639 = vadd.f32 0.0, %v638
        %640 = vmatprep.mubr.bf16.mxu0 %v197
        %641 = vmatmul.mubr.bf16.gmra.mxu0 %v196
        %v642 = vpop.f32.mrf.mxu0
        %v643 = vadd.f32 0.0, %v642
        %v644 = vpop.f32.mrf.mxu0
        %v645 = vadd.f32 0.0, %v644
        %v646 = vpop.f32.mrf.mxu0
        %v647 = vadd.f32 0.0, %v646
        %v648 = vpop.f32.mrf.mxu0
        %v649 = vadd.f32 0.0, %v648
        %650 = vmatprep.mubr.bf16.mxu0 %v201
        %651 = vmatmul.mubr.bf16.gmra.mxu0 %v200
        %v652 = vpop.f32.mrf.mxu0
        %v653 = vadd.f32 0.0, %v652
        %v654 = vpop.f32.mrf.mxu0
        %v655 = vadd.f32 0.0, %v654
        %v656 = vpop.f32.mrf.mxu0
        %v657 = vpop.f32.mrf.mxu0
        %658 = vdwg.mxu0
        %659 = vmatprep.subr.bf16.mxu0 %v507
        %660 = vmatpush1.bf16.msra.mxu0 %v506
        %661 = vmatprep.subr.bf16.mxu0 %v505
        %662 = vmatpush1.bf16.msra.mxu0 %v504
        %663 = vmatprep.subr.bf16.mxu0 %v503
        %664 = vmatpush1.bf16.msra.mxu0 %v502
        %665 = vmatprep.subr.bf16.mxu0 %v501
        %666 = vmatpush1.bf16.msra.mxu0 %v500
        %667 = vmatprep.subr.bf16.mxu0 %v499
        %668 = vmatpush1.bf16.msra.mxu0 %v498
        %669 = vmatprep.subr.bf16.mxu0 %v497
        %670 = vmatpush1.bf16.msra.mxu0 %v496
        %671 = vmatprep.subr.bf16.mxu0 %v495
        %672 = vmatpush1.bf16.msra.mxu0 %v494
        %673 = vmatprep.subr.bf16.mxu0 %v493
        %674 = vmatpush1.bf16.msra.mxu0 %v492
        %675 = vmatprep.subr.bf16.mxu0 %v523
        %676 = vmatpush2.bf16.msra.mxu0 %v522
        %677 = vmatprep.subr.bf16.mxu0 %v521
        %678 = vmatpush2.bf16.msra.mxu0 %v520
        %679 = vmatprep.subr.bf16.mxu0 %v519
        %680 = vmatpush2.bf16.msra.mxu0 %v518
        %681 = vmatprep.subr.bf16.mxu0 %v517
        %682 = vmatpush2.bf16.msra.mxu0 %v516
        %683 = vmatprep.subr.bf16.mxu0 %v515
        %684 = vmatpush2.bf16.msra.mxu0 %v514
        %685 = vmatprep.subr.bf16.mxu0 %v513
        %686 = vmatpush2.bf16.msra.mxu0 %v512
        %687 = vmatprep.subr.bf16.mxu0 %v511
        %688 = vmatpush2.bf16.msra.mxu0 %v510
        %689 = vmatprep.subr.bf16.mxu0 %v509
        %690 = vmatpush2.bf16.msra.mxu0 %v508
        %691 = vmatprep.mubr.bf16.mxu0 %v191
        %692 = vmatmul.mubr.bf16.gmra.mxu0 %v190
        %v693 = vpop.f32.mrf.mxu0
        %v694 = vadd.f32 %v623, %v693
        %v695 = vpop.f32.mrf.mxu0
        %v696 = vadd.f32 %v625, %v695
        %v697 = vpop.f32.mrf.mxu0
        %v698 = vadd.f32 %v627, %v697
        %v699 = vpop.f32.mrf.mxu0
        %v700 = vadd.f32 %v629, %v699
        %701 = vmatprep.mubr.bf16.mxu0 %v195
        %702 = vmatmul.mubr.bf16.gmra.mxu0 %v194
        %v703 = vpop.f32.mrf.mxu0
        %v704 = vadd.f32 %v633, %v703
        %v705 = vpop.f32.mrf.mxu0
        %v706 = vadd.f32 %v635, %v705
        %v707 = vpop.f32.mrf.mxu0
        %v708 = vadd.f32 %v637, %v707
        %v709 = vpop.f32.mrf.mxu0
        %v710 = vadd.f32 %v639, %v709
        %711 = vmatprep.mubr.bf16.mxu0 %v199
        %712 = vmatmul.mubr.bf16.gmra.mxu0 %v198
        %v713 = vpop.f32.mrf.mxu0
        %v714 = vadd.f32 %v643, %v713
        %v715 = vpop.f32.mrf.mxu0
        %v716 = vadd.f32 %v645, %v715
        %v717 = vpop.f32.mrf.mxu0
        %v718 = vadd.f32 %v647, %v717
        %v719 = vpop.f32.mrf.mxu0
        %v720 = vadd.f32 %v649, %v719
        %721 = vmatprep.mubr.bf16.mxu0 %v203
        %722 = vmatmul.mubr.bf16.gmra.mxu0 %v202
        %v723 = vpop.f32.mrf.mxu0
        %v724 = vadd.f32 %v653, %v723
        %v725 = vpop.f32.mrf.mxu0
        %v726 = vadd.f32 %v655, %v725
        %v727 = vpop.f32.mrf.mxu0
        %v728 = vpop.f32.mrf.mxu0
        %729 = vdwg.mxu0
        %730 = vst [vmem:[%s157] sm:$0xff] %v694
        %731 = vst [vmem:[%s157 + $0x8] sm:$0xff] %v696
        %732 = vst [vmem:[%s157 + $0x10] sm:$0xff] %v698
        %733 = vst [vmem:[%s157 + $0x18] sm:$0xff] %v700
        %734 = vst [vmem:[%s157 + $0x20] sm:$0xff] %v704
        %735 = vst [vmem:[%s157 + $0x28] sm:$0xff] %v706
        %736 = vst [vmem:[%s157 + $0x30] sm:$0xff] %v708
        %737 = vst [vmem:[%s157 + $0x38] sm:$0xff] %v710
        %738 = vst [vmem:[%s157 + $0x40] sm:$0xff] %v714
        %739 = vst [vmem:[%s157 + $0x48] sm:$0xff] %v716
        %740 = vst [vmem:[%s157 + $0x50] sm:$0xff] %v718
        %741 = vst [vmem:[%s157 + $0x58] sm:$0xff] %v720
        %742 = vst [vmem:[%s157 + $0x60] sm:$0xff] %v724
        %743 = vst [vmem:[%s157 + $0x68] sm:$0xff] %v726
        %v744 = vld [vmem:[%s0] sm:$0xfe]
        %v745 = vld [vmem:[%s0 + $0x8] sm:$0xfe]
        %v746 = vld [vmem:[%s0 + $0x10] sm:$0xfe]
        %v747 = vld [vmem:[%s0 + $0x18] sm:$0xfe]
        %v748 = vld [vmem:[%s0 + $0x20] sm:$0xff]
        %v749 = vld [vmem:[%s0 + $0x28] sm:$0xff]
        %v750 = vld [vmem:[%s0 + $0x30] sm:$0xff]
        %v751 = vld [vmem:[%s0 + $0x38] sm:$0xff]
        %v752 = vld [vmem:[%s0 + $0x40] sm:$0xff]
        %v753 = vld [vmem:[%s0 + $0x48] sm:$0xff]
        %v754 = vld [vmem:[%s0 + $0x50] sm:$0xff]
        %v755 = vld [vmem:[%s0 + $0x58] sm:$0xff]
        %v756 = vld [vmem:[%s0 + $0x60] sm:$0xff]
        %v757 = vld [vmem:[%s0 + $0x68] sm:$0xff]
        %v758 = vld [vmem:[%s0 + $0x70] sm:$0xff]
        %v759 = vld [vmem:[%s0 + $0x78] sm:$0xff]
        %v760 = vld [vmem:[%s0 + $0x80] sm:$0xff]
        %v761 = vld [vmem:[%s0 + $0x88] sm:$0xff]
        %v762 = vld [vmem:[%s0 + $0x90] sm:$0xff]
        %v763 = vld [vmem:[%s0 + $0x98] sm:$0xff]
        %v764 = vld [vmem:[%s0 + $0xa0] sm:$0xff]
        %v765 = vld [vmem:[%s0 + $0xa8] sm:$0xff]
        %v766 = vld [vmem:[%s0 + $0xb0] sm:$0xff]
        %v767 = vld [vmem:[%s0 + $0xb8] sm:$0xff]
        %v768 = vld [vmem:[%s0 + $0xc0] sm:$0xff]
        %v769 = vld [vmem:[%s0 + $0xc8] sm:$0xff]
        %v770 = vld [vmem:[%s0 + $0xd0] sm:$0xff]
        %v771 = vld [vmem:[%s0 + $0xd8] sm:$0xff]
        %v772 = vld [vmem:[%s0 + $0xe0] sm:$0x1]
        %v773 = vld [vmem:[%s0 + $0xe8] sm:$0x1]
        %v774 = vld [vmem:[%s0 + $0xf0] sm:$0x1]
        %v775 = vld [vmem:[%s0 + $0xf8] sm:$0x1]
        %v776 = vpack.c.bf16 %v748, %v744
        %v777 = vpack.c.bf16 %v749, %v745
        %v778 = vpack.c.bf16 %v750, %v746
        %v779 = vpack.c.bf16 %v751, %v747
        %v780 = vpack.c.bf16 %v756, %v752
        %v781 = vpack.c.bf16 %v757, %v753
        %v782 = vpack.c.bf16 %v758, %v754
        %v783 = vpack.c.bf16 %v759, %v755
        %v784 = vpack.c.bf16 %v764, %v760
        %v785 = vpack.c.bf16 %v765, %v761
        %v786 = vpack.c.bf16 %v766, %v762
        %v787 = vpack.c.bf16 %v767, %v763
        %v788 = vpack.c.bf16 %v772, %v768
        %v789 = vpack.c.bf16 %v773, %v769
        %v790 = vpack.c.bf16 %v774, %v770
        %v791 = vpack.c.bf16 %v775, %v771
        %s792 = scalar_lea.vmem %s138, 512 [#allocation2]
        %v793 = vld [vmem:[%s792] sm:$0xff]
        %v794 = vld [vmem:[%s792 + $0x8] sm:$0xff]
        %v795 = vld [vmem:[%s792 + $0x10] sm:$0xff]
        %v796 = vld [vmem:[%s792 + $0x18] sm:$0xff]
        %v797 = vld [vmem:[%s792 + $0x20] sm:$0xff]
        %v798 = vld [vmem:[%s792 + $0x28] sm:$0xff]
        %v799 = vld [vmem:[%s792 + $0x30] sm:$0xff]
        %v800 = vld [vmem:[%s792 + $0x38] sm:$0xff]
        %v801 = vld [vmem:[%s792 + $0x40] sm:$0xff]
        %v802 = vld [vmem:[%s792 + $0x48] sm:$0xff]
        %v803 = vld [vmem:[%s792 + $0x50] sm:$0xff]
        %v804 = vld [vmem:[%s792 + $0x58] sm:$0xff]
        %v805 = vld [vmem:[%s792 + $0x60] sm:$0xff]
        %v806 = vld [vmem:[%s792 + $0x68] sm:$0xff]
        %v807 = vld [vmem:[%s792 + $0x70] sm:$0xff]
        %v808 = vld [vmem:[%s792 + $0x78] sm:$0xff]
        %v809 = vld [vmem:[%s792 + $0x80] sm:$0xff]
        %v810 = vld [vmem:[%s792 + $0x88] sm:$0xff]
        %v811 = vld [vmem:[%s792 + $0x90] sm:$0xff]
        %v812 = vld [vmem:[%s792 + $0x98] sm:$0xff]
        %v813 = vld [vmem:[%s792 + $0xa0] sm:$0xff]
        %v814 = vld [vmem:[%s792 + $0xa8] sm:$0xff]
        %v815 = vld [vmem:[%s792 + $0xb0] sm:$0xff]
        %v816 = vld [vmem:[%s792 + $0xb8] sm:$0xff]
        %v817 = vld [vmem:[%s792 + $0xc0] sm:$0xff]
        %v818 = vld [vmem:[%s792 + $0xc8] sm:$0xff]
        %v819 = vld [vmem:[%s792 + $0xd0] sm:$0xff]
        %v820 = vld [vmem:[%s792 + $0xd8] sm:$0xff]
        %v821 = vld [vmem:[%s792 + $0xe0] sm:$0xff]
        %v822 = vld [vmem:[%s792 + $0xe8] sm:$0xff]
        %v823 = vld [vmem:[%s792 + $0xf0] sm:$0xff]
        %v824 = vld [vmem:[%s792 + $0xf8] sm:$0xff]
        %v825 = vld [vmem:[%s792 + $0x100] sm:$0xff]
        %v826 = vld [vmem:[%s792 + $0x108] sm:$0xff]
        %v827 = vld [vmem:[%s792 + $0x110] sm:$0xff]
        %v828 = vld [vmem:[%s792 + $0x118] sm:$0xff]
        %v829 = vld [vmem:[%s792 + $0x120] sm:$0xff]
        %v830 = vld [vmem:[%s792 + $0x128] sm:$0xff]
        %v831 = vld [vmem:[%s792 + $0x130] sm:$0xff]
        %v832 = vld [vmem:[%s792 + $0x138] sm:$0xff]
        %v833 = vld [vmem:[%s792 + $0x140] sm:$0xff]
        %v834 = vld [vmem:[%s792 + $0x148] sm:$0xff]
        %v835 = vld [vmem:[%s792 + $0x150] sm:$0xff]
        %v836 = vld [vmem:[%s792 + $0x158] sm:$0xff]
        %v837 = vld [vmem:[%s792 + $0x160] sm:$0xff]
        %v838 = vld [vmem:[%s792 + $0x168] sm:$0xff]
        %v839 = vld [vmem:[%s792 + $0x170] sm:$0xff]
        %v840 = vld [vmem:[%s792 + $0x178] sm:$0xff]
        %v841 = vld [vmem:[%s792 + $0x180] sm:$0xff]
        %v842 = vld [vmem:[%s792 + $0x188] sm:$0xff]
        %v843 = vld [vmem:[%s792 + $0x190] sm:$0xff]
        %v844 = vld [vmem:[%s792 + $0x198] sm:$0xff]
        %v845 = vld [vmem:[%s792 + $0x1a0] sm:$0xff]
        %v846 = vld [vmem:[%s792 + $0x1a8] sm:$0xff]
        %v847 = vld [vmem:[%s792 + $0x1b0] sm:$0xff]
        %v848 = vld [vmem:[%s792 + $0x1b8] sm:$0xff]
        %v849 = vld [vmem:[%s792 + $0x1c0] sm:$0xff]
        %v850 = vld [vmem:[%s792 + $0x1c8] sm:$0xff]
        %v851 = vld [vmem:[%s792 + $0x1d0] sm:$0xff]
        %v852 = vld [vmem:[%s792 + $0x1d8] sm:$0xff]
        %v853 = vld [vmem:[%s792 + $0x1e0] sm:$0xff]
        %v854 = vld [vmem:[%s792 + $0x1e8] sm:$0xff]
        %v855 = vld [vmem:[%s792 + $0x1f0] sm:$0xff]
        %v856 = vld [vmem:[%s792 + $0x1f8] sm:$0xff]
        %vm857 = vsmask.f32 7424
        %v859 = vshrl.u32 %v776, 16
        %v861 = vshll.u32 %v776, 16
        %v863 = vrot.slane %v861, 1
        %v864 = vor.u32 %v859, %v863
        %v866 = vshll.u32 %v780, 16
        %v868 = vrot.slane %v866, 1
        %v869 = vsel %vm857, %v864, %v868
        %v871 = vshrl.u32 %v777, 16
        %v873 = vshll.u32 %v777, 16
        %v875 = vrot.slane %v873, 1
        %v876 = vor.u32 %v871, %v875
        %v878 = vshll.u32 %v781, 16
        %v880 = vrot.slane %v878, 1
        %v881 = vsel %vm857, %v876, %v880
        %v883 = vshrl.u32 %v778, 16
        %v885 = vshll.u32 %v778, 16
        %v887 = vrot.slane %v885, 1
        %v888 = vor.u32 %v883, %v887
        %v890 = vshll.u32 %v782, 16
        %v892 = vrot.slane %v890, 1
        %v893 = vsel %vm857, %v888, %v892
        %v895 = vshrl.u32 %v779, 16
        %v897 = vshll.u32 %v779, 16
        %v899 = vrot.slane %v897, 1
        %v900 = vor.u32 %v895, %v899
        %v902 = vshll.u32 %v783, 16
        %v904 = vrot.slane %v902, 1
        %v905 = vsel %vm857, %v900, %v904
        %v906 = vshrl.u32 %v780, 16
        %v908 = vor.u32 %v906, %v868
        %v910 = vshll.u32 %v784, 16
        %v912 = vrot.slane %v910, 1
        %v913 = vsel %vm857, %v908, %v912
        %v914 = vshrl.u32 %v781, 16
        %v916 = vor.u32 %v914, %v880
        %v918 = vshll.u32 %v785, 16
        %v920 = vrot.slane %v918, 1
        %v921 = vsel %vm857, %v916, %v920
        %v922 = vshrl.u32 %v782, 16
        %v924 = vor.u32 %v922, %v892
        %v926 = vshll.u32 %v786, 16
        %v928 = vrot.slane %v926, 1
        %v929 = vsel %vm857, %v924, %v928
        %v930 = vshrl.u32 %v783, 16
        %v932 = vor.u32 %v930, %v904
        %v934 = vshll.u32 %v787, 16
        %v936 = vrot.slane %v934, 1
        %v937 = vsel %vm857, %v932, %v936
        %v938 = vshrl.u32 %v784, 16
        %v940 = vor.u32 %v938, %v912
        %v942 = vshll.u32 %v788, 16
        %v944 = vrot.slane %v942, 1
        %v945 = vsel %vm857, %v940, %v944
        %v946 = vshrl.u32 %v785, 16
        %v948 = vor.u32 %v946, %v920
        %v950 = vshll.u32 %v789, 16
        %v952 = vrot.slane %v950, 1
        %v953 = vsel %vm857, %v948, %v952
        %v954 = vshrl.u32 %v786, 16
        %v956 = vor.u32 %v954, %v928
        %v958 = vshll.u32 %v790, 16
        %v960 = vrot.slane %v958, 1
        %v961 = vsel %vm857, %v956, %v960
        %v962 = vshrl.u32 %v787, 16
        %v964 = vor.u32 %v962, %v936
        %v966 = vshll.u32 %v791, 16
        %v968 = vrot.slane %v966, 1
        %v969 = vsel %vm857, %v964, %v968
        %v970 = vshrl.u32 %v788, 16
        %v972 = vor.u32 %v970, %v944
        %v973 = vshrl.u32 %v789, 16
        %v975 = vor.u32 %v973, %v952
        %v976 = vshrl.u32 %v790, 16
        %v978 = vor.u32 %v976, %v960
        %v979 = vshrl.u32 %v791, 16
        %v981 = vor.u32 %v979, %v968
        %v1062 = vunpack.c.l.b16 %v793
        %v1063 = vunpack.c.h.b16 %v793
        %v1064 = vunpack.c.l.b16 %v794
        %v1065 = vunpack.c.h.b16 %v794
        %v1066 = vunpack.c.l.b16 %v795
        %v1067 = vunpack.c.h.b16 %v795
        %v1068 = vunpack.c.l.b16 %v796
        %v1069 = vunpack.c.h.b16 %v796
        %v1070 = vunpack.c.l.b16 %v797
        %v1071 = vunpack.c.h.b16 %v797
        %v1072 = vunpack.c.l.b16 %v798
        %v1073 = vunpack.c.h.b16 %v798
        %v1074 = vunpack.c.l.b16 %v799
        %v1075 = vunpack.c.h.b16 %v799
        %v1076 = vunpack.c.l.b16 %v800
        %v1077 = vunpack.c.h.b16 %v800
        %v1078 = vunpack.c.l.b16 %v801
        %v1079 = vunpack.c.h.b16 %v801
        %v1080 = vunpack.c.l.b16 %v802
        %v1081 = vunpack.c.h.b16 %v802
        %v1082 = vunpack.c.l.b16 %v803
        %v1083 = vunpack.c.h.b16 %v803
        %v1084 = vunpack.c.l.b16 %v804
        %v1085 = vunpack.c.h.b16 %v804
        %v1086 = vunpack.c.l.b16 %v805
        %v1087 = vunpack.c.h.b16 %v805
        %v1088 = vunpack.c.l.b16 %v806
        %v1089 = vunpack.c.h.b16 %v806
        %v1090 = vunpack.c.l.b16 %v807
        %v1091 = vunpack.c.h.b16 %v807
        %v1092 = vunpack.c.l.b16 %v808
        %v1093 = vunpack.c.h.b16 %v808
        %v1094 = vunpack.c.l.b16 %v809
        %v1095 = vunpack.c.h.b16 %v809
        %v1096 = vunpack.c.l.b16 %v810
        %v1097 = vunpack.c.h.b16 %v810
        %v1098 = vunpack.c.l.b16 %v811
        %v1099 = vunpack.c.h.b16 %v811
        %v1100 = vunpack.c.l.b16 %v812
        %v1101 = vunpack.c.h.b16 %v812
        %v1102 = vunpack.c.l.b16 %v813
        %v1103 = vunpack.c.h.b16 %v813
        %v1104 = vunpack.c.l.b16 %v814
        %v1105 = vunpack.c.h.b16 %v814
        %v1106 = vunpack.c.l.b16 %v815
        %v1107 = vunpack.c.h.b16 %v815
        %v1108 = vunpack.c.l.b16 %v816
        %v1109 = vunpack.c.h.b16 %v816
        %v1110 = vunpack.c.l.b16 %v817
        %v1111 = vunpack.c.h.b16 %v817
        %v1112 = vunpack.c.l.b16 %v818
        %v1113 = vunpack.c.h.b16 %v818
        %v1114 = vunpack.c.l.b16 %v819
        %v1115 = vunpack.c.h.b16 %v819
        %v1116 = vunpack.c.l.b16 %v820
        %v1117 = vunpack.c.h.b16 %v820
        %v1118 = vunpack.c.l.b16 %v821
        %v1119 = vunpack.c.h.b16 %v821
        %v1120 = vunpack.c.l.b16 %v822
        %v1121 = vunpack.c.h.b16 %v822
        %v1122 = vunpack.c.l.b16 %v823
        %v1123 = vunpack.c.h.b16 %v823
        %v1124 = vunpack.c.l.b16 %v824
        %v1125 = vunpack.c.h.b16 %v824
        %v1126 = vunpack.c.l.b16 %v825
        %v1127 = vunpack.c.h.b16 %v825
        %v1128 = vunpack.c.l.b16 %v826
        %v1129 = vunpack.c.h.b16 %v826
        %v1130 = vunpack.c.l.b16 %v827
        %v1131 = vunpack.c.h.b16 %v827
        %v1132 = vunpack.c.l.b16 %v828
        %v1133 = vunpack.c.h.b16 %v828
        %v1134 = vunpack.c.l.b16 %v829
        %v1135 = vunpack.c.h.b16 %v829
        %v1136 = vunpack.c.l.b16 %v830
        %v1137 = vunpack.c.h.b16 %v830
        %v1138 = vunpack.c.l.b16 %v831
        %v1139 = vunpack.c.h.b16 %v831
        %v1140 = vunpack.c.l.b16 %v832
        %v1141 = vunpack.c.h.b16 %v832
        %v1142 = vunpack.c.l.b16 %v833
        %v1143 = vunpack.c.h.b16 %v833
        %v1144 = vunpack.c.l.b16 %v834
        %v1145 = vunpack.c.h.b16 %v834
        %v1146 = vunpack.c.l.b16 %v835
        %v1147 = vunpack.c.h.b16 %v835
        %v1148 = vunpack.c.l.b16 %v836
        %v1149 = vunpack.c.h.b16 %v836
        %v1150 = vunpack.c.l.b16 %v837
        %v1151 = vunpack.c.h.b16 %v837
        %v1152 = vunpack.c.l.b16 %v838
        %v1153 = vunpack.c.h.b16 %v838
        %v1154 = vunpack.c.l.b16 %v839
        %v1155 = vunpack.c.h.b16 %v839
        %v1156 = vunpack.c.l.b16 %v840
        %v1157 = vunpack.c.h.b16 %v840
        %v1158 = vunpack.c.l.b16 %v841
        %v1159 = vunpack.c.h.b16 %v841
        %v1160 = vunpack.c.l.b16 %v842
        %v1161 = vunpack.c.h.b16 %v842
        %v1162 = vunpack.c.l.b16 %v843
        %v1163 = vunpack.c.h.b16 %v843
        %v1164 = vunpack.c.l.b16 %v844
        %v1165 = vunpack.c.h.b16 %v844
        %v1166 = vunpack.c.l.b16 %v845
        %v1167 = vunpack.c.h.b16 %v845
        %v1168 = vunpack.c.l.b16 %v846
        %v1169 = vunpack.c.h.b16 %v846
        %v1170 = vunpack.c.l.b16 %v847
        %v1171 = vunpack.c.h.b16 %v847
        %v1172 = vunpack.c.l.b16 %v848
        %v1173 = vunpack.c.h.b16 %v848
        %v1174 = vunpack.c.l.b16 %v849
        %v1175 = vunpack.c.h.b16 %v849
        %v1176 = vunpack.c.l.b16 %v850
        %v1177 = vunpack.c.h.b16 %v850
        %v1178 = vunpack.c.l.b16 %v851
        %v1179 = vunpack.c.h.b16 %v851
        %v1180 = vunpack.c.l.b16 %v852
        %v1181 = vunpack.c.h.b16 %v852
        %v1182 = vunpack.c.l.b16 %v853
        %v1183 = vunpack.c.h.b16 %v853
        %v1184 = vunpack.c.l.b16 %v854
        %v1185 = vunpack.c.h.b16 %v854
        %v1186 = vunpack.c.l.b16 %v855
        %v1187 = vunpack.c.h.b16 %v855
        %v1188 = vunpack.c.l.b16 %v856
        %v1189 = vunpack.c.h.b16 %v856
        %v1190 = vpack.c.b16 %v1064, %v1062
        %v1191 = vpack.c.b16 %v1065, %v1063
        %v1192 = vpack.c.b16 %v1068, %v1066
        %v1193 = vpack.c.b16 %v1069, %v1067
        %v1194 = vpack.c.b16 %v1072, %v1070
        %v1195 = vpack.c.b16 %v1073, %v1071
        %v1196 = vpack.c.b16 %v1076, %v1074
        %v1197 = vpack.c.b16 %v1077, %v1075
        %v1198 = vpack.c.b16 %v1080, %v1078
        %v1199 = vpack.c.b16 %v1081, %v1079
        %v1200 = vpack.c.b16 %v1084, %v1082
        %v1201 = vpack.c.b16 %v1085, %v1083
        %v1202 = vpack.c.b16 %v1088, %v1086
        %v1203 = vpack.c.b16 %v1089, %v1087
        %v1204 = vpack.c.b16 %v1092, %v1090
        %v1205 = vpack.c.b16 %v1093, %v1091
        %v1206 = vpack.c.b16 %v1096, %v1094
        %v1207 = vpack.c.b16 %v1097, %v1095
        %v1208 = vpack.c.b16 %v1100, %v1098
        %v1209 = vpack.c.b16 %v1101, %v1099
        %v1210 = vpack.c.b16 %v1104, %v1102
        %v1211 = vpack.c.b16 %v1105, %v1103
        %v1212 = vpack.c.b16 %v1108, %v1106
        %v1213 = vpack.c.b16 %v1109, %v1107
        %v1214 = vpack.c.b16 %v1112, %v1110
        %v1215 = vpack.c.b16 %v1113, %v1111
        %v1216 = vpack.c.b16 %v1116, %v1114
        %v1217 = vpack.c.b16 %v1117, %v1115
        %v1218 = vpack.c.b16 %v1120, %v1118
        %v1219 = vpack.c.b16 %v1121, %v1119
        %v1220 = vpack.c.b16 %v1124, %v1122
        %v1221 = vpack.c.b16 %v1125, %v1123
        %v1222 = vpack.c.b16 %v1128, %v1126
        %v1223 = vpack.c.b16 %v1129, %v1127
        %v1224 = vpack.c.b16 %v1132, %v1130
        %v1225 = vpack.c.b16 %v1133, %v1131
        %v1226 = vpack.c.b16 %v1136, %v1134
        %v1227 = vpack.c.b16 %v1137, %v1135
        %v1228 = vpack.c.b16 %v1140, %v1138
        %v1229 = vpack.c.b16 %v1141, %v1139
        %v1230 = vpack.c.b16 %v1144, %v1142
        %v1231 = vpack.c.b16 %v1145, %v1143
        %v1232 = vpack.c.b16 %v1148, %v1146
        %v1233 = vpack.c.b16 %v1149, %v1147
        %v1234 = vpack.c.b16 %v1152, %v1150
        %v1235 = vpack.c.b16 %v1153, %v1151
        %v1236 = vpack.c.b16 %v1156, %v1154
        %v1237 = vpack.c.b16 %v1157, %v1155
        %v1238 = vpack.c.b16 %v1160, %v1158
        %v1239 = vpack.c.b16 %v1161, %v1159
        %v1240 = vpack.c.b16 %v1164, %v1162
        %v1241 = vpack.c.b16 %v1165, %v1163
        %v1242 = vpack.c.b16 %v1168, %v1166
        %v1243 = vpack.c.b16 %v1169, %v1167
        %v1244 = vpack.c.b16 %v1172, %v1170
        %v1245 = vpack.c.b16 %v1173, %v1171
        %v1246 = vpack.c.b16 %v1176, %v1174
        %v1247 = vpack.c.b16 %v1177, %v1175
        %v1248 = vpack.c.b16 %v1180, %v1178
        %v1249 = vpack.c.b16 %v1181, %v1179
        %v1250 = vpack.c.b16 %v1184, %v1182
        %v1251 = vpack.c.b16 %v1185, %v1183
        %v1252 = vpack.c.b16 %v1188, %v1186
        %v1253 = vpack.c.b16 %v1189, %v1187
        %1318 = vmatprep.subr.bf16.mxu0 %v1205
        %1319 = vmatpush1.bf16.msra.mxu0 %v1204
        %1320 = vmatprep.subr.bf16.mxu0 %v1203
        %1321 = vmatpush1.bf16.msra.mxu0 %v1202
        %1322 = vmatprep.subr.bf16.mxu0 %v1201
        %1323 = vmatpush1.bf16.msra.mxu0 %v1200
        %1324 = vmatprep.subr.bf16.mxu0 %v1199
        %1325 = vmatpush1.bf16.msra.mxu0 %v1198
        %1326 = vmatprep.subr.bf16.mxu0 %v1197
        %1327 = vmatpush1.bf16.msra.mxu0 %v1196
        %1328 = vmatprep.subr.bf16.mxu0 %v1195
        %1329 = vmatpush1.bf16.msra.mxu0 %v1194
        %1330 = vmatprep.subr.bf16.mxu0 %v1193
        %1331 = vmatpush1.bf16.msra.mxu0 %v1192
        %1332 = vmatprep.subr.bf16.mxu0 %v1191
        %1333 = vmatpush1.bf16.msra.mxu0 %v1190
        %1334 = vmatprep.subr.bf16.mxu0 %v1221
        %1335 = vmatpush2.bf16.msra.mxu0 %v1220
        %1336 = vmatprep.subr.bf16.mxu0 %v1219
        %1337 = vmatpush2.bf16.msra.mxu0 %v1218
        %1338 = vmatprep.subr.bf16.mxu0 %v1217
        %1339 = vmatpush2.bf16.msra.mxu0 %v1216
        %1340 = vmatprep.subr.bf16.mxu0 %v1215
        %1341 = vmatpush2.bf16.msra.mxu0 %v1214
        %1342 = vmatprep.subr.bf16.mxu0 %v1213
        %1343 = vmatpush2.bf16.msra.mxu0 %v1212
        %1344 = vmatprep.subr.bf16.mxu0 %v1211
        %1345 = vmatpush2.bf16.msra.mxu0 %v1210
        %1346 = vmatprep.subr.bf16.mxu0 %v1209
        %1347 = vmatpush2.bf16.msra.mxu0 %v1208
        %1348 = vmatprep.subr.bf16.mxu0 %v1207
        %1349 = vmatpush2.bf16.msra.mxu0 %v1206
        %1350 = vmatprep.mubr.bf16.mxu0 %v881
        %1351 = vmatmul.mubr.bf16.gmra.mxu0 %v869
        %v1352 = vpop.f32.mrf.mxu0
        %v1353 = vadd.f32 0.0, %v1352
        %v1354 = vpop.f32.mrf.mxu0
        %v1355 = vadd.f32 0.0, %v1354
        %v1356 = vpop.f32.mrf.mxu0
        %v1357 = vadd.f32 0.0, %v1356
        %v1358 = vpop.f32.mrf.mxu0
        %v1359 = vadd.f32 0.0, %v1358
        %1360 = vmatprep.mubr.bf16.mxu0 %v921
        %1361 = vmatmul.mubr.bf16.gmra.mxu0 %v913
        %v1362 = vpop.f32.mrf.mxu0
        %v1363 = vadd.f32 0.0, %v1362
        %v1364 = vpop.f32.mrf.mxu0
        %v1365 = vadd.f32 0.0, %v1364
        %v1366 = vpop.f32.mrf.mxu0
        %v1367 = vadd.f32 0.0, %v1366
        %v1368 = vpop.f32.mrf.mxu0
        %v1369 = vadd.f32 0.0, %v1368
        %1370 = vmatprep.mubr.bf16.mxu0 %v953
        %1371 = vmatmul.mubr.bf16.gmra.mxu0 %v945
        %v1372 = vpop.f32.mrf.mxu0
        %v1373 = vadd.f32 0.0, %v1372
        %v1374 = vpop.f32.mrf.mxu0
        %v1375 = vadd.f32 0.0, %v1374
        %v1376 = vpop.f32.mrf.mxu0
        %v1377 = vadd.f32 0.0, %v1376
        %v1378 = vpop.f32.mrf.mxu0
        %v1379 = vadd.f32 0.0, %v1378
        %1380 = vmatprep.mubr.bf16.mxu0 %v975
        %1381 = vmatmul.mubr.bf16.gmra.mxu0 %v972
        %v1382 = vpop.f32.mrf.mxu0
        %v1383 = vadd.f32 0.0, %v1382
        %v1384 = vpop.f32.mrf.mxu0
        %v1385 = vadd.f32 0.0, %v1384
        %v1386 = vpop.f32.mrf.mxu0
        %v1387 = vpop.f32.mrf.mxu0
        %1388 = vdwg.mxu0
        %1389 = vmatprep.subr.bf16.mxu0 %v1237
        %1390 = vmatpush1.bf16.msra.mxu0 %v1236
        %1391 = vmatprep.subr.bf16.mxu0 %v1235
        %1392 = vmatpush1.bf16.msra.mxu0 %v1234
        %1393 = vmatprep.subr.bf16.mxu0 %v1233
        %1394 = vmatpush1.bf16.msra.mxu0 %v1232
        %1395 = vmatprep.subr.bf16.mxu0 %v1231
        %1396 = vmatpush1.bf16.msra.mxu0 %v1230
        %1397 = vmatprep.subr.bf16.mxu0 %v1229
        %1398 = vmatpush1.bf16.msra.mxu0 %v1228
        %1399 = vmatprep.subr.bf16.mxu0 %v1227
        %1400 = vmatpush1.bf16.msra.mxu0 %v1226
        %1401 = vmatprep.subr.bf16.mxu0 %v1225
        %1402 = vmatpush1.bf16.msra.mxu0 %v1224
        %1403 = vmatprep.subr.bf16.mxu0 %v1223
        %1404 = vmatpush1.bf16.msra.mxu0 %v1222
        %1405 = vmatprep.subr.bf16.mxu0 %v1253
        %1406 = vmatpush2.bf16.msra.mxu0 %v1252
        %1407 = vmatprep.subr.bf16.mxu0 %v1251
        %1408 = vmatpush2.bf16.msra.mxu0 %v1250
        %1409 = vmatprep.subr.bf16.mxu0 %v1249
        %1410 = vmatpush2.bf16.msra.mxu0 %v1248
        %1411 = vmatprep.subr.bf16.mxu0 %v1247
        %1412 = vmatpush2.bf16.msra.mxu0 %v1246
        %1413 = vmatprep.subr.bf16.mxu0 %v1245
        %1414 = vmatpush2.bf16.msra.mxu0 %v1244
        %1415 = vmatprep.subr.bf16.mxu0 %v1243
        %1416 = vmatpush2.bf16.msra.mxu0 %v1242
        %1417 = vmatprep.subr.bf16.mxu0 %v1241
        %1418 = vmatpush2.bf16.msra.mxu0 %v1240
        %1419 = vmatprep.subr.bf16.mxu0 %v1239
        %1420 = vmatpush2.bf16.msra.mxu0 %v1238
        %1421 = vmatprep.mubr.bf16.mxu0 %v905
        %1422 = vmatmul.mubr.bf16.gmra.mxu0 %v893
        %v1423 = vpop.f32.mrf.mxu0
        %v1424 = vadd.f32 %v1353, %v1423
        %v1425 = vpop.f32.mrf.mxu0
        %v1426 = vadd.f32 %v1355, %v1425
        %v1427 = vpop.f32.mrf.mxu0
        %v1428 = vadd.f32 %v1357, %v1427
        %v1429 = vpop.f32.mrf.mxu0
        %v1430 = vadd.f32 %v1359, %v1429
        %1431 = vmatprep.mubr.bf16.mxu0 %v937
        %1432 = vmatmul.mubr.bf16.gmra.mxu0 %v929
        %v1433 = vpop.f32.mrf.mxu0
        %v1434 = vadd.f32 %v1363, %v1433
        %v1435 = vpop.f32.mrf.mxu0
        %v1436 = vadd.f32 %v1365, %v1435
        %v1437 = vpop.f32.mrf.mxu0
        %v1438 = vadd.f32 %v1367, %v1437
        %v1439 = vpop.f32.mrf.mxu0
        %v1440 = vadd.f32 %v1369, %v1439
        %1441 = vmatprep.mubr.bf16.mxu0 %v969
        %1442 = vmatmul.mubr.bf16.gmra.mxu0 %v961
        %v1443 = vpop.f32.mrf.mxu0
        %v1444 = vadd.f32 %v1373, %v1443
        %v1445 = vpop.f32.mrf.mxu0
        %v1446 = vadd.f32 %v1375, %v1445
        %v1447 = vpop.f32.mrf.mxu0
        %v1448 = vadd.f32 %v1377, %v1447
        %v1449 = vpop.f32.mrf.mxu0
        %v1450 = vadd.f32 %v1379, %v1449
        %1451 = vmatprep.mubr.bf16.mxu0 %v981
        %1452 = vmatmul.mubr.bf16.gmra.mxu0 %v978
        %v1453 = vpop.f32.mrf.mxu0
        %v1454 = vadd.f32 %v1383, %v1453
        %v1455 = vpop.f32.mrf.mxu0
        %v1456 = vadd.f32 %v1385, %v1455
        %v1457 = vpop.f32.mrf.mxu0
        %v1458 = vpop.f32.mrf.mxu0
        %1459 = vdwg.mxu0
        %v1460 = vld [vmem:[%s157] sm:$0xff]
        %v1461 = vld [vmem:[%s157 + $0x8] sm:$0xff]
        %v1462 = vld [vmem:[%s157 + $0x10] sm:$0xff]
        %v1463 = vld [vmem:[%s157 + $0x18] sm:$0xff]
        %v1464 = vld [vmem:[%s157 + $0x20] sm:$0xff]
        %v1465 = vld [vmem:[%s157 + $0x28] sm:$0xff]
        %v1466 = vld [vmem:[%s157 + $0x30] sm:$0xff]
        %v1467 = vld [vmem:[%s157 + $0x38] sm:$0xff]
        %v1468 = vld [vmem:[%s157 + $0x40] sm:$0xff]
        %v1469 = vld [vmem:[%s157 + $0x48] sm:$0xff]
        %v1470 = vld [vmem:[%s157 + $0x50] sm:$0xff]
        %v1471 = vld [vmem:[%s157 + $0x58] sm:$0xff]
        %v1472 = vld [vmem:[%s157 + $0x60] sm:$0xff]
        %v1473 = vld [vmem:[%s157 + $0x68] sm:$0xff]
        %v1474 = vadd.f32 %v1460, %v1424
        %v1475 = vadd.f32 %v1461, %v1426
        %v1476 = vadd.f32 %v1462, %v1428
        %v1477 = vadd.f32 %v1463, %v1430
        %v1478 = vadd.f32 %v1464, %v1434
        %v1479 = vadd.f32 %v1465, %v1436
        %v1480 = vadd.f32 %v1466, %v1438
        %v1481 = vadd.f32 %v1467, %v1440
        %v1482 = vadd.f32 %v1468, %v1444
        %v1483 = vadd.f32 %v1469, %v1446
        %v1484 = vadd.f32 %v1470, %v1448
        %v1485 = vadd.f32 %v1471, %v1450
        %v1486 = vadd.f32 %v1472, %v1454
        %v1487 = vadd.f32 %v1473, %v1456
        %1488 = vst [vmem:[%s157] sm:$0xff] %v1474
        %1489 = vst [vmem:[%s157 + $0x8] sm:$0xff] %v1475
        %1490 = vst [vmem:[%s157 + $0x10] sm:$0xff] %v1476
        %1491 = vst [vmem:[%s157 + $0x18] sm:$0xff] %v1477
        %1492 = vst [vmem:[%s157 + $0x20] sm:$0xff] %v1478
        %1493 = vst [vmem:[%s157 + $0x28] sm:$0xff] %v1479
        %1494 = vst [vmem:[%s157 + $0x30] sm:$0xff] %v1480
        %1495 = vst [vmem:[%s157 + $0x38] sm:$0xff] %v1481
        %1496 = vst [vmem:[%s157 + $0x40] sm:$0xff] %v1482
        %1497 = vst [vmem:[%s157 + $0x48] sm:$0xff] %v1483
        %1498 = vst [vmem:[%s157 + $0x50] sm:$0xff] %v1484
        %1499 = vst [vmem:[%s157 + $0x58] sm:$0xff] %v1485
        %1500 = vst [vmem:[%s157 + $0x60] sm:$0xff] %v1486
        %1501 = vst [vmem:[%s157 + $0x68] sm:$0xff] %v1487
        %v1502 = vld [vmem:[%s0] sm:$0xfc]
        %v1503 = vld [vmem:[%s0 + $0x8] sm:$0xfc]
        %v1504 = vld [vmem:[%s0 + $0x10] sm:$0xfc]
        %v1505 = vld [vmem:[%s0 + $0x18] sm:$0xfc]
        %v1506 = vld [vmem:[%s0 + $0x20] sm:$0xff]
        %v1507 = vld [vmem:[%s0 + $0x28] sm:$0xff]
        %v1508 = vld [vmem:[%s0 + $0x30] sm:$0xff]
        %v1509 = vld [vmem:[%s0 + $0x38] sm:$0xff]
        %v1510 = vld [vmem:[%s0 + $0x40] sm:$0xff]
        %v1511 = vld [vmem:[%s0 + $0x48] sm:$0xff]
        %v1512 = vld [vmem:[%s0 + $0x50] sm:$0xff]
        %v1513 = vld [vmem:[%s0 + $0x58] sm:$0xff]
        %v1514 = vld [vmem:[%s0 + $0x60] sm:$0xff]
        %v1515 = vld [vmem:[%s0 + $0x68] sm:$0xff]
        %v1516 = vld [vmem:[%s0 + $0x70] sm:$0xff]
        %v1517 = vld [vmem:[%s0 + $0x78] sm:$0xff]
        %v1518 = vld [vmem:[%s0 + $0x80] sm:$0xff]
        %v1519 = vld [vmem:[%s0 + $0x88] sm:$0xff]
        %v1520 = vld [vmem:[%s0 + $0x90] sm:$0xff]
        %v1521 = vld [vmem:[%s0 + $0x98] sm:$0xff]
        %v1522 = vld [vmem:[%s0 + $0xa0] sm:$0xff]
        %v1523 = vld [vmem:[%s0 + $0xa8] sm:$0xff]
        %v1524 = vld [vmem:[%s0 + $0xb0] sm:$0xff]
        %v1525 = vld [vmem:[%s0 + $0xb8] sm:$0xff]
        %v1526 = vld [vmem:[%s0 + $0xc0] sm:$0xff]
        %v1527 = vld [vmem:[%s0 + $0xc8] sm:$0xff]
        %v1528 = vld [vmem:[%s0 + $0xd0] sm:$0xff]
        %v1529 = vld [vmem:[%s0 + $0xd8] sm:$0xff]
        %v1530 = vld [vmem:[%s0 + $0xe0] sm:$0x3]
        %v1531 = vld [vmem:[%s0 + $0xe8] sm:$0x3]
        %v1532 = vld [vmem:[%s0 + $0xf0] sm:$0x3]
        %v1533 = vld [vmem:[%s0 + $0xf8] sm:$0x3]
        %v1534 = vpack.c.bf16 %v1506, %v1502
        %v1535 = vpack.c.bf16 %v1507, %v1503
        %v1536 = vpack.c.bf16 %v1508, %v1504
        %v1537 = vpack.c.bf16 %v1509, %v1505
        %v1538 = vpack.c.bf16 %v1514, %v1510
        %v1539 = vpack.c.bf16 %v1515, %v1511
        %v1540 = vpack.c.bf16 %v1516, %v1512
        %v1541 = vpack.c.bf16 %v1517, %v1513
        %v1542 = vpack.c.bf16 %v1522, %v1518
        %v1543 = vpack.c.bf16 %v1523, %v1519
        %v1544 = vpack.c.bf16 %v1524, %v1520
        %v1545 = vpack.c.bf16 %v1525, %v1521
        %v1546 = vpack.c.bf16 %v1530, %v1526
        %v1547 = vpack.c.bf16 %v1531, %v1527
        %v1548 = vpack.c.bf16 %v1532, %v1528
        %v1549 = vpack.c.bf16 %v1533, %v1529
        %s1550 = scalar_lea.vmem %s138, 1024 [#allocation2]
        %v1551 = vld [vmem:[%s1550] sm:$0xff]
        %v1552 = vld [vmem:[%s1550 + $0x8] sm:$0xff]
        %v1553 = vld [vmem:[%s1550 + $0x10] sm:$0xff]
        %v1554 = vld [vmem:[%s1550 + $0x18] sm:$0xff]
        %v1555 = vld [vmem:[%s1550 + $0x20] sm:$0xff]
        %v1556 = vld [vmem:[%s1550 + $0x28] sm:$0xff]
        %v1557 = vld [vmem:[%s1550 + $0x30] sm:$0xff]
        %v1558 = vld [vmem:[%s1550 + $0x38] sm:$0xff]
        %v1559 = vld [vmem:[%s1550 + $0x40] sm:$0xff]
        %v1560 = vld [vmem:[%s1550 + $0x48] sm:$0xff]
        %v1561 = vld [vmem:[%s1550 + $0x50] sm:$0xff]
        %v1562 = vld [vmem:[%s1550 + $0x58] sm:$0xff]
        %v1563 = vld [vmem:[%s1550 + $0x60] sm:$0xff]
        %v1564 = vld [vmem:[%s1550 + $0x68] sm:$0xff]
        %v1565 = vld [vmem:[%s1550 + $0x70] sm:$0xff]
        %v1566 = vld [vmem:[%s1550 + $0x78] sm:$0xff]
        %v1567 = vld [vmem:[%s1550 + $0x80] sm:$0xff]
        %v1568 = vld [vmem:[%s1550 + $0x88] sm:$0xff]
        %v1569 = vld [vmem:[%s1550 + $0x90] sm:$0xff]
        %v1570 = vld [vmem:[%s1550 + $0x98] sm:$0xff]
        %v1571 = vld [vmem:[%s1550 + $0xa0] sm:$0xff]
        %v1572 = vld [vmem:[%s1550 + $0xa8] sm:$0xff]
        %v1573 = vld [vmem:[%s1550 + $0xb0] sm:$0xff]
        %v1574 = vld [vmem:[%s1550 + $0xb8] sm:$0xff]
        %v1575 = vld [vmem:[%s1550 + $0xc0] sm:$0xff]
        %v1576 = vld [vmem:[%s1550 + $0xc8] sm:$0xff]
        %v1577 = vld [vmem:[%s1550 + $0xd0] sm:$0xff]
        %v1578 = vld [vmem:[%s1550 + $0xd8] sm:$0xff]
        %v1579 = vld [vmem:[%s1550 + $0xe0] sm:$0xff]
        %v1580 = vld [vmem:[%s1550 + $0xe8] sm:$0xff]
        %v1581 = vld [vmem:[%s1550 + $0xf0] sm:$0xff]
        %v1582 = vld [vmem:[%s1550 + $0xf8] sm:$0xff]
        %v1583 = vld [vmem:[%s1550 + $0x100] sm:$0xff]
        %v1584 = vld [vmem:[%s1550 + $0x108] sm:$0xff]
        %v1585 = vld [vmem:[%s1550 + $0x110] sm:$0xff]
        %v1586 = vld [vmem:[%s1550 + $0x118] sm:$0xff]
        %v1587 = vld [vmem:[%s1550 + $0x120] sm:$0xff]
        %v1588 = vld [vmem:[%s1550 + $0x128] sm:$0xff]
        %v1589 = vld [vmem:[%s1550 + $0x130] sm:$0xff]
        %v1590 = vld [vmem:[%s1550 + $0x138] sm:$0xff]
        %v1591 = vld [vmem:[%s1550 + $0x140] sm:$0xff]
        %v1592 = vld [vmem:[%s1550 + $0x148] sm:$0xff]
        %v1593 = vld [vmem:[%s1550 + $0x150] sm:$0xff]
        %v1594 = vld [vmem:[%s1550 + $0x158] sm:$0xff]
        %v1595 = vld [vmem:[%s1550 + $0x160] sm:$0xff]
        %v1596 = vld [vmem:[%s1550 + $0x168] sm:$0xff]
        %v1597 = vld [vmem:[%s1550 + $0x170] sm:$0xff]
        %v1598 = vld [vmem:[%s1550 + $0x178] sm:$0xff]
        %v1599 = vld [vmem:[%s1550 + $0x180] sm:$0xff]
        %v1600 = vld [vmem:[%s1550 + $0x188] sm:$0xff]
        %v1601 = vld [vmem:[%s1550 + $0x190] sm:$0xff]
        %v1602 = vld [vmem:[%s1550 + $0x198] sm:$0xff]
        %v1603 = vld [vmem:[%s1550 + $0x1a0] sm:$0xff]
        %v1604 = vld [vmem:[%s1550 + $0x1a8] sm:$0xff]
        %v1605 = vld [vmem:[%s1550 + $0x1b0] sm:$0xff]
        %v1606 = vld [vmem:[%s1550 + $0x1b8] sm:$0xff]
        %v1607 = vld [vmem:[%s1550 + $0x1c0] sm:$0xff]
        %v1608 = vld [vmem:[%s1550 + $0x1c8] sm:$0xff]
        %v1609 = vld [vmem:[%s1550 + $0x1d0] sm:$0xff]
        %v1610 = vld [vmem:[%s1550 + $0x1d8] sm:$0xff]
        %v1611 = vld [vmem:[%s1550 + $0x1e0] sm:$0xff]
        %v1612 = vld [vmem:[%s1550 + $0x1e8] sm:$0xff]
        %v1613 = vld [vmem:[%s1550 + $0x1f0] sm:$0xff]
        %v1614 = vld [vmem:[%s1550 + $0x1f8] sm:$0xff]
        %vm1631 = vcmask 1046528
        %v1632 = vrot.slane %v1534, 1
        %v1633 = vrot.slane %v1538, 1
        %v1634 = vsel %vm1631, %v1632, %v1633
        %v1635 = vrot.slane %v1535, 1
        %v1636 = vrot.slane %v1539, 1
        %v1637 = vsel %vm1631, %v1635, %v1636
        %v1638 = vrot.slane %v1536, 1
        %v1639 = vrot.slane %v1540, 1
        %v1640 = vsel %vm1631, %v1638, %v1639
        %v1641 = vrot.slane %v1537, 1
        %v1642 = vrot.slane %v1541, 1
        %v1643 = vsel %vm1631, %v1641, %v1642
        %v1644 = vrot.slane %v1542, 1
        %v1645 = vsel %vm1631, %v1633, %v1644
        %v1646 = vrot.slane %v1543, 1
        %v1647 = vsel %vm1631, %v1636, %v1646
        %v1648 = vrot.slane %v1544, 1
        %v1649 = vsel %vm1631, %v1639, %v1648
        %v1650 = vrot.slane %v1545, 1
        %v1651 = vsel %vm1631, %v1642, %v1650
        %v1652 = vrot.slane %v1546, 1
        %v1653 = vsel %vm1631, %v1644, %v1652
        %v1654 = vrot.slane %v1547, 1
        %v1655 = vsel %vm1631, %v1646, %v1654
        %v1656 = vrot.slane %v1548, 1
        %v1657 = vsel %vm1631, %v1648, %v1656
        %v1658 = vrot.slane %v1549, 1
        %v1659 = vsel %vm1631, %v1650, %v1658
        %v1740 = vunpack.c.l.b16 %v1551
        %v1741 = vunpack.c.h.b16 %v1551
        %v1742 = vunpack.c.l.b16 %v1552
        %v1743 = vunpack.c.h.b16 %v1552
        %v1744 = vunpack.c.l.b16 %v1553
        %v1745 = vunpack.c.h.b16 %v1553
        %v1746 = vunpack.c.l.b16 %v1554
        %v1747 = vunpack.c.h.b16 %v1554
        %v1748 = vunpack.c.l.b16 %v1555
        %v1749 = vunpack.c.h.b16 %v1555
        %v1750 = vunpack.c.l.b16 %v1556
        %v1751 = vunpack.c.h.b16 %v1556
        %v1752 = vunpack.c.l.b16 %v1557
        %v1753 = vunpack.c.h.b16 %v1557
        %v1754 = vunpack.c.l.b16 %v1558
        %v1755 = vunpack.c.h.b16 %v1558
        %v1756 = vunpack.c.l.b16 %v1559
        %v1757 = vunpack.c.h.b16 %v1559
        %v1758 = vunpack.c.l.b16 %v1560
        %v1759 = vunpack.c.h.b16 %v1560
        %v1760 = vunpack.c.l.b16 %v1561
        %v1761 = vunpack.c.h.b16 %v1561
        %v1762 = vunpack.c.l.b16 %v1562
        %v1763 = vunpack.c.h.b16 %v1562
        %v1764 = vunpack.c.l.b16 %v1563
        %v1765 = vunpack.c.h.b16 %v1563
        %v1766 = vunpack.c.l.b16 %v1564
        %v1767 = vunpack.c.h.b16 %v1564
        %v1768 = vunpack.c.l.b16 %v1565
        %v1769 = vunpack.c.h.b16 %v1565
        %v1770 = vunpack.c.l.b16 %v1566
        %v1771 = vunpack.c.h.b16 %v1566
        %v1772 = vunpack.c.l.b16 %v1567
        %v1773 = vunpack.c.h.b16 %v1567
        %v1774 = vunpack.c.l.b16 %v1568
        %v1775 = vunpack.c.h.b16 %v1568
        %v1776 = vunpack.c.l.b16 %v1569
        %v1777 = vunpack.c.h.b16 %v1569
        %v1778 = vunpack.c.l.b16 %v1570
        %v1779 = vunpack.c.h.b16 %v1570
        %v1780 = vunpack.c.l.b16 %v1571
        %v1781 = vunpack.c.h.b16 %v1571
        %v1782 = vunpack.c.l.b16 %v1572
        %v1783 = vunpack.c.h.b16 %v1572
        %v1784 = vunpack.c.l.b16 %v1573
        %v1785 = vunpack.c.h.b16 %v1573
        %v1786 = vunpack.c.l.b16 %v1574
        %v1787 = vunpack.c.h.b16 %v1574
        %v1788 = vunpack.c.l.b16 %v1575
        %v1789 = vunpack.c.h.b16 %v1575
        %v1790 = vunpack.c.l.b16 %v1576
        %v1791 = vunpack.c.h.b16 %v1576
        %v1792 = vunpack.c.l.b16 %v1577
        %v1793 = vunpack.c.h.b16 %v1577
        %v1794 = vunpack.c.l.b16 %v1578
        %v1795 = vunpack.c.h.b16 %v1578
        %v1796 = vunpack.c.l.b16 %v1579
        %v1797 = vunpack.c.h.b16 %v1579
        %v1798 = vunpack.c.l.b16 %v1580
        %v1799 = vunpack.c.h.b16 %v1580
        %v1800 = vunpack.c.l.b16 %v1581
        %v1801 = vunpack.c.h.b16 %v1581
        %v1802 = vunpack.c.l.b16 %v1582
        %v1803 = vunpack.c.h.b16 %v1582
        %v1804 = vunpack.c.l.b16 %v1583
        %v1805 = vunpack.c.h.b16 %v1583
        %v1806 = vunpack.c.l.b16 %v1584
        %v1807 = vunpack.c.h.b16 %v1584
        %v1808 = vunpack.c.l.b16 %v1585
        %v1809 = vunpack.c.h.b16 %v1585
        %v1810 = vunpack.c.l.b16 %v1586
        %v1811 = vunpack.c.h.b16 %v1586
        %v1812 = vunpack.c.l.b16 %v1587
        %v1813 = vunpack.c.h.b16 %v1587
        %v1814 = vunpack.c.l.b16 %v1588
        %v1815 = vunpack.c.h.b16 %v1588
        %v1816 = vunpack.c.l.b16 %v1589
        %v1817 = vunpack.c.h.b16 %v1589
        %v1818 = vunpack.c.l.b16 %v1590
        %v1819 = vunpack.c.h.b16 %v1590
        %v1820 = vunpack.c.l.b16 %v1591
        %v1821 = vunpack.c.h.b16 %v1591
        %v1822 = vunpack.c.l.b16 %v1592
        %v1823 = vunpack.c.h.b16 %v1592
        %v1824 = vunpack.c.l.b16 %v1593
        %v1825 = vunpack.c.h.b16 %v1593
        %v1826 = vunpack.c.l.b16 %v1594
        %v1827 = vunpack.c.h.b16 %v1594
        %v1828 = vunpack.c.l.b16 %v1595
        %v1829 = vunpack.c.h.b16 %v1595
        %v1830 = vunpack.c.l.b16 %v1596
        %v1831 = vunpack.c.h.b16 %v1596
        %v1832 = vunpack.c.l.b16 %v1597
        %v1833 = vunpack.c.h.b16 %v1597
        %v1834 = vunpack.c.l.b16 %v1598
        %v1835 = vunpack.c.h.b16 %v1598
        %v1836 = vunpack.c.l.b16 %v1599
        %v1837 = vunpack.c.h.b16 %v1599
        %v1838 = vunpack.c.l.b16 %v1600
        %v1839 = vunpack.c.h.b16 %v1600
        %v1840 = vunpack.c.l.b16 %v1601
        %v1841 = vunpack.c.h.b16 %v1601
        %v1842 = vunpack.c.l.b16 %v1602
        %v1843 = vunpack.c.h.b16 %v1602
        %v1844 = vunpack.c.l.b16 %v1603
        %v1845 = vunpack.c.h.b16 %v1603
        %v1846 = vunpack.c.l.b16 %v1604
        %v1847 = vunpack.c.h.b16 %v1604
        %v1848 = vunpack.c.l.b16 %v1605
        %v1849 = vunpack.c.h.b16 %v1605
        %v1850 = vunpack.c.l.b16 %v1606
        %v1851 = vunpack.c.h.b16 %v1606
        %v1852 = vunpack.c.l.b16 %v1607
        %v1853 = vunpack.c.h.b16 %v1607
        %v1854 = vunpack.c.l.b16 %v1608
        %v1855 = vunpack.c.h.b16 %v1608
        %v1856 = vunpack.c.l.b16 %v1609
        %v1857 = vunpack.c.h.b16 %v1609
        %v1858 = vunpack.c.l.b16 %v1610
        %v1859 = vunpack.c.h.b16 %v1610
        %v1860 = vunpack.c.l.b16 %v1611
        %v1861 = vunpack.c.h.b16 %v1611
        %v1862 = vunpack.c.l.b16 %v1612
        %v1863 = vunpack.c.h.b16 %v1612
        %v1864 = vunpack.c.l.b16 %v1613
        %v1865 = vunpack.c.h.b16 %v1613
        %v1866 = vunpack.c.l.b16 %v1614
        %v1867 = vunpack.c.h.b16 %v1614
        %v1868 = vpack.c.b16 %v1742, %v1740
        %v1869 = vpack.c.b16 %v1743, %v1741
        %v1870 = vpack.c.b16 %v1746, %v1744
        %v1871 = vpack.c.b16 %v1747, %v1745
        %v1872 = vpack.c.b16 %v1750, %v1748
        %v1873 = vpack.c.b16 %v1751, %v1749
        %v1874 = vpack.c.b16 %v1754, %v1752
        %v1875 = vpack.c.b16 %v1755, %v1753
        %v1876 = vpack.c.b16 %v1758, %v1756
        %v1877 = vpack.c.b16 %v1759, %v1757
        %v1878 = vpack.c.b16 %v1762, %v1760
        %v1879 = vpack.c.b16 %v1763, %v1761
        %v1880 = vpack.c.b16 %v1766, %v1764
        %v1881 = vpack.c.b16 %v1767, %v1765
        %v1882 = vpack.c.b16 %v1770, %v1768
        %v1883 = vpack.c.b16 %v1771, %v1769
        %v1884 = vpack.c.b16 %v1774, %v1772
        %v1885 = vpack.c.b16 %v1775, %v1773
        %v1886 = vpack.c.b16 %v1778, %v1776
        %v1887 = vpack.c.b16 %v1779, %v1777
        %v1888 = vpack.c.b16 %v1782, %v1780
        %v1889 = vpack.c.b16 %v1783, %v1781
        %v1890 = vpack.c.b16 %v1786, %v1784
        %v1891 = vpack.c.b16 %v1787, %v1785
        %v1892 = vpack.c.b16 %v1790, %v1788
        %v1893 = vpack.c.b16 %v1791, %v1789
        %v1894 = vpack.c.b16 %v1794, %v1792
        %v1895 = vpack.c.b16 %v1795, %v1793
        %v1896 = vpack.c.b16 %v1798, %v1796
        %v1897 = vpack.c.b16 %v1799, %v1797
        %v1898 = vpack.c.b16 %v1802, %v1800
        %v1899 = vpack.c.b16 %v1803, %v1801
        %v1900 = vpack.c.b16 %v1806, %v1804
        %v1901 = vpack.c.b16 %v1807, %v1805
        %v1902 = vpack.c.b16 %v1810, %v1808
        %v1903 = vpack.c.b16 %v1811, %v1809
        %v1904 = vpack.c.b16 %v1814, %v1812
        %v1905 = vpack.c.b16 %v1815, %v1813
        %v1906 = vpack.c.b16 %v1818, %v1816
        %v1907 = vpack.c.b16 %v1819, %v1817
        %v1908 = vpack.c.b16 %v1822, %v1820
        %v1909 = vpack.c.b16 %v1823, %v1821
        %v1910 = vpack.c.b16 %v1826, %v1824
        %v1911 = vpack.c.b16 %v1827, %v1825
        %v1912 = vpack.c.b16 %v1830, %v1828
        %v1913 = vpack.c.b16 %v1831, %v1829
        %v1914 = vpack.c.b16 %v1834, %v1832
        %v1915 = vpack.c.b16 %v1835, %v1833
        %v1916 = vpack.c.b16 %v1838, %v1836
        %v1917 = vpack.c.b16 %v1839, %v1837
        %v1918 = vpack.c.b16 %v1842, %v1840
        %v1919 = vpack.c.b16 %v1843, %v1841
        %v1920 = vpack.c.b16 %v1846, %v1844
        %v1921 = vpack.c.b16 %v1847, %v1845
        %v1922 = vpack.c.b16 %v1850, %v1848
        %v1923 = vpack.c.b16 %v1851, %v1849
        %v1924 = vpack.c.b16 %v1854, %v1852
        %v1925 = vpack.c.b16 %v1855, %v1853
        %v1926 = vpack.c.b16 %v1858, %v1856
        %v1927 = vpack.c.b16 %v1859, %v1857
        %v1928 = vpack.c.b16 %v1862, %v1860
        %v1929 = vpack.c.b16 %v1863, %v1861
        %v1930 = vpack.c.b16 %v1866, %v1864
        %v1931 = vpack.c.b16 %v1867, %v1865
        %1996 = vmatprep.subr.bf16.mxu0 %v1883
        %1997 = vmatpush1.bf16.msra.mxu0 %v1882
        %1998 = vmatprep.subr.bf16.mxu0 %v1881
        %1999 = vmatpush1.bf16.msra.mxu0 %v1880
        %2000 = vmatprep.subr.bf16.mxu0 %v1879
        %2001 = vmatpush1.bf16.msra.mxu0 %v1878
        %2002 = vmatprep.subr.bf16.mxu0 %v1877
        %2003 = vmatpush1.bf16.msra.mxu0 %v1876
        %2004 = vmatprep.subr.bf16.mxu0 %v1875
        %2005 = vmatpush1.bf16.msra.mxu0 %v1874
        %2006 = vmatprep.subr.bf16.mxu0 %v1873
        %2007 = vmatpush1.bf16.msra.mxu0 %v1872
        %2008 = vmatprep.subr.bf16.mxu0 %v1871
        %2009 = vmatpush1.bf16.msra.mxu0 %v1870
        %2010 = vmatprep.subr.bf16.mxu0 %v1869
        %2011 = vmatpush1.bf16.msra.mxu0 %v1868
        %2012 = vmatprep.subr.bf16.mxu0 %v1899
        %2013 = vmatpush2.bf16.msra.mxu0 %v1898
        %2014 = vmatprep.subr.bf16.mxu0 %v1897
        %2015 = vmatpush2.bf16.msra.mxu0 %v1896
        %2016 = vmatprep.subr.bf16.mxu0 %v1895
        %2017 = vmatpush2.bf16.msra.mxu0 %v1894
        %2018 = vmatprep.subr.bf16.mxu0 %v1893
        %2019 = vmatpush2.bf16.msra.mxu0 %v1892
        %2020 = vmatprep.subr.bf16.mxu0 %v1891
        %2021 = vmatpush2.bf16.msra.mxu0 %v1890
        %2022 = vmatprep.subr.bf16.mxu0 %v1889
        %2023 = vmatpush2.bf16.msra.mxu0 %v1888
        %2024 = vmatprep.subr.bf16.mxu0 %v1887
        %2025 = vmatpush2.bf16.msra.mxu0 %v1886
        %2026 = vmatprep.subr.bf16.mxu0 %v1885
        %2027 = vmatpush2.bf16.msra.mxu0 %v1884
        %2028 = vmatprep.mubr.bf16.mxu0 %v1637
        %2029 = vmatmul.mubr.bf16.gmra.mxu0 %v1634
        %v2030 = vpop.f32.mrf.mxu0
        %v2031 = vadd.f32 0.0, %v2030
        %v2032 = vpop.f32.mrf.mxu0
        %v2033 = vadd.f32 0.0, %v2032
        %v2034 = vpop.f32.mrf.mxu0
        %v2035 = vadd.f32 0.0, %v2034
        %v2036 = vpop.f32.mrf.mxu0
        %v2037 = vadd.f32 0.0, %v2036
        %2038 = vmatprep.mubr.bf16.mxu0 %v1647
        %2039 = vmatmul.mubr.bf16.gmra.mxu0 %v1645
        %v2040 = vpop.f32.mrf.mxu0
        %v2041 = vadd.f32 0.0, %v2040
        %v2042 = vpop.f32.mrf.mxu0
        %v2043 = vadd.f32 0.0, %v2042
        %v2044 = vpop.f32.mrf.mxu0
        %v2045 = vadd.f32 0.0, %v2044
        %v2046 = vpop.f32.mrf.mxu0
        %v2047 = vadd.f32 0.0, %v2046
        %2048 = vmatprep.mubr.bf16.mxu0 %v1655
        %2049 = vmatmul.mubr.bf16.gmra.mxu0 %v1653
        %v2050 = vpop.f32.mrf.mxu0
        %v2051 = vadd.f32 0.0, %v2050
        %v2052 = vpop.f32.mrf.mxu0
        %v2053 = vadd.f32 0.0, %v2052
        %v2054 = vpop.f32.mrf.mxu0
        %v2055 = vadd.f32 0.0, %v2054
        %v2056 = vpop.f32.mrf.mxu0
        %v2057 = vadd.f32 0.0, %v2056
        %2058 = vmatprep.mubr.bf16.mxu0 %v1654
        %2059 = vmatmul.mubr.bf16.gmra.mxu0 %v1652
        %v2060 = vpop.f32.mrf.mxu0
        %v2061 = vadd.f32 0.0, %v2060
        %v2062 = vpop.f32.mrf.mxu0
        %v2063 = vadd.f32 0.0, %v2062
        %v2064 = vpop.f32.mrf.mxu0
        %v2065 = vpop.f32.mrf.mxu0
        %2066 = vdwg.mxu0
        %2067 = vmatprep.subr.bf16.mxu0 %v1915
        %2068 = vmatpush1.bf16.msra.mxu0 %v1914
        %2069 = vmatprep.subr.bf16.mxu0 %v1913
        %2070 = vmatpush1.bf16.msra.mxu0 %v1912
        %2071 = vmatprep.subr.bf16.mxu0 %v1911
        %2072 = vmatpush1.bf16.msra.mxu0 %v1910
        %2073 = vmatprep.subr.bf16.mxu0 %v1909
        %2074 = vmatpush1.bf16.msra.mxu0 %v1908
        %2075 = vmatprep.subr.bf16.mxu0 %v1907
        %2076 = vmatpush1.bf16.msra.mxu0 %v1906
        %2077 = vmatprep.subr.bf16.mxu0 %v1905
        %2078 = vmatpush1.bf16.msra.mxu0 %v1904
        %2079 = vmatprep.subr.bf16.mxu0 %v1903
        %2080 = vmatpush1.bf16.msra.mxu0 %v1902
        %2081 = vmatprep.subr.bf16.mxu0 %v1901
        %2082 = vmatpush1.bf16.msra.mxu0 %v1900
        %2083 = vmatprep.subr.bf16.mxu0 %v1931
        %2084 = vmatpush2.bf16.msra.mxu0 %v1930
        %2085 = vmatprep.subr.bf16.mxu0 %v1929
        %2086 = vmatpush2.bf16.msra.mxu0 %v1928
        %2087 = vmatprep.subr.bf16.mxu0 %v1927
        %2088 = vmatpush2.bf16.msra.mxu0 %v1926
        %2089 = vmatprep.subr.bf16.mxu0 %v1925
        %2090 = vmatpush2.bf16.msra.mxu0 %v1924
        %2091 = vmatprep.subr.bf16.mxu0 %v1923
        %2092 = vmatpush2.bf16.msra.mxu0 %v1922
        %2093 = vmatprep.subr.bf16.mxu0 %v1921
        %2094 = vmatpush2.bf16.msra.mxu0 %v1920
        %2095 = vmatprep.subr.bf16.mxu0 %v1919
        %2096 = vmatpush2.bf16.msra.mxu0 %v1918
        %2097 = vmatprep.subr.bf16.mxu0 %v1917
        %2098 = vmatpush2.bf16.msra.mxu0 %v1916
        %2099 = vmatprep.mubr.bf16.mxu0 %v1643
        %2100 = vmatmul.mubr.bf16.gmra.mxu0 %v1640
        %v2101 = vpop.f32.mrf.mxu0
        %v2102 = vadd.f32 %v2031, %v2101
        %v2103 = vpop.f32.mrf.mxu0
        %v2104 = vadd.f32 %v2033, %v2103
        %v2105 = vpop.f32.mrf.mxu0
        %v2106 = vadd.f32 %v2035, %v2105
        %v2107 = vpop.f32.mrf.mxu0
        %v2108 = vadd.f32 %v2037, %v2107
        %2109 = vmatprep.mubr.bf16.mxu0 %v1651
        %2110 = vmatmul.mubr.bf16.gmra.mxu0 %v1649
        %v2111 = vpop.f32.mrf.mxu0
        %v2112 = vadd.f32 %v2041, %v2111
        %v2113 = vpop.f32.mrf.mxu0
        %v2114 = vadd.f32 %v2043, %v2113
        %v2115 = vpop.f32.mrf.mxu0
        %v2116 = vadd.f32 %v2045, %v2115
        %v2117 = vpop.f32.mrf.mxu0
        %v2118 = vadd.f32 %v2047, %v2117
        %2119 = vmatprep.mubr.bf16.mxu0 %v1659
        %2120 = vmatmul.mubr.bf16.gmra.mxu0 %v1657
        %v2121 = vpop.f32.mrf.mxu0
        %v2122 = vadd.f32 %v2051, %v2121
        %v2123 = vpop.f32.mrf.mxu0
        %v2124 = vadd.f32 %v2053, %v2123
        %v2125 = vpop.f32.mrf.mxu0
        %v2126 = vadd.f32 %v2055, %v2125
        %v2127 = vpop.f32.mrf.mxu0
        %v2128 = vadd.f32 %v2057, %v2127
        %2129 = vmatprep.mubr.bf16.mxu0 %v1658
        %2130 = vmatmul.mubr.bf16.gmra.mxu0 %v1656
        %v2131 = vpop.f32.mrf.mxu0
        %v2132 = vadd.f32 %v2061, %v2131
        %v2133 = vpop.f32.mrf.mxu0
        %v2134 = vadd.f32 %v2063, %v2133
        %v2135 = vpop.f32.mrf.mxu0
        %v2136 = vpop.f32.mrf.mxu0
        %2137 = vdwg.mxu0
        %v2138 = vld [vmem:[%s157] sm:$0xff]
        %v2139 = vld [vmem:[%s157 + $0x8] sm:$0xff]
        %v2140 = vld [vmem:[%s157 + $0x10] sm:$0xff]
        %v2141 = vld [vmem:[%s157 + $0x18] sm:$0xff]
        %v2142 = vld [vmem:[%s157 + $0x20] sm:$0xff]
        %v2143 = vld [vmem:[%s157 + $0x28] sm:$0xff]
        %v2144 = vld [vmem:[%s157 + $0x30] sm:$0xff]
        %v2145 = vld [vmem:[%s157 + $0x38] sm:$0xff]
        %v2146 = vld [vmem:[%s157 + $0x40] sm:$0xff]
        %v2147 = vld [vmem:[%s157 + $0x48] sm:$0xff]
        %v2148 = vld [vmem:[%s157 + $0x50] sm:$0xff]
        %v2149 = vld [vmem:[%s157 + $0x58] sm:$0xff]
        %v2150 = vld [vmem:[%s157 + $0x60] sm:$0xff]
        %v2151 = vld [vmem:[%s157 + $0x68] sm:$0xff]
        %v2152 = vadd.f32 %v2138, %v2102
        %v2153 = vadd.f32 %v2139, %v2104
        %v2154 = vadd.f32 %v2140, %v2106
        %v2155 = vadd.f32 %v2141, %v2108
        %v2156 = vadd.f32 %v2142, %v2112
        %v2157 = vadd.f32 %v2143, %v2114
        %v2158 = vadd.f32 %v2144, %v2116
        %v2159 = vadd.f32 %v2145, %v2118
        %v2160 = vadd.f32 %v2146, %v2122
        %v2161 = vadd.f32 %v2147, %v2124
        %v2162 = vadd.f32 %v2148, %v2126
        %v2163 = vadd.f32 %v2149, %v2128
        %v2164 = vadd.f32 %v2150, %v2132
        %v2165 = vadd.f32 %v2151, %v2134
        %2166 = vst [vmem:[%s157] sm:$0xff] %v2152
        %2167 = vst [vmem:[%s157 + $0x8] sm:$0xff] %v2153
        %2168 = vst [vmem:[%s157 + $0x10] sm:$0xff] %v2154
        %2169 = vst [vmem:[%s157 + $0x18] sm:$0xff] %v2155
        %2170 = vst [vmem:[%s157 + $0x20] sm:$0xff] %v2156
        %2171 = vst [vmem:[%s157 + $0x28] sm:$0xff] %v2157
        %2172 = vst [vmem:[%s157 + $0x30] sm:$0xff] %v2158
        %2173 = vst [vmem:[%s157 + $0x38] sm:$0xff] %v2159
        %2174 = vst [vmem:[%s157 + $0x40] sm:$0xff] %v2160
        %2175 = vst [vmem:[%s157 + $0x48] sm:$0xff] %v2161
        %2176 = vst [vmem:[%s157 + $0x50] sm:$0xff] %v2162
        %2177 = vst [vmem:[%s157 + $0x58] sm:$0xff] %v2163
        %2178 = vst [vmem:[%s157 + $0x60] sm:$0xff] %v2164
        %2179 = vst [vmem:[%s157 + $0x68] sm:$0xff] %v2165
        %v2180 = vld [vmem:[%s0 + $0x20] sm:$0xff]
        %v2181 = vld [vmem:[%s0 + $0x28] sm:$0xff]
        %v2182 = vld [vmem:[%s0 + $0x30] sm:$0xff]
        %v2183 = vld [vmem:[%s0 + $0x38] sm:$0xff]
        %v2184 = vld [vmem:[%s0 + $0x40] sm:$0xff]
        %v2185 = vld [vmem:[%s0 + $0x48] sm:$0xff]
        %v2186 = vld [vmem:[%s0 + $0x50] sm:$0xff]
        %v2187 = vld [vmem:[%s0 + $0x58] sm:$0xff]
        %v2188 = vld [vmem:[%s0 + $0x60] sm:$0xff]
        %v2189 = vld [vmem:[%s0 + $0x68] sm:$0xff]
        %v2190 = vld [vmem:[%s0 + $0x70] sm:$0xff]
        %v2191 = vld [vmem:[%s0 + $0x78] sm:$0xff]
        %v2192 = vld [vmem:[%s0 + $0x80] sm:$0xff]
        %v2193 = vld [vmem:[%s0 + $0x88] sm:$0xff]
        %v2194 = vld [vmem:[%s0 + $0x90] sm:$0xff]
        %v2195 = vld [vmem:[%s0 + $0x98] sm:$0xff]
        %v2196 = vld [vmem:[%s0 + $0xa0] sm:$0xff]
        %v2197 = vld [vmem:[%s0 + $0xa8] sm:$0xff]
        %v2198 = vld [vmem:[%s0 + $0xb0] sm:$0xff]
        %v2199 = vld [vmem:[%s0 + $0xb8] sm:$0xff]
        %v2200 = vld [vmem:[%s0 + $0xc0] sm:$0xff]
        %v2201 = vld [vmem:[%s0 + $0xc8] sm:$0xff]
        %v2202 = vld [vmem:[%s0 + $0xd0] sm:$0xff]
        %v2203 = vld [vmem:[%s0 + $0xd8] sm:$0xff]
        %v2204 = vld [vmem:[%s0 + $0xe0] sm:$0xff]
        %v2205 = vld [vmem:[%s0 + $0xe8] sm:$0xff]
        %v2206 = vld [vmem:[%s0 + $0xf0] sm:$0xff]
        %v2207 = vld [vmem:[%s0 + $0xf8] sm:$0xff]
        %v2208 = vpack.c.bf16 %v2184, %v2180
        %v2209 = vpack.c.bf16 %v2185, %v2181
        %v2210 = vpack.c.bf16 %v2186, %v2182
        %v2211 = vpack.c.bf16 %v2187, %v2183
        %v2212 = vpack.c.bf16 %v2192, %v2188
        %v2213 = vpack.c.bf16 %v2193, %v2189
        %v2214 = vpack.c.bf16 %v2194, %v2190
        %v2215 = vpack.c.bf16 %v2195, %v2191
        %v2216 = vpack.c.bf16 %v2200, %v2196
        %v2217 = vpack.c.bf16 %v2201, %v2197
        %v2218 = vpack.c.bf16 %v2202, %v2198
        %v2219 = vpack.c.bf16 %v2203, %v2199
        %v2220 = vpack.c.bf16 %v2204, %v2204
        %v2221 = vpack.c.bf16 %v2205, %v2205
        %v2222 = vpack.c.bf16 %v2206, %v2206
        %v2223 = vpack.c.bf16 %v2207, %v2207
        %s2224 = scalar_lea.vmem %s138, 1536 [#allocation2]
        %v2225 = vld [vmem:[%s2224] sm:$0xff]
        %v2226 = vld [vmem:[%s2224 + $0x8] sm:$0xff]
        %v2227 = vld [vmem:[%s2224 + $0x10] sm:$0xff]
        %v2228 = vld [vmem:[%s2224 + $0x18] sm:$0xff]
        %v2229 = vld [vmem:[%s2224 + $0x20] sm:$0xff]
        %v2230 = vld [vmem:[%s2224 + $0x28] sm:$0xff]
        %v2231 = vld [vmem:[%s2224 + $0x30] sm:$0xff]
        %v2232 = vld [vmem:[%s2224 + $0x38] sm:$0xff]
        %v2233 = vld [vmem:[%s2224 + $0x40] sm:$0xff]
        %v2234 = vld [vmem:[%s2224 + $0x48] sm:$0xff]
        %v2235 = vld [vmem:[%s2224 + $0x50] sm:$0xff]
        %v2236 = vld [vmem:[%s2224 + $0x58] sm:$0xff]
        %v2237 = vld [vmem:[%s2224 + $0x60] sm:$0xff]
        %v2238 = vld [vmem:[%s2224 + $0x68] sm:$0xff]
        %v2239 = vld [vmem:[%s2224 + $0x70] sm:$0xff]
        %v2240 = vld [vmem:[%s2224 + $0x78] sm:$0xff]
        %v2241 = vld [vmem:[%s2224 + $0x80] sm:$0xff]
        %v2242 = vld [vmem:[%s2224 + $0x88] sm:$0xff]
        %v2243 = vld [vmem:[%s2224 + $0x90] sm:$0xff]
        %v2244 = vld [vmem:[%s2224 + $0x98] sm:$0xff]
        %v2245 = vld [vmem:[%s2224 + $0xa0] sm:$0xff]
        %v2246 = vld [vmem:[%s2224 + $0xa8] sm:$0xff]
        %v2247 = vld [vmem:[%s2224 + $0xb0] sm:$0xff]
        %v2248 = vld [vmem:[%s2224 + $0xb8] sm:$0xff]
        %v2249 = vld [vmem:[%s2224 + $0xc0] sm:$0xff]
        %v2250 = vld [vmem:[%s2224 + $0xc8] sm:$0xff]
        %v2251 = vld [vmem:[%s2224 + $0xd0] sm:$0xff]
        %v2252 = vld [vmem:[%s2224 + $0xd8] sm:$0xff]
        %v2253 = vld [vmem:[%s2224 + $0xe0] sm:$0xff]
        %v2254 = vld [vmem:[%s2224 + $0xe8] sm:$0xff]
        %v2255 = vld [vmem:[%s2224 + $0xf0] sm:$0xff]
        %v2256 = vld [vmem:[%s2224 + $0xf8] sm:$0xff]
        %v2257 = vld [vmem:[%s2224 + $0x100] sm:$0xff]
        %v2258 = vld [vmem:[%s2224 + $0x108] sm:$0xff]
        %v2259 = vld [vmem:[%s2224 + $0x110] sm:$0xff]
        %v2260 = vld [vmem:[%s2224 + $0x118] sm:$0xff]
        %v2261 = vld [vmem:[%s2224 + $0x120] sm:$0xff]
        %v2262 = vld [vmem:[%s2224 + $0x128] sm:$0xff]
        %v2263 = vld [vmem:[%s2224 + $0x130] sm:$0xff]
        %v2264 = vld [vmem:[%s2224 + $0x138] sm:$0xff]
        %v2265 = vld [vmem:[%s2224 + $0x140] sm:$0xff]
        %v2266 = vld [vmem:[%s2224 + $0x148] sm:$0xff]
        %v2267 = vld [vmem:[%s2224 + $0x150] sm:$0xff]
        %v2268 = vld [vmem:[%s2224 + $0x158] sm:$0xff]
        %v2269 = vld [vmem:[%s2224 + $0x160] sm:$0xff]
        %v2270 = vld [vmem:[%s2224 + $0x168] sm:$0xff]
        %v2271 = vld [vmem:[%s2224 + $0x170] sm:$0xff]
        %v2272 = vld [vmem:[%s2224 + $0x178] sm:$0xff]
        %v2273 = vld [vmem:[%s2224 + $0x180] sm:$0xff]
        %v2274 = vld [vmem:[%s2224 + $0x188] sm:$0xff]
        %v2275 = vld [vmem:[%s2224 + $0x190] sm:$0xff]
        %v2276 = vld [vmem:[%s2224 + $0x198] sm:$0xff]
        %v2277 = vld [vmem:[%s2224 + $0x1a0] sm:$0xff]
        %v2278 = vld [vmem:[%s2224 + $0x1a8] sm:$0xff]
        %v2279 = vld [vmem:[%s2224 + $0x1b0] sm:$0xff]
        %v2280 = vld [vmem:[%s2224 + $0x1b8] sm:$0xff]
        %v2281 = vld [vmem:[%s2224 + $0x1c0] sm:$0xff]
        %v2282 = vld [vmem:[%s2224 + $0x1c8] sm:$0xff]
        %v2283 = vld [vmem:[%s2224 + $0x1d0] sm:$0xff]
        %v2284 = vld [vmem:[%s2224 + $0x1d8] sm:$0xff]
        %v2285 = vld [vmem:[%s2224 + $0x1e0] sm:$0xff]
        %v2286 = vld [vmem:[%s2224 + $0x1e8] sm:$0xff]
        %v2287 = vld [vmem:[%s2224 + $0x1f0] sm:$0xff]
        %v2288 = vld [vmem:[%s2224 + $0x1f8] sm:$0xff]
        %v2353 = vunpack.c.l.b16 %v2225
        %v2354 = vunpack.c.h.b16 %v2225
        %v2355 = vunpack.c.l.b16 %v2226
        %v2356 = vunpack.c.h.b16 %v2226
        %v2357 = vunpack.c.l.b16 %v2227
        %v2358 = vunpack.c.h.b16 %v2227
        %v2359 = vunpack.c.l.b16 %v2228
        %v2360 = vunpack.c.h.b16 %v2228
        %v2361 = vunpack.c.l.b16 %v2229
        %v2362 = vunpack.c.h.b16 %v2229
        %v2363 = vunpack.c.l.b16 %v2230
        %v2364 = vunpack.c.h.b16 %v2230
        %v2365 = vunpack.c.l.b16 %v2231
        %v2366 = vunpack.c.h.b16 %v2231
        %v2367 = vunpack.c.l.b16 %v2232
        %v2368 = vunpack.c.h.b16 %v2232
        %v2369 = vunpack.c.l.b16 %v2233
        %v2370 = vunpack.c.h.b16 %v2233
        %v2371 = vunpack.c.l.b16 %v2234
        %v2372 = vunpack.c.h.b16 %v2234
        %v2373 = vunpack.c.l.b16 %v2235
        %v2374 = vunpack.c.h.b16 %v2235
        %v2375 = vunpack.c.l.b16 %v2236
        %v2376 = vunpack.c.h.b16 %v2236
        %v2377 = vunpack.c.l.b16 %v2237
        %v2378 = vunpack.c.h.b16 %v2237
        %v2379 = vunpack.c.l.b16 %v2238
        %v2380 = vunpack.c.h.b16 %v2238
        %v2381 = vunpack.c.l.b16 %v2239
        %v2382 = vunpack.c.h.b16 %v2239
        %v2383 = vunpack.c.l.b16 %v2240
        %v2384 = vunpack.c.h.b16 %v2240
        %v2385 = vunpack.c.l.b16 %v2241
        %v2386 = vunpack.c.h.b16 %v2241
        %v2387 = vunpack.c.l.b16 %v2242
        %v2388 = vunpack.c.h.b16 %v2242
        %v2389 = vunpack.c.l.b16 %v2243
        %v2390 = vunpack.c.h.b16 %v2243
        %v2391 = vunpack.c.l.b16 %v2244
        %v2392 = vunpack.c.h.b16 %v2244
        %v2393 = vunpack.c.l.b16 %v2245
        %v2394 = vunpack.c.h.b16 %v2245
        %v2395 = vunpack.c.l.b16 %v2246
        %v2396 = vunpack.c.h.b16 %v2246
        %v2397 = vunpack.c.l.b16 %v2247
        %v2398 = vunpack.c.h.b16 %v2247
        %v2399 = vunpack.c.l.b16 %v2248
        %v2400 = vunpack.c.h.b16 %v2248
        %v2401 = vunpack.c.l.b16 %v2249
        %v2402 = vunpack.c.h.b16 %v2249
        %v2403 = vunpack.c.l.b16 %v2250
        %v2404 = vunpack.c.h.b16 %v2250
        %v2405 = vunpack.c.l.b16 %v2251
        %v2406 = vunpack.c.h.b16 %v2251
        %v2407 = vunpack.c.l.b16 %v2252
        %v2408 = vunpack.c.h.b16 %v2252
        %v2409 = vunpack.c.l.b16 %v2253
        %v2410 = vunpack.c.h.b16 %v2253
        %v2411 = vunpack.c.l.b16 %v2254
        %v2412 = vunpack.c.h.b16 %v2254
        %v2413 = vunpack.c.l.b16 %v2255
        %v2414 = vunpack.c.h.b16 %v2255
        %v2415 = vunpack.c.l.b16 %v2256
        %v2416 = vunpack.c.h.b16 %v2256
        %v2417 = vunpack.c.l.b16 %v2257
        %v2418 = vunpack.c.h.b16 %v2257
        %v2419 = vunpack.c.l.b16 %v2258
        %v2420 = vunpack.c.h.b16 %v2258
        %v2421 = vunpack.c.l.b16 %v2259
        %v2422 = vunpack.c.h.b16 %v2259
        %v2423 = vunpack.c.l.b16 %v2260
        %v2424 = vunpack.c.h.b16 %v2260
        %v2425 = vunpack.c.l.b16 %v2261
        %v2426 = vunpack.c.h.b16 %v2261
        %v2427 = vunpack.c.l.b16 %v2262
        %v2428 = vunpack.c.h.b16 %v2262
        %v2429 = vunpack.c.l.b16 %v2263
        %v2430 = vunpack.c.h.b16 %v2263
        %v2431 = vunpack.c.l.b16 %v2264
        %v2432 = vunpack.c.h.b16 %v2264
        %v2433 = vunpack.c.l.b16 %v2265
        %v2434 = vunpack.c.h.b16 %v2265
        %v2435 = vunpack.c.l.b16 %v2266
        %v2436 = vunpack.c.h.b16 %v2266
        %v2437 = vunpack.c.l.b16 %v2267
        %v2438 = vunpack.c.h.b16 %v2267
        %v2439 = vunpack.c.l.b16 %v2268
        %v2440 = vunpack.c.h.b16 %v2268
        %v2441 = vunpack.c.l.b16 %v2269
        %v2442 = vunpack.c.h.b16 %v2269
        %v2443 = vunpack.c.l.b16 %v2270
        %v2444 = vunpack.c.h.b16 %v2270
        %v2445 = vunpack.c.l.b16 %v2271
        %v2446 = vunpack.c.h.b16 %v2271
        %v2447 = vunpack.c.l.b16 %v2272
        %v2448 = vunpack.c.h.b16 %v2272
        %v2449 = vunpack.c.l.b16 %v2273
        %v2450 = vunpack.c.h.b16 %v2273
        %v2451 = vunpack.c.l.b16 %v2274
        %v2452 = vunpack.c.h.b16 %v2274
        %v2453 = vunpack.c.l.b16 %v2275
        %v2454 = vunpack.c.h.b16 %v2275
        %v2455 = vunpack.c.l.b16 %v2276
        %v2456 = vunpack.c.h.b16 %v2276
        %v2457 = vunpack.c.l.b16 %v2277
        %v2458 = vunpack.c.h.b16 %v2277
        %v2459 = vunpack.c.l.b16 %v2278
        %v2460 = vunpack.c.h.b16 %v2278
        %v2461 = vunpack.c.l.b16 %v2279
        %v2462 = vunpack.c.h.b16 %v2279
        %v2463 = vunpack.c.l.b16 %v2280
        %v2464 = vunpack.c.h.b16 %v2280
        %v2465 = vunpack.c.l.b16 %v2281
        %v2466 = vunpack.c.h.b16 %v2281
        %v2467 = vunpack.c.l.b16 %v2282
        %v2468 = vunpack.c.h.b16 %v2282
        %v2469 = vunpack.c.l.b16 %v2283
        %v2470 = vunpack.c.h.b16 %v2283
        %v2471 = vunpack.c.l.b16 %v2284
        %v2472 = vunpack.c.h.b16 %v2284
        %v2473 = vunpack.c.l.b16 %v2285
        %v2474 = vunpack.c.h.b16 %v2285
        %v2475 = vunpack.c.l.b16 %v2286
        %v2476 = vunpack.c.h.b16 %v2286
        %v2477 = vunpack.c.l.b16 %v2287
        %v2478 = vunpack.c.h.b16 %v2287
        %v2479 = vunpack.c.l.b16 %v2288
        %v2480 = vunpack.c.h.b16 %v2288
        %v2481 = vpack.c.b16 %v2355, %v2353
        %v2482 = vpack.c.b16 %v2356, %v2354
        %v2483 = vpack.c.b16 %v2359, %v2357
        %v2484 = vpack.c.b16 %v2360, %v2358
        %v2485 = vpack.c.b16 %v2363, %v2361
        %v2486 = vpack.c.b16 %v2364, %v2362
        %v2487 = vpack.c.b16 %v2367, %v2365
        %v2488 = vpack.c.b16 %v2368, %v2366
        %v2489 = vpack.c.b16 %v2371, %v2369
        %v2490 = vpack.c.b16 %v2372, %v2370
        %v2491 = vpack.c.b16 %v2375, %v2373
        %v2492 = vpack.c.b16 %v2376, %v2374
        %v2493 = vpack.c.b16 %v2379, %v2377
        %v2494 = vpack.c.b16 %v2380, %v2378
        %v2495 = vpack.c.b16 %v2383, %v2381
        %v2496 = vpack.c.b16 %v2384, %v2382
        %v2497 = vpack.c.b16 %v2387, %v2385
        %v2498 = vpack.c.b16 %v2388, %v2386
        %v2499 = vpack.c.b16 %v2391, %v2389
        %v2500 = vpack.c.b16 %v2392, %v2390
        %v2501 = vpack.c.b16 %v2395, %v2393
        %v2502 = vpack.c.b16 %v2396, %v2394
        %v2503 = vpack.c.b16 %v2399, %v2397
        %v2504 = vpack.c.b16 %v2400, %v2398
        %v2505 = vpack.c.b16 %v2403, %v2401
        %v2506 = vpack.c.b16 %v2404, %v2402
        %v2507 = vpack.c.b16 %v2407, %v2405
        %v2508 = vpack.c.b16 %v2408, %v2406
        %v2509 = vpack.c.b16 %v2411, %v2409
        %v2510 = vpack.c.b16 %v2412, %v2410
        %v2511 = vpack.c.b16 %v2415, %v2413
        %v2512 = vpack.c.b16 %v2416, %v2414
        %v2513 = vpack.c.b16 %v2419, %v2417
        %v2514 = vpack.c.b16 %v2420, %v2418
        %v2515 = vpack.c.b16 %v2423, %v2421
        %v2516 = vpack.c.b16 %v2424, %v2422
        %v2517 = vpack.c.b16 %v2427, %v2425
        %v2518 = vpack.c.b16 %v2428, %v2426
        %v2519 = vpack.c.b16 %v2431, %v2429
        %v2520 = vpack.c.b16 %v2432, %v2430
        %v2521 = vpack.c.b16 %v2435, %v2433
        %v2522 = vpack.c.b16 %v2436, %v2434
        %v2523 = vpack.c.b16 %v2439, %v2437
        %v2524 = vpack.c.b16 %v2440, %v2438
        %v2525 = vpack.c.b16 %v2443, %v2441
        %v2526 = vpack.c.b16 %v2444, %v2442
        %v2527 = vpack.c.b16 %v2447, %v2445
        %v2528 = vpack.c.b16 %v2448, %v2446
        %v2529 = vpack.c.b16 %v2451, %v2449
        %v2530 = vpack.c.b16 %v2452, %v2450
        %v2531 = vpack.c.b16 %v2455, %v2453
        %v2532 = vpack.c.b16 %v2456, %v2454
        %v2533 = vpack.c.b16 %v2459, %v2457
        %v2534 = vpack.c.b16 %v2460, %v2458
        %v2535 = vpack.c.b16 %v2463, %v2461
        %v2536 = vpack.c.b16 %v2464, %v2462
        %v2537 = vpack.c.b16 %v2467, %v2465
        %v2538 = vpack.c.b16 %v2468, %v2466
        %v2539 = vpack.c.b16 %v2471, %v2469
        %v2540 = vpack.c.b16 %v2472, %v2470
        %v2541 = vpack.c.b16 %v2475, %v2473
        %v2542 = vpack.c.b16 %v2476, %v2474
        %v2543 = vpack.c.b16 %v2479, %v2477
        %v2544 = vpack.c.b16 %v2480, %v2478
        %2609 = vmatprep.subr.bf16.mxu0 %v2496
        %2610 = vmatpush1.bf16.msra.mxu0 %v2495
        %2611 = vmatprep.subr.bf16.mxu0 %v2494
        %2612 = vmatpush1.bf16.msra.mxu0 %v2493
        %2613 = vmatprep.subr.bf16.mxu0 %v2492
        %2614 = vmatpush1.bf16.msra.mxu0 %v2491
        %2615 = vmatprep.subr.bf16.mxu0 %v2490
        %2616 = vmatpush1.bf16.msra.mxu0 %v2489
        %2617 = vmatprep.subr.bf16.mxu0 %v2488
        %2618 = vmatpush1.bf16.msra.mxu0 %v2487
        %2619 = vmatprep.subr.bf16.mxu0 %v2486
        %2620 = vmatpush1.bf16.msra.mxu0 %v2485
        %2621 = vmatprep.subr.bf16.mxu0 %v2484
        %2622 = vmatpush1.bf16.msra.mxu0 %v2483
        %2623 = vmatprep.subr.bf16.mxu0 %v2482
        %2624 = vmatpush1.bf16.msra.mxu0 %v2481
        %2625 = vmatprep.subr.bf16.mxu0 %v2512
        %2626 = vmatpush2.bf16.msra.mxu0 %v2511
        %2627 = vmatprep.subr.bf16.mxu0 %v2510
        %2628 = vmatpush2.bf16.msra.mxu0 %v2509
        %2629 = vmatprep.subr.bf16.mxu0 %v2508
        %2630 = vmatpush2.bf16.msra.mxu0 %v2507
        %2631 = vmatprep.subr.bf16.mxu0 %v2506
        %2632 = vmatpush2.bf16.msra.mxu0 %v2505
        %2633 = vmatprep.subr.bf16.mxu0 %v2504
        %2634 = vmatpush2.bf16.msra.mxu0 %v2503
        %2635 = vmatprep.subr.bf16.mxu0 %v2502
        %2636 = vmatpush2.bf16.msra.mxu0 %v2501
        %2637 = vmatprep.subr.bf16.mxu0 %v2500
        %2638 = vmatpush2.bf16.msra.mxu0 %v2499
        %2639 = vmatprep.subr.bf16.mxu0 %v2498
        %2640 = vmatpush2.bf16.msra.mxu0 %v2497
        %2641 = vmatprep.mubr.bf16.mxu0 %v2209
        %2642 = vmatmul.mubr.bf16.gmra.mxu0 %v2208
        %v2643 = vpop.f32.mrf.mxu0
        %v2644 = vadd.f32 0.0, %v2643
        %v2645 = vpop.f32.mrf.mxu0
        %v2646 = vadd.f32 0.0, %v2645
        %v2647 = vpop.f32.mrf.mxu0
        %v2648 = vadd.f32 0.0, %v2647
        %v2649 = vpop.f32.mrf.mxu0
        %v2650 = vadd.f32 0.0, %v2649
        %2651 = vmatprep.mubr.bf16.mxu0 %v2213
        %2652 = vmatmul.mubr.bf16.gmra.mxu0 %v2212
        %v2653 = vpop.f32.mrf.mxu0
        %v2654 = vadd.f32 0.0, %v2653
        %v2655 = vpop.f32.mrf.mxu0
        %v2656 = vadd.f32 0.0, %v2655
        %v2657 = vpop.f32.mrf.mxu0
        %v2658 = vadd.f32 0.0, %v2657
        %v2659 = vpop.f32.mrf.mxu0
        %v2660 = vadd.f32 0.0, %v2659
        %2661 = vmatprep.mubr.bf16.mxu0 %v2217
        %2662 = vmatmul.mubr.bf16.gmra.mxu0 %v2216
        %v2663 = vpop.f32.mrf.mxu0
        %v2664 = vadd.f32 0.0, %v2663
        %v2665 = vpop.f32.mrf.mxu0
        %v2666 = vadd.f32 0.0, %v2665
        %v2667 = vpop.f32.mrf.mxu0
        %v2668 = vadd.f32 0.0, %v2667
        %v2669 = vpop.f32.mrf.mxu0
        %v2670 = vadd.f32 0.0, %v2669
        %2671 = vmatprep.mubr.bf16.mxu0 %v2221
        %2672 = vmatmul.mubr.bf16.gmra.mxu0 %v2220
        %v2673 = vpop.f32.mrf.mxu0
        %v2674 = vadd.f32 0.0, %v2673
        %v2675 = vpop.f32.mrf.mxu0
        %v2676 = vadd.f32 0.0, %v2675
        %v2677 = vpop.f32.mrf.mxu0
        %v2678 = vpop.f32.mrf.mxu0
        %2679 = vdwg.mxu0
        %2680 = vmatprep.subr.bf16.mxu0 %v2528
        %2681 = vmatpush1.bf16.msra.mxu0 %v2527
        %2682 = vmatprep.subr.bf16.mxu0 %v2526
        %2683 = vmatpush1.bf16.msra.mxu0 %v2525
        %2684 = vmatprep.subr.bf16.mxu0 %v2524
        %2685 = vmatpush1.bf16.msra.mxu0 %v2523
        %2686 = vmatprep.subr.bf16.mxu0 %v2522
        %2687 = vmatpush1.bf16.msra.mxu0 %v2521
        %2688 = vmatprep.subr.bf16.mxu0 %v2520
        %2689 = vmatpush1.bf16.msra.mxu0 %v2519
        %2690 = vmatprep.subr.bf16.mxu0 %v2518
        %2691 = vmatpush1.bf16.msra.mxu0 %v2517
        %2692 = vmatprep.subr.bf16.mxu0 %v2516
        %2693 = vmatpush1.bf16.msra.mxu0 %v2515
        %2694 = vmatprep.subr.bf16.mxu0 %v2514
        %2695 = vmatpush1.bf16.msra.mxu0 %v2513
        %2696 = vmatprep.subr.bf16.mxu0 %v2544
        %2697 = vmatpush2.bf16.msra.mxu0 %v2543
        %2698 = vmatprep.subr.bf16.mxu0 %v2542
        %2699 = vmatpush2.bf16.msra.mxu0 %v2541
        %2700 = vmatprep.subr.bf16.mxu0 %v2540
        %2701 = vmatpush2.bf16.msra.mxu0 %v2539
        %2702 = vmatprep.subr.bf16.mxu0 %v2538
        %2703 = vmatpush2.bf16.msra.mxu0 %v2537
        %2704 = vmatprep.subr.bf16.mxu0 %v2536
        %2705 = vmatpush2.bf16.msra.mxu0 %v2535
        %2706 = vmatprep.subr.bf16.mxu0 %v2534
        %2707 = vmatpush2.bf16.msra.mxu0 %v2533
        %2708 = vmatprep.subr.bf16.mxu0 %v2532
        %2709 = vmatpush2.bf16.msra.mxu0 %v2531
        %2710 = vmatprep.subr.bf16.mxu0 %v2530
        %2711 = vmatpush2.bf16.msra.mxu0 %v2529
        %2712 = vmatprep.mubr.bf16.mxu0 %v2211
        %2713 = vmatmul.mubr.bf16.gmra.mxu0 %v2210
        %v2714 = vpop.f32.mrf.mxu0
        %v2715 = vadd.f32 %v2644, %v2714
        %v2716 = vpop.f32.mrf.mxu0
        %v2717 = vadd.f32 %v2646, %v2716
        %v2718 = vpop.f32.mrf.mxu0
        %v2719 = vadd.f32 %v2648, %v2718
        %v2720 = vpop.f32.mrf.mxu0
        %v2721 = vadd.f32 %v2650, %v2720
        %2722 = vmatprep.mubr.bf16.mxu0 %v2215
        %2723 = vmatmul.mubr.bf16.gmra.mxu0 %v2214
        %v2724 = vpop.f32.mrf.mxu0
        %v2725 = vadd.f32 %v2654, %v2724
        %v2726 = vpop.f32.mrf.mxu0
        %v2727 = vadd.f32 %v2656, %v2726
        %v2728 = vpop.f32.mrf.mxu0
        %v2729 = vadd.f32 %v2658, %v2728
        %v2730 = vpop.f32.mrf.mxu0
        %v2731 = vadd.f32 %v2660, %v2730
        %2732 = vmatprep.mubr.bf16.mxu0 %v2219
        %2733 = vmatmul.mubr.bf16.gmra.mxu0 %v2218
        %v2734 = vpop.f32.mrf.mxu0
        %v2735 = vadd.f32 %v2664, %v2734
        %v2736 = vpop.f32.mrf.mxu0
        %v2737 = vadd.f32 %v2666, %v2736
        %v2738 = vpop.f32.mrf.mxu0
        %v2739 = vadd.f32 %v2668, %v2738
        %v2740 = vpop.f32.mrf.mxu0
        %v2741 = vadd.f32 %v2670, %v2740
        %2742 = vmatprep.mubr.bf16.mxu0 %v2223
        %2743 = vmatmul.mubr.bf16.gmra.mxu0 %v2222
        %v2744 = vpop.f32.mrf.mxu0
        %v2745 = vadd.f32 %v2674, %v2744
        %v2746 = vpop.f32.mrf.mxu0
        %v2747 = vadd.f32 %v2676, %v2746
        %v2748 = vpop.f32.mrf.mxu0
        %v2749 = vpop.f32.mrf.mxu0
        %2750 = vdwg.mxu0
        %v2751 = vld [vmem:[%s157] sm:$0xff]
        %v2752 = vld [vmem:[%s157 + $0x8] sm:$0xff]
        %v2753 = vld [vmem:[%s157 + $0x10] sm:$0xff]
        %v2754 = vld [vmem:[%s157 + $0x18] sm:$0xff]
        %v2755 = vld [vmem:[%s157 + $0x20] sm:$0xff]
        %v2756 = vld [vmem:[%s157 + $0x28] sm:$0xff]
        %v2757 = vld [vmem:[%s157 + $0x30] sm:$0xff]
        %v2758 = vld [vmem:[%s157 + $0x38] sm:$0xff]
        %v2759 = vld [vmem:[%s157 + $0x40] sm:$0xff]
        %v2760 = vld [vmem:[%s157 + $0x48] sm:$0xff]
        %v2761 = vld [vmem:[%s157 + $0x50] sm:$0xff]
        %v2762 = vld [vmem:[%s157 + $0x58] sm:$0xff]
        %v2763 = vld [vmem:[%s157 + $0x60] sm:$0xff]
        %v2764 = vld [vmem:[%s157 + $0x68] sm:$0xff]
        %v2765 = vadd.f32 %v2751, %v2715
        %v2766 = vadd.f32 %v2752, %v2717
        %v2767 = vadd.f32 %v2753, %v2719
        %v2768 = vadd.f32 %v2754, %v2721
        %v2769 = vadd.f32 %v2755, %v2725
        %v2770 = vadd.f32 %v2756, %v2727
        %v2771 = vadd.f32 %v2757, %v2729
        %v2772 = vadd.f32 %v2758, %v2731
        %v2773 = vadd.f32 %v2759, %v2735
        %v2774 = vadd.f32 %v2760, %v2737
        %v2775 = vadd.f32 %v2761, %v2739
        %v2776 = vadd.f32 %v2762, %v2741
        %v2777 = vadd.f32 %v2763, %v2745
        %v2778 = vadd.f32 %v2764, %v2747
        %2779 = vst [vmem:[%s157] sm:$0xff] %v2765
        %2780 = vst [vmem:[%s157 + $0x8] sm:$0xff] %v2766
        %2781 = vst [vmem:[%s157 + $0x10] sm:$0xff] %v2767
        %2782 = vst [vmem:[%s157 + $0x18] sm:$0xff] %v2768
        %2783 = vst [vmem:[%s157 + $0x20] sm:$0xff] %v2769
        %2784 = vst [vmem:[%s157 + $0x28] sm:$0xff] %v2770
        %2785 = vst [vmem:[%s157 + $0x30] sm:$0xff] %v2771
        %2786 = vst [vmem:[%s157 + $0x38] sm:$0xff] %v2772
        %2787 = vst [vmem:[%s157 + $0x40] sm:$0xff] %v2773
        %2788 = vst [vmem:[%s157 + $0x48] sm:$0xff] %v2774
        %2789 = vst [vmem:[%s157 + $0x50] sm:$0xff] %v2775
        %2790 = vst [vmem:[%s157 + $0x58] sm:$0xff] %v2776
        %2791 = vst [vmem:[%s157 + $0x60] sm:$0xff] %v2777
        %2792 = vst [vmem:[%s157 + $0x68] sm:$0xff] %v2778
        %v2793 = vld [vmem:[%s0 + $0x20] sm:$0xfe]
        %v2794 = vld [vmem:[%s0 + $0x28] sm:$0xfe]
        %v2795 = vld [vmem:[%s0 + $0x30] sm:$0xfe]
        %v2796 = vld [vmem:[%s0 + $0x38] sm:$0xfe]
        %v2797 = vld [vmem:[%s0 + $0x40] sm:$0xff]
        %v2798 = vld [vmem:[%s0 + $0x48] sm:$0xff]
        %v2799 = vld [vmem:[%s0 + $0x50] sm:$0xff]
        %v2800 = vld [vmem:[%s0 + $0x58] sm:$0xff]
        %v2801 = vld [vmem:[%s0 + $0x60] sm:$0xff]
        %v2802 = vld [vmem:[%s0 + $0x68] sm:$0xff]
        %v2803 = vld [vmem:[%s0 + $0x70] sm:$0xff]
        %v2804 = vld [vmem:[%s0 + $0x78] sm:$0xff]
        %v2805 = vld [vmem:[%s0 + $0x80] sm:$0xff]
        %v2806 = vld [vmem:[%s0 + $0x88] sm:$0xff]
        %v2807 = vld [vmem:[%s0 + $0x90] sm:$0xff]
        %v2808 = vld [vmem:[%s0 + $0x98] sm:$0xff]
        %v2809 = vld [vmem:[%s0 + $0xa0] sm:$0xff]
        %v2810 = vld [vmem:[%s0 + $0xa8] sm:$0xff]
        %v2811 = vld [vmem:[%s0 + $0xb0] sm:$0xff]
        %v2812 = vld [vmem:[%s0 + $0xb8] sm:$0xff]
        %v2813 = vld [vmem:[%s0 + $0xc0] sm:$0xff]
        %v2814 = vld [vmem:[%s0 + $0xc8] sm:$0xff]
        %v2815 = vld [vmem:[%s0 + $0xd0] sm:$0xff]
        %v2816 = vld [vmem:[%s0 + $0xd8] sm:$0xff]
        %v2817 = vld [vmem:[%s0 + $0xe0] sm:$0xff]
        %v2818 = vld [vmem:[%s0 + $0xe8] sm:$0xff]
        %v2819 = vld [vmem:[%s0 + $0xf0] sm:$0xff]
        %v2820 = vld [vmem:[%s0 + $0xf8] sm:$0xff]
        %v2821 = vld [vmem:[%s0 + $0x100] sm:$0x1]
        %v2822 = vld [vmem:[%s0 + $0x108] sm:$0x1]
        %v2823 = vld [vmem:[%s0 + $0x110] sm:$0x1]
        %v2824 = vld [vmem:[%s0 + $0x118] sm:$0x1]
        %v2825 = vpack.c.bf16 %v2797, %v2793
        %v2826 = vpack.c.bf16 %v2798, %v2794
        %v2827 = vpack.c.bf16 %v2799, %v2795
        %v2828 = vpack.c.bf16 %v2800, %v2796
        %v2829 = vpack.c.bf16 %v2805, %v2801
        %v2830 = vpack.c.bf16 %v2806, %v2802
        %v2831 = vpack.c.bf16 %v2807, %v2803
        %v2832 = vpack.c.bf16 %v2808, %v2804
        %v2833 = vpack.c.bf16 %v2813, %v2809
        %v2834 = vpack.c.bf16 %v2814, %v2810
        %v2835 = vpack.c.bf16 %v2815, %v2811
        %v2836 = vpack.c.bf16 %v2816, %v2812
        %v2837 = vpack.c.bf16 %v2821, %v2817
        %v2838 = vpack.c.bf16 %v2822, %v2818
        %v2839 = vpack.c.bf16 %v2823, %v2819
        %v2840 = vpack.c.bf16 %v2824, %v2820
        %s2841 = scalar_lea.vmem %s138, 2048 [#allocation2]
        %v2842 = vld [vmem:[%s2841] sm:$0xff]
        %v2843 = vld [vmem:[%s2841 + $0x8] sm:$0xff]
        %v2844 = vld [vmem:[%s2841 + $0x10] sm:$0xff]
        %v2845 = vld [vmem:[%s2841 + $0x18] sm:$0xff]
        %v2846 = vld [vmem:[%s2841 + $0x20] sm:$0xff]
        %v2847 = vld [vmem:[%s2841 + $0x28] sm:$0xff]
        %v2848 = vld [vmem:[%s2841 + $0x30] sm:$0xff]
        %v2849 = vld [vmem:[%s2841 + $0x38] sm:$0xff]
        %v2850 = vld [vmem:[%s2841 + $0x40] sm:$0xff]
        %v2851 = vld [vmem:[%s2841 + $0x48] sm:$0xff]
        %v2852 = vld [vmem:[%s2841 + $0x50] sm:$0xff]
        %v2853 = vld [vmem:[%s2841 + $0x58] sm:$0xff]
        %v2854 = vld [vmem:[%s2841 + $0x60] sm:$0xff]
        %v2855 = vld [vmem:[%s2841 + $0x68] sm:$0xff]
        %v2856 = vld [vmem:[%s2841 + $0x70] sm:$0xff]
        %v2857 = vld [vmem:[%s2841 + $0x78] sm:$0xff]
        %v2858 = vld [vmem:[%s2841 + $0x80] sm:$0xff]
        %v2859 = vld [vmem:[%s2841 + $0x88] sm:$0xff]
        %v2860 = vld [vmem:[%s2841 + $0x90] sm:$0xff]
        %v2861 = vld [vmem:[%s2841 + $0x98] sm:$0xff]
        %v2862 = vld [vmem:[%s2841 + $0xa0] sm:$0xff]
        %v2863 = vld [vmem:[%s2841 + $0xa8] sm:$0xff]
        %v2864 = vld [vmem:[%s2841 + $0xb0] sm:$0xff]
        %v2865 = vld [vmem:[%s2841 + $0xb8] sm:$0xff]
        %v2866 = vld [vmem:[%s2841 + $0xc0] sm:$0xff]
        %v2867 = vld [vmem:[%s2841 + $0xc8] sm:$0xff]
        %v2868 = vld [vmem:[%s2841 + $0xd0] sm:$0xff]
        %v2869 = vld [vmem:[%s2841 + $0xd8] sm:$0xff]
        %v2870 = vld [vmem:[%s2841 + $0xe0] sm:$0xff]
        %v2871 = vld [vmem:[%s2841 + $0xe8] sm:$0xff]
        %v2872 = vld [vmem:[%s2841 + $0xf0] sm:$0xff]
        %v2873 = vld [vmem:[%s2841 + $0xf8] sm:$0xff]
        %v2874 = vld [vmem:[%s2841 + $0x100] sm:$0xff]
        %v2875 = vld [vmem:[%s2841 + $0x108] sm:$0xff]
        %v2876 = vld [vmem:[%s2841 + $0x110] sm:$0xff]
        %v2877 = vld [vmem:[%s2841 + $0x118] sm:$0xff]
        %v2878 = vld [vmem:[%s2841 + $0x120] sm:$0xff]
        %v2879 = vld [vmem:[%s2841 + $0x128] sm:$0xff]
        %v2880 = vld [vmem:[%s2841 + $0x130] sm:$0xff]
        %v2881 = vld [vmem:[%s2841 + $0x138] sm:$0xff]
        %v2882 = vld [vmem:[%s2841 + $0x140] sm:$0xff]
        %v2883 = vld [vmem:[%s2841 + $0x148] sm:$0xff]
        %v2884 = vld [vmem:[%s2841 + $0x150] sm:$0xff]
        %v2885 = vld [vmem:[%s2841 + $0x158] sm:$0xff]
        %v2886 = vld [vmem:[%s2841 + $0x160] sm:$0xff]
        %v2887 = vld [vmem:[%s2841 + $0x168] sm:$0xff]
        %v2888 = vld [vmem:[%s2841 + $0x170] sm:$0xff]
        %v2889 = vld [vmem:[%s2841 + $0x178] sm:$0xff]
        %v2890 = vld [vmem:[%s2841 + $0x180] sm:$0xff]
        %v2891 = vld [vmem:[%s2841 + $0x188] sm:$0xff]
        %v2892 = vld [vmem:[%s2841 + $0x190] sm:$0xff]
        %v2893 = vld [vmem:[%s2841 + $0x198] sm:$0xff]
        %v2894 = vld [vmem:[%s2841 + $0x1a0] sm:$0xff]
        %v2895 = vld [vmem:[%s2841 + $0x1a8] sm:$0xff]
        %v2896 = vld [vmem:[%s2841 + $0x1b0] sm:$0xff]
        %v2897 = vld [vmem:[%s2841 + $0x1b8] sm:$0xff]
        %v2898 = vld [vmem:[%s2841 + $0x1c0] sm:$0xff]
        %v2899 = vld [vmem:[%s2841 + $0x1c8] sm:$0xff]
        %v2900 = vld [vmem:[%s2841 + $0x1d0] sm:$0xff]
        %v2901 = vld [vmem:[%s2841 + $0x1d8] sm:$0xff]
        %v2902 = vld [vmem:[%s2841 + $0x1e0] sm:$0xff]
        %v2903 = vld [vmem:[%s2841 + $0x1e8] sm:$0xff]
        %v2904 = vld [vmem:[%s2841 + $0x1f0] sm:$0xff]
        %v2905 = vld [vmem:[%s2841 + $0x1f8] sm:$0xff]
        %v2907 = vshrl.u32 %v2825, 16
        %v2909 = vshll.u32 %v2825, 16
        %v2911 = vrot.slane %v2909, 1
        %v2912 = vor.u32 %v2907, %v2911
        %v2914 = vshll.u32 %v2829, 16
        %v2916 = vrot.slane %v2914, 1
        %v2917 = vsel %vm857, %v2912, %v2916
        %v2919 = vshrl.u32 %v2826, 16
        %v2921 = vshll.u32 %v2826, 16
        %v2923 = vrot.slane %v2921, 1
        %v2924 = vor.u32 %v2919, %v2923
        %v2926 = vshll.u32 %v2830, 16
        %v2928 = vrot.slane %v2926, 1
        %v2929 = vsel %vm857, %v2924, %v2928
        %v2931 = vshrl.u32 %v2827, 16
        %v2933 = vshll.u32 %v2827, 16
        %v2935 = vrot.slane %v2933, 1
        %v2936 = vor.u32 %v2931, %v2935
        %v2938 = vshll.u32 %v2831, 16
        %v2940 = vrot.slane %v2938, 1
        %v2941 = vsel %vm857, %v2936, %v2940
        %v2943 = vshrl.u32 %v2828, 16
        %v2945 = vshll.u32 %v2828, 16
        %v2947 = vrot.slane %v2945, 1
        %v2948 = vor.u32 %v2943, %v2947
        %v2950 = vshll.u32 %v2832, 16
        %v2952 = vrot.slane %v2950, 1
        %v2953 = vsel %vm857, %v2948, %v2952
        %v2954 = vshrl.u32 %v2829, 16
        %v2956 = vor.u32 %v2954, %v2916
        %v2958 = vshll.u32 %v2833, 16
        %v2960 = vrot.slane %v2958, 1
        %v2961 = vsel %vm857, %v2956, %v2960
        %v2962 = vshrl.u32 %v2830, 16
        %v2964 = vor.u32 %v2962, %v2928
        %v2966 = vshll.u32 %v2834, 16
        %v2968 = vrot.slane %v2966, 1
        %v2969 = vsel %vm857, %v2964, %v2968
        %v2970 = vshrl.u32 %v2831, 16
        %v2972 = vor.u32 %v2970, %v2940
        %v2974 = vshll.u32 %v2835, 16
        %v2976 = vrot.slane %v2974, 1
        %v2977 = vsel %vm857, %v2972, %v2976
        %v2978 = vshrl.u32 %v2832, 16
        %v2980 = vor.u32 %v2978, %v2952
        %v2982 = vshll.u32 %v2836, 16
        %v2984 = vrot.slane %v2982, 1
        %v2985 = vsel %vm857, %v2980, %v2984
        %v2986 = vshrl.u32 %v2833, 16
        %v2988 = vor.u32 %v2986, %v2960
        %v2990 = vshll.u32 %v2837, 16
        %v2992 = vrot.slane %v2990, 1
        %v2993 = vsel %vm857, %v2988, %v2992
        %v2994 = vshrl.u32 %v2834, 16
        %v2996 = vor.u32 %v2994, %v2968
        %v2998 = vshll.u32 %v2838, 16
        %v3000 = vrot.slane %v2998, 1
        %v3001 = vsel %vm857, %v2996, %v3000
        %v3002 = vshrl.u32 %v2835, 16
        %v3004 = vor.u32 %v3002, %v2976
        %v3006 = vshll.u32 %v2839, 16
        %v3008 = vrot.slane %v3006, 1
        %v3009 = vsel %vm857, %v3004, %v3008
        %v3010 = vshrl.u32 %v2836, 16
        %v3012 = vor.u32 %v3010, %v2984
        %v3014 = vshll.u32 %v2840, 16
        %v3016 = vrot.slane %v3014, 1
        %v3017 = vsel %vm857, %v3012, %v3016
        %v3018 = vshrl.u32 %v2837, 16
        %v3020 = vor.u32 %v3018, %v2992
        %v3021 = vshrl.u32 %v2838, 16
        %v3023 = vor.u32 %v3021, %v3000
        %v3024 = vshrl.u32 %v2839, 16
        %v3026 = vor.u32 %v3024, %v3008
        %v3027 = vshrl.u32 %v2840, 16
        %v3029 = vor.u32 %v3027, %v3016
        %v3110 = vunpack.c.l.b16 %v2842
        %v3111 = vunpack.c.h.b16 %v2842
        %v3112 = vunpack.c.l.b16 %v2843
        %v3113 = vunpack.c.h.b16 %v2843
        %v3114 = vunpack.c.l.b16 %v2844
        %v3115 = vunpack.c.h.b16 %v2844
        %v3116 = vunpack.c.l.b16 %v2845
        %v3117 = vunpack.c.h.b16 %v2845
        %v3118 = vunpack.c.l.b16 %v2846
        %v3119 = vunpack.c.h.b16 %v2846
        %v3120 = vunpack.c.l.b16 %v2847
        %v3121 = vunpack.c.h.b16 %v2847
        %v3122 = vunpack.c.l.b16 %v2848
        %v3123 = vunpack.c.h.b16 %v2848
        %v3124 = vunpack.c.l.b16 %v2849
        %v3125 = vunpack.c.h.b16 %v2849
        %v3126 = vunpack.c.l.b16 %v2850
        %v3127 = vunpack.c.h.b16 %v2850
        %v3128 = vunpack.c.l.b16 %v2851
        %v3129 = vunpack.c.h.b16 %v2851
        %v3130 = vunpack.c.l.b16 %v2852
        %v3131 = vunpack.c.h.b16 %v2852
        %v3132 = vunpack.c.l.b16 %v2853
        %v3133 = vunpack.c.h.b16 %v2853
        %v3134 = vunpack.c.l.b16 %v2854
        %v3135 = vunpack.c.h.b16 %v2854
        %v3136 = vunpack.c.l.b16 %v2855
        %v3137 = vunpack.c.h.b16 %v2855
        %v3138 = vunpack.c.l.b16 %v2856
        %v3139 = vunpack.c.h.b16 %v2856
        %v3140 = vunpack.c.l.b16 %v2857
        %v3141 = vunpack.c.h.b16 %v2857
        %v3142 = vunpack.c.l.b16 %v2858
        %v3143 = vunpack.c.h.b16 %v2858
        %v3144 = vunpack.c.l.b16 %v2859
        %v3145 = vunpack.c.h.b16 %v2859
        %v3146 = vunpack.c.l.b16 %v2860
        %v3147 = vunpack.c.h.b16 %v2860
        %v3148 = vunpack.c.l.b16 %v2861
        %v3149 = vunpack.c.h.b16 %v2861
        %v3150 = vunpack.c.l.b16 %v2862
        %v3151 = vunpack.c.h.b16 %v2862
        %v3152 = vunpack.c.l.b16 %v2863
        %v3153 = vunpack.c.h.b16 %v2863
        %v3154 = vunpack.c.l.b16 %v2864
        %v3155 = vunpack.c.h.b16 %v2864
        %v3156 = vunpack.c.l.b16 %v2865
        %v3157 = vunpack.c.h.b16 %v2865
        %v3158 = vunpack.c.l.b16 %v2866
        %v3159 = vunpack.c.h.b16 %v2866
        %v3160 = vunpack.c.l.b16 %v2867
        %v3161 = vunpack.c.h.b16 %v2867
        %v3162 = vunpack.c.l.b16 %v2868
        %v3163 = vunpack.c.h.b16 %v2868
        %v3164 = vunpack.c.l.b16 %v2869
        %v3165 = vunpack.c.h.b16 %v2869
        %v3166 = vunpack.c.l.b16 %v2870
        %v3167 = vunpack.c.h.b16 %v2870
        %v3168 = vunpack.c.l.b16 %v2871
        %v3169 = vunpack.c.h.b16 %v2871
        %v3170 = vunpack.c.l.b16 %v2872
        %v3171 = vunpack.c.h.b16 %v2872
        %v3172 = vunpack.c.l.b16 %v2873
        %v3173 = vunpack.c.h.b16 %v2873
        %v3174 = vunpack.c.l.b16 %v2874
        %v3175 = vunpack.c.h.b16 %v2874
        %v3176 = vunpack.c.l.b16 %v2875
        %v3177 = vunpack.c.h.b16 %v2875
        %v3178 = vunpack.c.l.b16 %v2876
        %v3179 = vunpack.c.h.b16 %v2876
        %v3180 = vunpack.c.l.b16 %v2877
        %v3181 = vunpack.c.h.b16 %v2877
        %v3182 = vunpack.c.l.b16 %v2878
        %v3183 = vunpack.c.h.b16 %v2878
        %v3184 = vunpack.c.l.b16 %v2879
        %v3185 = vunpack.c.h.b16 %v2879
        %v3186 = vunpack.c.l.b16 %v2880
        %v3187 = vunpack.c.h.b16 %v2880
        %v3188 = vunpack.c.l.b16 %v2881
        %v3189 = vunpack.c.h.b16 %v2881
        %v3190 = vunpack.c.l.b16 %v2882
        %v3191 = vunpack.c.h.b16 %v2882
        %v3192 = vunpack.c.l.b16 %v2883
        %v3193 = vunpack.c.h.b16 %v2883
        %v3194 = vunpack.c.l.b16 %v2884
        %v3195 = vunpack.c.h.b16 %v2884
        %v3196 = vunpack.c.l.b16 %v2885
        %v3197 = vunpack.c.h.b16 %v2885
        %v3198 = vunpack.c.l.b16 %v2886
        %v3199 = vunpack.c.h.b16 %v2886
        %v3200 = vunpack.c.l.b16 %v2887
        %v3201 = vunpack.c.h.b16 %v2887
        %v3202 = vunpack.c.l.b16 %v2888
        %v3203 = vunpack.c.h.b16 %v2888
        %v3204 = vunpack.c.l.b16 %v2889
        %v3205 = vunpack.c.h.b16 %v2889
        %v3206 = vunpack.c.l.b16 %v2890
        %v3207 = vunpack.c.h.b16 %v2890
        %v3208 = vunpack.c.l.b16 %v2891
        %v3209 = vunpack.c.h.b16 %v2891
        %v3210 = vunpack.c.l.b16 %v2892
        %v3211 = vunpack.c.h.b16 %v2892
        %v3212 = vunpack.c.l.b16 %v2893
        %v3213 = vunpack.c.h.b16 %v2893
        %v3214 = vunpack.c.l.b16 %v2894
        %v3215 = vunpack.c.h.b16 %v2894
        %v3216 = vunpack.c.l.b16 %v2895
        %v3217 = vunpack.c.h.b16 %v2895
        %v3218 = vunpack.c.l.b16 %v2896
        %v3219 = vunpack.c.h.b16 %v2896
        %v3220 = vunpack.c.l.b16 %v2897
        %v3221 = vunpack.c.h.b16 %v2897
        %v3222 = vunpack.c.l.b16 %v2898
        %v3223 = vunpack.c.h.b16 %v2898
        %v3224 = vunpack.c.l.b16 %v2899
        %v3225 = vunpack.c.h.b16 %v2899
        %v3226 = vunpack.c.l.b16 %v2900
        %v3227 = vunpack.c.h.b16 %v2900
        %v3228 = vunpack.c.l.b16 %v2901
        %v3229 = vunpack.c.h.b16 %v2901
        %v3230 = vunpack.c.l.b16 %v2902
        %v3231 = vunpack.c.h.b16 %v2902
        %v3232 = vunpack.c.l.b16 %v2903
        %v3233 = vunpack.c.h.b16 %v2903
        %v3234 = vunpack.c.l.b16 %v2904
        %v3235 = vunpack.c.h.b16 %v2904
        %v3236 = vunpack.c.l.b16 %v2905
        %v3237 = vunpack.c.h.b16 %v2905
        %v3238 = vpack.c.b16 %v3112, %v3110
        %v3239 = vpack.c.b16 %v3113, %v3111
        %v3240 = vpack.c.b16 %v3116, %v3114
        %v3241 = vpack.c.b16 %v3117, %v3115
        %v3242 = vpack.c.b16 %v3120, %v3118
        %v3243 = vpack.c.b16 %v3121, %v3119
        %v3244 = vpack.c.b16 %v3124, %v3122
        %v3245 = vpack.c.b16 %v3125, %v3123
        %v3246 = vpack.c.b16 %v3128, %v3126
        %v3247 = vpack.c.b16 %v3129, %v3127
        %v3248 = vpack.c.b16 %v3132, %v3130
        %v3249 = vpack.c.b16 %v3133, %v3131
        %v3250 = vpack.c.b16 %v3136, %v3134
        %v3251 = vpack.c.b16 %v3137, %v3135
        %v3252 = vpack.c.b16 %v3140, %v3138
        %v3253 = vpack.c.b16 %v3141, %v3139
        %v3254 = vpack.c.b16 %v3144, %v3142
        %v3255 = vpack.c.b16 %v3145, %v3143
        %v3256 = vpack.c.b16 %v3148, %v3146
        %v3257 = vpack.c.b16 %v3149, %v3147
        %v3258 = vpack.c.b16 %v3152, %v3150
        %v3259 = vpack.c.b16 %v3153, %v3151
        %v3260 = vpack.c.b16 %v3156, %v3154
        %v3261 = vpack.c.b16 %v3157, %v3155
        %v3262 = vpack.c.b16 %v3160, %v3158
        %v3263 = vpack.c.b16 %v3161, %v3159
        %v3264 = vpack.c.b16 %v3164, %v3162
        %v3265 = vpack.c.b16 %v3165, %v3163
        %v3266 = vpack.c.b16 %v3168, %v3166
        %v3267 = vpack.c.b16 %v3169, %v3167
        %v3268 = vpack.c.b16 %v3172, %v3170
        %v3269 = vpack.c.b16 %v3173, %v3171
        %v3270 = vpack.c.b16 %v3176, %v3174
        %v3271 = vpack.c.b16 %v3177, %v3175
        %v3272 = vpack.c.b16 %v3180, %v3178
        %v3273 = vpack.c.b16 %v3181, %v3179
        %v3274 = vpack.c.b16 %v3184, %v3182
        %v3275 = vpack.c.b16 %v3185, %v3183
        %v3276 = vpack.c.b16 %v3188, %v3186
        %v3277 = vpack.c.b16 %v3189, %v3187
        %v3278 = vpack.c.b16 %v3192, %v3190
        %v3279 = vpack.c.b16 %v3193, %v3191
        %v3280 = vpack.c.b16 %v3196, %v3194
        %v3281 = vpack.c.b16 %v3197, %v3195
        %v3282 = vpack.c.b16 %v3200, %v3198
        %v3283 = vpack.c.b16 %v3201, %v3199
        %v3284 = vpack.c.b16 %v3204, %v3202
        %v3285 = vpack.c.b16 %v3205, %v3203
        %v3286 = vpack.c.b16 %v3208, %v3206
        %v3287 = vpack.c.b16 %v3209, %v3207
        %v3288 = vpack.c.b16 %v3212, %v3210
        %v3289 = vpack.c.b16 %v3213, %v3211
        %v3290 = vpack.c.b16 %v3216, %v3214
        %v3291 = vpack.c.b16 %v3217, %v3215
        %v3292 = vpack.c.b16 %v3220, %v3218
        %v3293 = vpack.c.b16 %v3221, %v3219
        %v3294 = vpack.c.b16 %v3224, %v3222
        %v3295 = vpack.c.b16 %v3225, %v3223
        %v3296 = vpack.c.b16 %v3228, %v3226
        %v3297 = vpack.c.b16 %v3229, %v3227
        %v3298 = vpack.c.b16 %v3232, %v3230
        %v3299 = vpack.c.b16 %v3233, %v3231
        %v3300 = vpack.c.b16 %v3236, %v3234
        %v3301 = vpack.c.b16 %v3237, %v3235
        %3366 = vmatprep.subr.bf16.mxu0 %v3253
        %3367 = vmatpush1.bf16.msra.mxu0 %v3252
        %3368 = vmatprep.subr.bf16.mxu0 %v3251
        %3369 = vmatpush1.bf16.msra.mxu0 %v3250
        %3370 = vmatprep.subr.bf16.mxu0 %v3249
        %3371 = vmatpush1.bf16.msra.mxu0 %v3248
        %3372 = vmatprep.subr.bf16.mxu0 %v3247
        %3373 = vmatpush1.bf16.msra.mxu0 %v3246
        %3374 = vmatprep.subr.bf16.mxu0 %v3245
        %3375 = vmatpush1.bf16.msra.mxu0 %v3244
        %3376 = vmatprep.subr.bf16.mxu0 %v3243
        %3377 = vmatpush1.bf16.msra.mxu0 %v3242
        %3378 = vmatprep.subr.bf16.mxu0 %v3241
        %3379 = vmatpush1.bf16.msra.mxu0 %v3240
        %3380 = vmatprep.subr.bf16.mxu0 %v3239
        %3381 = vmatpush1.bf16.msra.mxu0 %v3238
        %3382 = vmatprep.subr.bf16.mxu0 %v3269
        %3383 = vmatpush2.bf16.msra.mxu0 %v3268
        %3384 = vmatprep.subr.bf16.mxu0 %v3267
        %3385 = vmatpush2.bf16.msra.mxu0 %v3266
        %3386 = vmatprep.subr.bf16.mxu0 %v3265
        %3387 = vmatpush2.bf16.msra.mxu0 %v3264
        %3388 = vmatprep.subr.bf16.mxu0 %v3263
        %3389 = vmatpush2.bf16.msra.mxu0 %v3262
        %3390 = vmatprep.subr.bf16.mxu0 %v3261
        %3391 = vmatpush2.bf16.msra.mxu0 %v3260
        %3392 = vmatprep.subr.bf16.mxu0 %v3259
        %3393 = vmatpush2.bf16.msra.mxu0 %v3258
        %3394 = vmatprep.subr.bf16.mxu0 %v3257
        %3395 = vmatpush2.bf16.msra.mxu0 %v3256
        %3396 = vmatprep.subr.bf16.mxu0 %v3255
        %3397 = vmatpush2.bf16.msra.mxu0 %v3254
        %3398 = vmatprep.mubr.bf16.mxu0 %v2929
        %3399 = vmatmul.mubr.bf16.gmra.mxu0 %v2917
        %v3400 = vpop.f32.mrf.mxu0
        %v3401 = vadd.f32 0.0, %v3400
        %v3402 = vpop.f32.mrf.mxu0
        %v3403 = vadd.f32 0.0, %v3402
        %v3404 = vpop.f32.mrf.mxu0
        %v3405 = vadd.f32 0.0, %v3404
        %v3406 = vpop.f32.mrf.mxu0
        %v3407 = vadd.f32 0.0, %v3406
        %3408 = vmatprep.mubr.bf16.mxu0 %v2969
        %3409 = vmatmul.mubr.bf16.gmra.mxu0 %v2961
        %v3410 = vpop.f32.mrf.mxu0
        %v3411 = vadd.f32 0.0, %v3410
        %v3412 = vpop.f32.mrf.mxu0
        %v3413 = vadd.f32 0.0, %v3412
        %v3414 = vpop.f32.mrf.mxu0
        %v3415 = vadd.f32 0.0, %v3414
        %v3416 = vpop.f32.mrf.mxu0
        %v3417 = vadd.f32 0.0, %v3416
        %3418 = vmatprep.mubr.bf16.mxu0 %v3001
        %3419 = vmatmul.mubr.bf16.gmra.mxu0 %v2993
        %v3420 = vpop.f32.mrf.mxu0
        %v3421 = vadd.f32 0.0, %v3420
        %v3422 = vpop.f32.mrf.mxu0
        %v3423 = vadd.f32 0.0, %v3422
        %v3424 = vpop.f32.mrf.mxu0
        %v3425 = vadd.f32 0.0, %v3424
        %v3426 = vpop.f32.mrf.mxu0
        %v3427 = vadd.f32 0.0, %v3426
        %3428 = vmatprep.mubr.bf16.mxu0 %v3023
        %3429 = vmatmul.mubr.bf16.gmra.mxu0 %v3020
        %v3430 = vpop.f32.mrf.mxu0
        %v3431 = vadd.f32 0.0, %v3430
        %v3432 = vpop.f32.mrf.mxu0
        %v3433 = vadd.f32 0.0, %v3432
        %v3434 = vpop.f32.mrf.mxu0
        %v3435 = vpop.f32.mrf.mxu0
        %3436 = vdwg.mxu0
        %3437 = vmatprep.subr.bf16.mxu0 %v3285
        %3438 = vmatpush1.bf16.msra.mxu0 %v3284
        %3439 = vmatprep.subr.bf16.mxu0 %v3283
        %3440 = vmatpush1.bf16.msra.mxu0 %v3282
        %3441 = vmatprep.subr.bf16.mxu0 %v3281
        %3442 = vmatpush1.bf16.msra.mxu0 %v3280
        %3443 = vmatprep.subr.bf16.mxu0 %v3279
        %3444 = vmatpush1.bf16.msra.mxu0 %v3278
        %3445 = vmatprep.subr.bf16.mxu0 %v3277
        %3446 = vmatpush1.bf16.msra.mxu0 %v3276
        %3447 = vmatprep.subr.bf16.mxu0 %v3275
        %3448 = vmatpush1.bf16.msra.mxu0 %v3274
        %3449 = vmatprep.subr.bf16.mxu0 %v3273
        %3450 = vmatpush1.bf16.msra.mxu0 %v3272
        %3451 = vmatprep.subr.bf16.mxu0 %v3271
        %3452 = vmatpush1.bf16.msra.mxu0 %v3270
        %3453 = vmatprep.subr.bf16.mxu0 %v3301
        %3454 = vmatpush2.bf16.msra.mxu0 %v3300
        %3455 = vmatprep.subr.bf16.mxu0 %v3299
        %3456 = vmatpush2.bf16.msra.mxu0 %v3298
        %3457 = vmatprep.subr.bf16.mxu0 %v3297
        %3458 = vmatpush2.bf16.msra.mxu0 %v3296
        %3459 = vmatprep.subr.bf16.mxu0 %v3295
        %3460 = vmatpush2.bf16.msra.mxu0 %v3294
        %3461 = vmatprep.subr.bf16.mxu0 %v3293
        %3462 = vmatpush2.bf16.msra.mxu0 %v3292
        %3463 = vmatprep.subr.bf16.mxu0 %v3291
        %3464 = vmatpush2.bf16.msra.mxu0 %v3290
        %3465 = vmatprep.subr.bf16.mxu0 %v3289
        %3466 = vmatpush2.bf16.msra.mxu0 %v3288
        %3467 = vmatprep.subr.bf16.mxu0 %v3287
        %3468 = vmatpush2.bf16.msra.mxu0 %v3286
        %3469 = vmatprep.mubr.bf16.mxu0 %v2953
        %3470 = vmatmul.mubr.bf16.gmra.mxu0 %v2941
        %v3471 = vpop.f32.mrf.mxu0
        %v3472 = vadd.f32 %v3401, %v3471
        %v3473 = vpop.f32.mrf.mxu0
        %v3474 = vadd.f32 %v3403, %v3473
        %v3475 = vpop.f32.mrf.mxu0
        %v3476 = vadd.f32 %v3405, %v3475
        %v3477 = vpop.f32.mrf.mxu0
        %v3478 = vadd.f32 %v3407, %v3477
        %3479 = vmatprep.mubr.bf16.mxu0 %v2985
        %3480 = vmatmul.mubr.bf16.gmra.mxu0 %v2977
        %v3481 = vpop.f32.mrf.mxu0
        %v3482 = vadd.f32 %v3411, %v3481
        %v3483 = vpop.f32.mrf.mxu0
        %v3484 = vadd.f32 %v3413, %v3483
        %v3485 = vpop.f32.mrf.mxu0
        %v3486 = vadd.f32 %v3415, %v3485
        %v3487 = vpop.f32.mrf.mxu0
        %v3488 = vadd.f32 %v3417, %v3487
        %3489 = vmatprep.mubr.bf16.mxu0 %v3017
        %3490 = vmatmul.mubr.bf16.gmra.mxu0 %v3009
        %v3491 = vpop.f32.mrf.mxu0
        %v3492 = vadd.f32 %v3421, %v3491
        %v3493 = vpop.f32.mrf.mxu0
        %v3494 = vadd.f32 %v3423, %v3493
        %v3495 = vpop.f32.mrf.mxu0
        %v3496 = vadd.f32 %v3425, %v3495
        %v3497 = vpop.f32.mrf.mxu0
        %v3498 = vadd.f32 %v3427, %v3497
        %3499 = vmatprep.mubr.bf16.mxu0 %v3029
        %3500 = vmatmul.mubr.bf16.gmra.mxu0 %v3026
        %v3501 = vpop.f32.mrf.mxu0
        %v3502 = vadd.f32 %v3431, %v3501
        %v3503 = vpop.f32.mrf.mxu0
        %v3504 = vadd.f32 %v3433, %v3503
        %v3505 = vpop.f32.mrf.mxu0
        %v3506 = vpop.f32.mrf.mxu0
        %3507 = vdwg.mxu0
        %v3508 = vld [vmem:[%s157] sm:$0xff]
        %v3509 = vld [vmem:[%s157 + $0x8] sm:$0xff]
        %v3510 = vld [vmem:[%s157 + $0x10] sm:$0xff]
        %v3511 = vld [vmem:[%s157 + $0x18] sm:$0xff]
        %v3512 = vld [vmem:[%s157 + $0x20] sm:$0xff]
        %v3513 = vld [vmem:[%s157 + $0x28] sm:$0xff]
        %v3514 = vld [vmem:[%s157 + $0x30] sm:$0xff]
        %v3515 = vld [vmem:[%s157 + $0x38] sm:$0xff]
        %v3516 = vld [vmem:[%s157 + $0x40] sm:$0xff]
        %v3517 = vld [vmem:[%s157 + $0x48] sm:$0xff]
        %v3518 = vld [vmem:[%s157 + $0x50] sm:$0xff]
        %v3519 = vld [vmem:[%s157 + $0x58] sm:$0xff]
        %v3520 = vld [vmem:[%s157 + $0x60] sm:$0xff]
        %v3521 = vld [vmem:[%s157 + $0x68] sm:$0xff]
        %v3522 = vadd.f32 %v3508, %v3472
        %v3523 = vadd.f32 %v3509, %v3474
        %v3524 = vadd.f32 %v3510, %v3476
        %v3525 = vadd.f32 %v3511, %v3478
        %v3526 = vadd.f32 %v3512, %v3482
        %v3527 = vadd.f32 %v3513, %v3484
        %v3528 = vadd.f32 %v3514, %v3486
        %v3529 = vadd.f32 %v3515, %v3488
        %v3530 = vadd.f32 %v3516, %v3492
        %v3531 = vadd.f32 %v3517, %v3494
        %v3532 = vadd.f32 %v3518, %v3496
        %v3533 = vadd.f32 %v3519, %v3498
        %v3534 = vadd.f32 %v3520, %v3502
        %v3535 = vadd.f32 %v3521, %v3504
        %3536 = vst [vmem:[%s157] sm:$0xff] %v3522
        %3537 = vst [vmem:[%s157 + $0x8] sm:$0xff] %v3523
        %3538 = vst [vmem:[%s157 + $0x10] sm:$0xff] %v3524
        %3539 = vst [vmem:[%s157 + $0x18] sm:$0xff] %v3525
        %3540 = vst [vmem:[%s157 + $0x20] sm:$0xff] %v3526
        %3541 = vst [vmem:[%s157 + $0x28] sm:$0xff] %v3527
        %3542 = vst [vmem:[%s157 + $0x30] sm:$0xff] %v3528
        %3543 = vst [vmem:[%s157 + $0x38] sm:$0xff] %v3529
        %3544 = vst [vmem:[%s157 + $0x40] sm:$0xff] %v3530
        %3545 = vst [vmem:[%s157 + $0x48] sm:$0xff] %v3531
        %3546 = vst [vmem:[%s157 + $0x50] sm:$0xff] %v3532
        %3547 = vst [vmem:[%s157 + $0x58] sm:$0xff] %v3533
        %3548 = vst [vmem:[%s157 + $0x60] sm:$0xff] %v3534
        %3549 = vst [vmem:[%s157 + $0x68] sm:$0xff] %v3535
        %v3550 = vld [vmem:[%s0 + $0x20] sm:$0xfc]
        %v3551 = vld [vmem:[%s0 + $0x28] sm:$0xfc]
        %v3552 = vld [vmem:[%s0 + $0x30] sm:$0xfc]
        %v3553 = vld [vmem:[%s0 + $0x38] sm:$0xfc]
        %v3554 = vld [vmem:[%s0 + $0x40] sm:$0xff]
        %v3555 = vld [vmem:[%s0 + $0x48] sm:$0xff]
        %v3556 = vld [vmem:[%s0 + $0x50] sm:$0xff]
        %v3557 = vld [vmem:[%s0 + $0x58] sm:$0xff]
        %v3558 = vld [vmem:[%s0 + $0x60] sm:$0xff]
        %v3559 = vld [vmem:[%s0 + $0x68] sm:$0xff]
        %v3560 = vld [vmem:[%s0 + $0x70] sm:$0xff]
        %v3561 = vld [vmem:[%s0 + $0x78] sm:$0xff]
        %v3562 = vld [vmem:[%s0 + $0x80] sm:$0xff]
        %v3563 = vld [vmem:[%s0 + $0x88] sm:$0xff]
        %v3564 = vld [vmem:[%s0 + $0x90] sm:$0xff]
        %v3565 = vld [vmem:[%s0 + $0x98] sm:$0xff]
        %v3566 = vld [vmem:[%s0 + $0xa0] sm:$0xff]
        %v3567 = vld [vmem:[%s0 + $0xa8] sm:$0xff]
        %v3568 = vld [vmem:[%s0 + $0xb0] sm:$0xff]
        %v3569 = vld [vmem:[%s0 + $0xb8] sm:$0xff]
        %v3570 = vld [vmem:[%s0 + $0xc0] sm:$0xff]
        %v3571 = vld [vmem:[%s0 + $0xc8] sm:$0xff]
        %v3572 = vld [vmem:[%s0 + $0xd0] sm:$0xff]
        %v3573 = vld [vmem:[%s0 + $0xd8] sm:$0xff]
        %v3574 = vld [vmem:[%s0 + $0xe0] sm:$0xff]
        %v3575 = vld [vmem:[%s0 + $0xe8] sm:$0xff]
        %v3576 = vld [vmem:[%s0 + $0xf0] sm:$0xff]
        %v3577 = vld [vmem:[%s0 + $0xf8] sm:$0xff]
        %v3578 = vld [vmem:[%s0 + $0x100] sm:$0x3]
        %v3579 = vld [vmem:[%s0 + $0x108] sm:$0x3]
        %v3580 = vld [vmem:[%s0 + $0x110] sm:$0x3]
        %v3581 = vld [vmem:[%s0 + $0x118] sm:$0x3]
        %v3582 = vpack.c.bf16 %v3554, %v3550
        %v3583 = vpack.c.bf16 %v3555, %v3551
        %v3584 = vpack.c.bf16 %v3556, %v3552
        %v3585 = vpack.c.bf16 %v3557, %v3553
        %v3586 = vpack.c.bf16 %v3562, %v3558
        %v3587 = vpack.c.bf16 %v3563, %v3559
        %v3588 = vpack.c.bf16 %v3564, %v3560
        %v3589 = vpack.c.bf16 %v3565, %v3561
        %v3590 = vpack.c.bf16 %v3570, %v3566
        %v3591 = vpack.c.bf16 %v3571, %v3567
        %v3592 = vpack.c.bf16 %v3572, %v3568
        %v3593 = vpack.c.bf16 %v3573, %v3569
        %v3594 = vpack.c.bf16 %v3578, %v3574
        %v3595 = vpack.c.bf16 %v3579, %v3575
        %v3596 = vpack.c.bf16 %v3580, %v3576
        %v3597 = vpack.c.bf16 %v3581, %v3577
        %s3598 = scalar_lea.vmem %s138, 2560 [#allocation2]
        %v3599 = vld [vmem:[%s3598] sm:$0xff]
        %v3600 = vld [vmem:[%s3598 + $0x8] sm:$0xff]
        %v3601 = vld [vmem:[%s3598 + $0x10] sm:$0xff]
        %v3602 = vld [vmem:[%s3598 + $0x18] sm:$0xff]
        %v3603 = vld [vmem:[%s3598 + $0x20] sm:$0xff]
        %v3604 = vld [vmem:[%s3598 + $0x28] sm:$0xff]
        %v3605 = vld [vmem:[%s3598 + $0x30] sm:$0xff]
        %v3606 = vld [vmem:[%s3598 + $0x38] sm:$0xff]
        %v3607 = vld [vmem:[%s3598 + $0x40] sm:$0xff]
        %v3608 = vld [vmem:[%s3598 + $0x48] sm:$0xff]
        %v3609 = vld [vmem:[%s3598 + $0x50] sm:$0xff]
        %v3610 = vld [vmem:[%s3598 + $0x58] sm:$0xff]
        %v3611 = vld [vmem:[%s3598 + $0x60] sm:$0xff]
        %v3612 = vld [vmem:[%s3598 + $0x68] sm:$0xff]
        %v3613 = vld [vmem:[%s3598 + $0x70] sm:$0xff]
        %v3614 = vld [vmem:[%s3598 + $0x78] sm:$0xff]
        %v3615 = vld [vmem:[%s3598 + $0x80] sm:$0xff]
        %v3616 = vld [vmem:[%s3598 + $0x88] sm:$0xff]
        %v3617 = vld [vmem:[%s3598 + $0x90] sm:$0xff]
        %v3618 = vld [vmem:[%s3598 + $0x98] sm:$0xff]
        %v3619 = vld [vmem:[%s3598 + $0xa0] sm:$0xff]
        %v3620 = vld [vmem:[%s3598 + $0xa8] sm:$0xff]
        %v3621 = vld [vmem:[%s3598 + $0xb0] sm:$0xff]
        %v3622 = vld [vmem:[%s3598 + $0xb8] sm:$0xff]
        %v3623 = vld [vmem:[%s3598 + $0xc0] sm:$0xff]
        %v3624 = vld [vmem:[%s3598 + $0xc8] sm:$0xff]
        %v3625 = vld [vmem:[%s3598 + $0xd0] sm:$0xff]
        %v3626 = vld [vmem:[%s3598 + $0xd8] sm:$0xff]
        %v3627 = vld [vmem:[%s3598 + $0xe0] sm:$0xff]
        %v3628 = vld [vmem:[%s3598 + $0xe8] sm:$0xff]
        %v3629 = vld [vmem:[%s3598 + $0xf0] sm:$0xff]
        %v3630 = vld [vmem:[%s3598 + $0xf8] sm:$0xff]
        %v3631 = vld [vmem:[%s3598 + $0x100] sm:$0xff]
        %v3632 = vld [vmem:[%s3598 + $0x108] sm:$0xff]
        %v3633 = vld [vmem:[%s3598 + $0x110] sm:$0xff]
        %v3634 = vld [vmem:[%s3598 + $0x118] sm:$0xff]
        %v3635 = vld [vmem:[%s3598 + $0x120] sm:$0xff]
        %v3636 = vld [vmem:[%s3598 + $0x128] sm:$0xff]
        %v3637 = vld [vmem:[%s3598 + $0x130] sm:$0xff]
        %v3638 = vld [vmem:[%s3598 + $0x138] sm:$0xff]
        %v3639 = vld [vmem:[%s3598 + $0x140] sm:$0xff]
        %v3640 = vld [vmem:[%s3598 + $0x148] sm:$0xff]
        %v3641 = vld [vmem:[%s3598 + $0x150] sm:$0xff]
        %v3642 = vld [vmem:[%s3598 + $0x158] sm:$0xff]
        %v3643 = vld [vmem:[%s3598 + $0x160] sm:$0xff]
        %v3644 = vld [vmem:[%s3598 + $0x168] sm:$0xff]
        %v3645 = vld [vmem:[%s3598 + $0x170] sm:$0xff]
        %v3646 = vld [vmem:[%s3598 + $0x178] sm:$0xff]
        %v3647 = vld [vmem:[%s3598 + $0x180] sm:$0xff]
        %v3648 = vld [vmem:[%s3598 + $0x188] sm:$0xff]
        %v3649 = vld [vmem:[%s3598 + $0x190] sm:$0xff]
        %v3650 = vld [vmem:[%s3598 + $0x198] sm:$0xff]
        %v3651 = vld [vmem:[%s3598 + $0x1a0] sm:$0xff]
        %v3652 = vld [vmem:[%s3598 + $0x1a8] sm:$0xff]
        %v3653 = vld [vmem:[%s3598 + $0x1b0] sm:$0xff]
        %v3654 = vld [vmem:[%s3598 + $0x1b8] sm:$0xff]
        %v3655 = vld [vmem:[%s3598 + $0x1c0] sm:$0xff]
        %v3656 = vld [vmem:[%s3598 + $0x1c8] sm:$0xff]
        %v3657 = vld [vmem:[%s3598 + $0x1d0] sm:$0xff]
        %v3658 = vld [vmem:[%s3598 + $0x1d8] sm:$0xff]
        %v3659 = vld [vmem:[%s3598 + $0x1e0] sm:$0xff]
        %v3660 = vld [vmem:[%s3598 + $0x1e8] sm:$0xff]
        %v3661 = vld [vmem:[%s3598 + $0x1f0] sm:$0xff]
        %v3662 = vld [vmem:[%s3598 + $0x1f8] sm:$0xff]
        %v3679 = vrot.slane %v3582, 1
        %v3680 = vrot.slane %v3586, 1
        %v3681 = vsel %vm1631, %v3679, %v3680
        %v3682 = vrot.slane %v3583, 1
        %v3683 = vrot.slane %v3587, 1
        %v3684 = vsel %vm1631, %v3682, %v3683
        %v3685 = vrot.slane %v3584, 1
        %v3686 = vrot.slane %v3588, 1
        %v3687 = vsel %vm1631, %v3685, %v3686
        %v3688 = vrot.slane %v3585, 1
        %v3689 = vrot.slane %v3589, 1
        %v3690 = vsel %vm1631, %v3688, %v3689
        %v3691 = vrot.slane %v3590, 1
        %v3692 = vsel %vm1631, %v3680, %v3691
        %v3693 = vrot.slane %v3591, 1
        %v3694 = vsel %vm1631, %v3683, %v3693
        %v3695 = vrot.slane %v3592, 1
        %v3696 = vsel %vm1631, %v3686, %v3695
        %v3697 = vrot.slane %v3593, 1
        %v3698 = vsel %vm1631, %v3689, %v3697
        %v3699 = vrot.slane %v3594, 1
        %v3700 = vsel %vm1631, %v3691, %v3699
        %v3701 = vrot.slane %v3595, 1
        %v3702 = vsel %vm1631, %v3693, %v3701
        %v3703 = vrot.slane %v3596, 1
        %v3704 = vsel %vm1631, %v3695, %v3703
        %v3705 = vrot.slane %v3597, 1
        %v3706 = vsel %vm1631, %v3697, %v3705
        %v3787 = vunpack.c.l.b16 %v3599
        %v3788 = vunpack.c.h.b16 %v3599
        %v3789 = vunpack.c.l.b16 %v3600
        %v3790 = vunpack.c.h.b16 %v3600
        %v3791 = vunpack.c.l.b16 %v3601
        %v3792 = vunpack.c.h.b16 %v3601
        %v3793 = vunpack.c.l.b16 %v3602
        %v3794 = vunpack.c.h.b16 %v3602
        %v3795 = vunpack.c.l.b16 %v3603
        %v3796 = vunpack.c.h.b16 %v3603
        %v3797 = vunpack.c.l.b16 %v3604
        %v3798 = vunpack.c.h.b16 %v3604
        %v3799 = vunpack.c.l.b16 %v3605
        %v3800 = vunpack.c.h.b16 %v3605
        %v3801 = vunpack.c.l.b16 %v3606
        %v3802 = vunpack.c.h.b16 %v3606
        %v3803 = vunpack.c.l.b16 %v3607
        %v3804 = vunpack.c.h.b16 %v3607
        %v3805 = vunpack.c.l.b16 %v3608
        %v3806 = vunpack.c.h.b16 %v3608
        %v3807 = vunpack.c.l.b16 %v3609
        %v3808 = vunpack.c.h.b16 %v3609
        %v3809 = vunpack.c.l.b16 %v3610
        %v3810 = vunpack.c.h.b16 %v3610
        %v3811 = vunpack.c.l.b16 %v3611
        %v3812 = vunpack.c.h.b16 %v3611
        %v3813 = vunpack.c.l.b16 %v3612
        %v3814 = vunpack.c.h.b16 %v3612
        %v3815 = vunpack.c.l.b16 %v3613
        %v3816 = vunpack.c.h.b16 %v3613
        %v3817 = vunpack.c.l.b16 %v3614
        %v3818 = vunpack.c.h.b16 %v3614
        %v3819 = vunpack.c.l.b16 %v3615
        %v3820 = vunpack.c.h.b16 %v3615
        %v3821 = vunpack.c.l.b16 %v3616
        %v3822 = vunpack.c.h.b16 %v3616
        %v3823 = vunpack.c.l.b16 %v3617
        %v3824 = vunpack.c.h.b16 %v3617
        %v3825 = vunpack.c.l.b16 %v3618
        %v3826 = vunpack.c.h.b16 %v3618
        %v3827 = vunpack.c.l.b16 %v3619
        %v3828 = vunpack.c.h.b16 %v3619
        %v3829 = vunpack.c.l.b16 %v3620
        %v3830 = vunpack.c.h.b16 %v3620
        %v3831 = vunpack.c.l.b16 %v3621
        %v3832 = vunpack.c.h.b16 %v3621
        %v3833 = vunpack.c.l.b16 %v3622
        %v3834 = vunpack.c.h.b16 %v3622
        %v3835 = vunpack.c.l.b16 %v3623
        %v3836 = vunpack.c.h.b16 %v3623
        %v3837 = vunpack.c.l.b16 %v3624
        %v3838 = vunpack.c.h.b16 %v3624
        %v3839 = vunpack.c.l.b16 %v3625
        %v3840 = vunpack.c.h.b16 %v3625
        %v3841 = vunpack.c.l.b16 %v3626
        %v3842 = vunpack.c.h.b16 %v3626
        %v3843 = vunpack.c.l.b16 %v3627
        %v3844 = vunpack.c.h.b16 %v3627
        %v3845 = vunpack.c.l.b16 %v3628
        %v3846 = vunpack.c.h.b16 %v3628
        %v3847 = vunpack.c.l.b16 %v3629
        %v3848 = vunpack.c.h.b16 %v3629
        %v3849 = vunpack.c.l.b16 %v3630
        %v3850 = vunpack.c.h.b16 %v3630
        %v3851 = vunpack.c.l.b16 %v3631
        %v3852 = vunpack.c.h.b16 %v3631
        %v3853 = vunpack.c.l.b16 %v3632
        %v3854 = vunpack.c.h.b16 %v3632
        %v3855 = vunpack.c.l.b16 %v3633
        %v3856 = vunpack.c.h.b16 %v3633
        %v3857 = vunpack.c.l.b16 %v3634
        %v3858 = vunpack.c.h.b16 %v3634
        %v3859 = vunpack.c.l.b16 %v3635
        %v3860 = vunpack.c.h.b16 %v3635
        %v3861 = vunpack.c.l.b16 %v3636
        %v3862 = vunpack.c.h.b16 %v3636
        %v3863 = vunpack.c.l.b16 %v3637
        %v3864 = vunpack.c.h.b16 %v3637
        %v3865 = vunpack.c.l.b16 %v3638
        %v3866 = vunpack.c.h.b16 %v3638
        %v3867 = vunpack.c.l.b16 %v3639
        %v3868 = vunpack.c.h.b16 %v3639
        %v3869 = vunpack.c.l.b16 %v3640
        %v3870 = vunpack.c.h.b16 %v3640
        %v3871 = vunpack.c.l.b16 %v3641
        %v3872 = vunpack.c.h.b16 %v3641
        %v3873 = vunpack.c.l.b16 %v3642
        %v3874 = vunpack.c.h.b16 %v3642
        %v3875 = vunpack.c.l.b16 %v3643
        %v3876 = vunpack.c.h.b16 %v3643
        %v3877 = vunpack.c.l.b16 %v3644
        %v3878 = vunpack.c.h.b16 %v3644
        %v3879 = vunpack.c.l.b16 %v3645
        %v3880 = vunpack.c.h.b16 %v3645
        %v3881 = vunpack.c.l.b16 %v3646
        %v3882 = vunpack.c.h.b16 %v3646
        %v3883 = vunpack.c.l.b16 %v3647
        %v3884 = vunpack.c.h.b16 %v3647
        %v3885 = vunpack.c.l.b16 %v3648
        %v3886 = vunpack.c.h.b16 %v3648
        %v3887 = vunpack.c.l.b16 %v3649
        %v3888 = vunpack.c.h.b16 %v3649
        %v3889 = vunpack.c.l.b16 %v3650
        %v3890 = vunpack.c.h.b16 %v3650
        %v3891 = vunpack.c.l.b16 %v3651
        %v3892 = vunpack.c.h.b16 %v3651
        %v3893 = vunpack.c.l.b16 %v3652
        %v3894 = vunpack.c.h.b16 %v3652
        %v3895 = vunpack.c.l.b16 %v3653
        %v3896 = vunpack.c.h.b16 %v3653
        %v3897 = vunpack.c.l.b16 %v3654
        %v3898 = vunpack.c.h.b16 %v3654
        %v3899 = vunpack.c.l.b16 %v3655
        %v3900 = vunpack.c.h.b16 %v3655
        %v3901 = vunpack.c.l.b16 %v3656
        %v3902 = vunpack.c.h.b16 %v3656
        %v3903 = vunpack.c.l.b16 %v3657
        %v3904 = vunpack.c.h.b16 %v3657
        %v3905 = vunpack.c.l.b16 %v3658
        %v3906 = vunpack.c.h.b16 %v3658
        %v3907 = vunpack.c.l.b16 %v3659
        %v3908 = vunpack.c.h.b16 %v3659
        %v3909 = vunpack.c.l.b16 %v3660
        %v3910 = vunpack.c.h.b16 %v3660
        %v3911 = vunpack.c.l.b16 %v3661
        %v3912 = vunpack.c.h.b16 %v3661
        %v3913 = vunpack.c.l.b16 %v3662
        %v3914 = vunpack.c.h.b16 %v3662
        %v3915 = vpack.c.b16 %v3789, %v3787
        %v3916 = vpack.c.b16 %v3790, %v3788
        %v3917 = vpack.c.b16 %v3793, %v3791
        %v3918 = vpack.c.b16 %v3794, %v3792
        %v3919 = vpack.c.b16 %v3797, %v3795
        %v3920 = vpack.c.b16 %v3798, %v3796
        %v3921 = vpack.c.b16 %v3801, %v3799
        %v3922 = vpack.c.b16 %v3802, %v3800
        %v3923 = vpack.c.b16 %v3805, %v3803
        %v3924 = vpack.c.b16 %v3806, %v3804
        %v3925 = vpack.c.b16 %v3809, %v3807
        %v3926 = vpack.c.b16 %v3810, %v3808
        %v3927 = vpack.c.b16 %v3813, %v3811
        %v3928 = vpack.c.b16 %v3814, %v3812
        %v3929 = vpack.c.b16 %v3817, %v3815
        %v3930 = vpack.c.b16 %v3818, %v3816
        %v3931 = vpack.c.b16 %v3821, %v3819
        %v3932 = vpack.c.b16 %v3822, %v3820
        %v3933 = vpack.c.b16 %v3825, %v3823
        %v3934 = vpack.c.b16 %v3826, %v3824
        %v3935 = vpack.c.b16 %v3829, %v3827
        %v3936 = vpack.c.b16 %v3830, %v3828
        %v3937 = vpack.c.b16 %v3833, %v3831
        %v3938 = vpack.c.b16 %v3834, %v3832
        %v3939 = vpack.c.b16 %v3837, %v3835
        %v3940 = vpack.c.b16 %v3838, %v3836
        %v3941 = vpack.c.b16 %v3841, %v3839
        %v3942 = vpack.c.b16 %v3842, %v3840
        %v3943 = vpack.c.b16 %v3845, %v3843
        %v3944 = vpack.c.b16 %v3846, %v3844
        %v3945 = vpack.c.b16 %v3849, %v3847
        %v3946 = vpack.c.b16 %v3850, %v3848
        %v3947 = vpack.c.b16 %v3853, %v3851
        %v3948 = vpack.c.b16 %v3854, %v3852
        %v3949 = vpack.c.b16 %v3857, %v3855
        %v3950 = vpack.c.b16 %v3858, %v3856
        %v3951 = vpack.c.b16 %v3861, %v3859
        %v3952 = vpack.c.b16 %v3862, %v3860
        %v3953 = vpack.c.b16 %v3865, %v3863
        %v3954 = vpack.c.b16 %v3866, %v3864
        %v3955 = vpack.c.b16 %v3869, %v3867
        %v3956 = vpack.c.b16 %v3870, %v3868
        %v3957 = vpack.c.b16 %v3873, %v3871
        %v3958 = vpack.c.b16 %v3874, %v3872
        %v3959 = vpack.c.b16 %v3877, %v3875
        %v3960 = vpack.c.b16 %v3878, %v3876
        %v3961 = vpack.c.b16 %v3881, %v3879
        %v3962 = vpack.c.b16 %v3882, %v3880
        %v3963 = vpack.c.b16 %v3885, %v3883
        %v3964 = vpack.c.b16 %v3886, %v3884
        %v3965 = vpack.c.b16 %v3889, %v3887
        %v3966 = vpack.c.b16 %v3890, %v3888
        %v3967 = vpack.c.b16 %v3893, %v3891
        %v3968 = vpack.c.b16 %v3894, %v3892
        %v3969 = vpack.c.b16 %v3897, %v3895
        %v3970 = vpack.c.b16 %v3898, %v3896
        %v3971 = vpack.c.b16 %v3901, %v3899
        %v3972 = vpack.c.b16 %v3902, %v3900
        %v3973 = vpack.c.b16 %v3905, %v3903
        %v3974 = vpack.c.b16 %v3906, %v3904
        %v3975 = vpack.c.b16 %v3909, %v3907
        %v3976 = vpack.c.b16 %v3910, %v3908
        %v3977 = vpack.c.b16 %v3913, %v3911
        %v3978 = vpack.c.b16 %v3914, %v3912
        %4043 = vmatprep.subr.bf16.mxu0 %v3930
        %4044 = vmatpush1.bf16.msra.mxu0 %v3929
        %4045 = vmatprep.subr.bf16.mxu0 %v3928
        %4046 = vmatpush1.bf16.msra.mxu0 %v3927
        %4047 = vmatprep.subr.bf16.mxu0 %v3926
        %4048 = vmatpush1.bf16.msra.mxu0 %v3925
        %4049 = vmatprep.subr.bf16.mxu0 %v3924
        %4050 = vmatpush1.bf16.msra.mxu0 %v3923
        %4051 = vmatprep.subr.bf16.mxu0 %v3922
        %4052 = vmatpush1.bf16.msra.mxu0 %v3921
        %4053 = vmatprep.subr.bf16.mxu0 %v3920
        %4054 = vmatpush1.bf16.msra.mxu0 %v3919
        %4055 = vmatprep.subr.bf16.mxu0 %v3918
        %4056 = vmatpush1.bf16.msra.mxu0 %v3917
        %4057 = vmatprep.subr.bf16.mxu0 %v3916
        %4058 = vmatpush1.bf16.msra.mxu0 %v3915
        %4059 = vmatprep.subr.bf16.mxu0 %v3946
        %4060 = vmatpush2.bf16.msra.mxu0 %v3945
        %4061 = vmatprep.subr.bf16.mxu0 %v3944
        %4062 = vmatpush2.bf16.msra.mxu0 %v3943
        %4063 = vmatprep.subr.bf16.mxu0 %v3942
        %4064 = vmatpush2.bf16.msra.mxu0 %v3941
        %4065 = vmatprep.subr.bf16.mxu0 %v3940
        %4066 = vmatpush2.bf16.msra.mxu0 %v3939
        %4067 = vmatprep.subr.bf16.mxu0 %v3938
        %4068 = vmatpush2.bf16.msra.mxu0 %v3937
        %4069 = vmatprep.subr.bf16.mxu0 %v3936
        %4070 = vmatpush2.bf16.msra.mxu0 %v3935
        %4071 = vmatprep.subr.bf16.mxu0 %v3934
        %4072 = vmatpush2.bf16.msra.mxu0 %v3933
        %4073 = vmatprep.subr.bf16.mxu0 %v3932
        %4074 = vmatpush2.bf16.msra.mxu0 %v3931
        %4075 = vmatprep.mubr.bf16.mxu0 %v3684
        %4076 = vmatmul.mubr.bf16.gmra.mxu0 %v3681
        %v4077 = vpop.f32.mrf.mxu0
        %v4078 = vadd.f32 0.0, %v4077
        %v4079 = vpop.f32.mrf.mxu0
        %v4080 = vadd.f32 0.0, %v4079
        %v4081 = vpop.f32.mrf.mxu0
        %v4082 = vadd.f32 0.0, %v4081
        %v4083 = vpop.f32.mrf.mxu0
        %v4084 = vadd.f32 0.0, %v4083
        %4085 = vmatprep.mubr.bf16.mxu0 %v3694
        %4086 = vmatmul.mubr.bf16.gmra.mxu0 %v3692
        %v4087 = vpop.f32.mrf.mxu0
        %v4088 = vadd.f32 0.0, %v4087
        %v4089 = vpop.f32.mrf.mxu0
        %v4090 = vadd.f32 0.0, %v4089
        %v4091 = vpop.f32.mrf.mxu0
        %v4092 = vadd.f32 0.0, %v4091
        %v4093 = vpop.f32.mrf.mxu0
        %v4094 = vadd.f32 0.0, %v4093
        %4095 = vmatprep.mubr.bf16.mxu0 %v3702
        %4096 = vmatmul.mubr.bf16.gmra.mxu0 %v3700
        %v4097 = vpop.f32.mrf.mxu0
        %v4098 = vadd.f32 0.0, %v4097
        %v4099 = vpop.f32.mrf.mxu0
        %v4100 = vadd.f32 0.0, %v4099
        %v4101 = vpop.f32.mrf.mxu0
        %v4102 = vadd.f32 0.0, %v4101
        %v4103 = vpop.f32.mrf.mxu0
        %v4104 = vadd.f32 0.0, %v4103
        %4105 = vmatprep.mubr.bf16.mxu0 %v3701
        %4106 = vmatmul.mubr.bf16.gmra.mxu0 %v3699
        %v4107 = vpop.f32.mrf.mxu0
        %v4108 = vadd.f32 0.0, %v4107
        %v4109 = vpop.f32.mrf.mxu0
        %v4110 = vadd.f32 0.0, %v4109
        %v4111 = vpop.f32.mrf.mxu0
        %v4112 = vpop.f32.mrf.mxu0
        %4113 = vdwg.mxu0
        %4114 = vmatprep.subr.bf16.mxu0 %v3962
        %4115 = vmatpush1.bf16.msra.mxu0 %v3961
        %4116 = vmatprep.subr.bf16.mxu0 %v3960
        %4117 = vmatpush1.bf16.msra.mxu0 %v3959
        %4118 = vmatprep.subr.bf16.mxu0 %v3958
        %4119 = vmatpush1.bf16.msra.mxu0 %v3957
        %4120 = vmatprep.subr.bf16.mxu0 %v3956
        %4121 = vmatpush1.bf16.msra.mxu0 %v3955
        %4122 = vmatprep.subr.bf16.mxu0 %v3954
        %4123 = vmatpush1.bf16.msra.mxu0 %v3953
        %4124 = vmatprep.subr.bf16.mxu0 %v3952
        %4125 = vmatpush1.bf16.msra.mxu0 %v3951
        %4126 = vmatprep.subr.bf16.mxu0 %v3950
        %4127 = vmatpush1.bf16.msra.mxu0 %v3949
        %4128 = vmatprep.subr.bf16.mxu0 %v3948
        %4129 = vmatpush1.bf16.msra.mxu0 %v3947
        %4130 = vmatprep.subr.bf16.mxu0 %v3978
        %4131 = vmatpush2.bf16.msra.mxu0 %v3977
        %4132 = vmatprep.subr.bf16.mxu0 %v3976
        %4133 = vmatpush2.bf16.msra.mxu0 %v3975
        %4134 = vmatprep.subr.bf16.mxu0 %v3974
        %4135 = vmatpush2.bf16.msra.mxu0 %v3973
        %4136 = vmatprep.subr.bf16.mxu0 %v3972
        %4137 = vmatpush2.bf16.msra.mxu0 %v3971
        %4138 = vmatprep.subr.bf16.mxu0 %v3970
        %4139 = vmatpush2.bf16.msra.mxu0 %v3969
        %4140 = vmatprep.subr.bf16.mxu0 %v3968
        %4141 = vmatpush2.bf16.msra.mxu0 %v3967
        %4142 = vmatprep.subr.bf16.mxu0 %v3966
        %4143 = vmatpush2.bf16.msra.mxu0 %v3965
        %4144 = vmatprep.subr.bf16.mxu0 %v3964
        %4145 = vmatpush2.bf16.msra.mxu0 %v3963
        %4146 = vmatprep.mubr.bf16.mxu0 %v3690
        %4147 = vmatmul.mubr.bf16.gmra.mxu0 %v3687
        %v4148 = vpop.f32.mrf.mxu0
        %v4149 = vadd.f32 %v4078, %v4148
        %v4150 = vpop.f32.mrf.mxu0
        %v4151 = vadd.f32 %v4080, %v4150
        %v4152 = vpop.f32.mrf.mxu0
        %v4153 = vadd.f32 %v4082, %v4152
        %v4154 = vpop.f32.mrf.mxu0
        %v4155 = vadd.f32 %v4084, %v4154
        %4156 = vmatprep.mubr.bf16.mxu0 %v3698
        %4157 = vmatmul.mubr.bf16.gmra.mxu0 %v3696
        %v4158 = vpop.f32.mrf.mxu0
        %v4159 = vadd.f32 %v4088, %v4158
        %v4160 = vpop.f32.mrf.mxu0
        %v4161 = vadd.f32 %v4090, %v4160
        %v4162 = vpop.f32.mrf.mxu0
        %v4163 = vadd.f32 %v4092, %v4162
        %v4164 = vpop.f32.mrf.mxu0
        %v4165 = vadd.f32 %v4094, %v4164
        %4166 = vmatprep.mubr.bf16.mxu0 %v3706
        %4167 = vmatmul.mubr.bf16.gmra.mxu0 %v3704
        %v4168 = vpop.f32.mrf.mxu0
        %v4169 = vadd.f32 %v4098, %v4168
        %v4170 = vpop.f32.mrf.mxu0
        %v4171 = vadd.f32 %v4100, %v4170
        %v4172 = vpop.f32.mrf.mxu0
        %v4173 = vadd.f32 %v4102, %v4172
        %v4174 = vpop.f32.mrf.mxu0
        %v4175 = vadd.f32 %v4104, %v4174
        %4176 = vmatprep.mubr.bf16.mxu0 %v3705
        %4177 = vmatmul.mubr.bf16.gmra.mxu0 %v3703
        %v4178 = vpop.f32.mrf.mxu0
        %v4179 = vadd.f32 %v4108, %v4178
        %v4180 = vpop.f32.mrf.mxu0
        %v4181 = vadd.f32 %v4110, %v4180
        %v4182 = vpop.f32.mrf.mxu0
        %v4183 = vpop.f32.mrf.mxu0
        %4184 = vdwg.mxu0
        %v4185 = vld [vmem:[%s157] sm:$0xff]
        %v4186 = vld [vmem:[%s157 + $0x8] sm:$0xff]
        %v4187 = vld [vmem:[%s157 + $0x10] sm:$0xff]
        %v4188 = vld [vmem:[%s157 + $0x18] sm:$0xff]
        %v4189 = vld [vmem:[%s157 + $0x20] sm:$0xff]
        %v4190 = vld [vmem:[%s157 + $0x28] sm:$0xff]
        %v4191 = vld [vmem:[%s157 + $0x30] sm:$0xff]
        %v4192 = vld [vmem:[%s157 + $0x38] sm:$0xff]
        %v4193 = vld [vmem:[%s157 + $0x40] sm:$0xff]
        %v4194 = vld [vmem:[%s157 + $0x48] sm:$0xff]
        %v4195 = vld [vmem:[%s157 + $0x50] sm:$0xff]
        %v4196 = vld [vmem:[%s157 + $0x58] sm:$0xff]
        %v4197 = vld [vmem:[%s157 + $0x60] sm:$0xff]
        %v4198 = vld [vmem:[%s157 + $0x68] sm:$0xff]
        %v4199 = vadd.f32 %v4185, %v4149
        %v4200 = vadd.f32 %v4186, %v4151
        %v4201 = vadd.f32 %v4187, %v4153
        %v4202 = vadd.f32 %v4188, %v4155
        %v4203 = vadd.f32 %v4189, %v4159
        %v4204 = vadd.f32 %v4190, %v4161
        %v4205 = vadd.f32 %v4191, %v4163
        %v4206 = vadd.f32 %v4192, %v4165
        %v4207 = vadd.f32 %v4193, %v4169
        %v4208 = vadd.f32 %v4194, %v4171
        %v4209 = vadd.f32 %v4195, %v4173
        %v4210 = vadd.f32 %v4196, %v4175
        %v4211 = vadd.f32 %v4197, %v4179
        %v4212 = vadd.f32 %v4198, %v4181
        %4213 = vst [vmem:[%s157] sm:$0xff] %v4199
        %4214 = vst [vmem:[%s157 + $0x8] sm:$0xff] %v4200
        %4215 = vst [vmem:[%s157 + $0x10] sm:$0xff] %v4201
        %4216 = vst [vmem:[%s157 + $0x18] sm:$0xff] %v4202
        %4217 = vst [vmem:[%s157 + $0x20] sm:$0xff] %v4203
        %4218 = vst [vmem:[%s157 + $0x28] sm:$0xff] %v4204
        %4219 = vst [vmem:[%s157 + $0x30] sm:$0xff] %v4205
        %4220 = vst [vmem:[%s157 + $0x38] sm:$0xff] %v4206
        %4221 = vst [vmem:[%s157 + $0x40] sm:$0xff] %v4207
        %4222 = vst [vmem:[%s157 + $0x48] sm:$0xff] %v4208
        %4223 = vst [vmem:[%s157 + $0x50] sm:$0xff] %v4209
        %4224 = vst [vmem:[%s157 + $0x58] sm:$0xff] %v4210
        %4225 = vst [vmem:[%s157 + $0x60] sm:$0xff] %v4211
        %4226 = vst [vmem:[%s157 + $0x68] sm:$0xff] %v4212
        %v4227 = vld [vmem:[%s0 + $0x40] sm:$0xff]
        %v4228 = vld [vmem:[%s0 + $0x48] sm:$0xff]
        %v4229 = vld [vmem:[%s0 + $0x50] sm:$0xff]
        %v4230 = vld [vmem:[%s0 + $0x58] sm:$0xff]
        %v4231 = vld [vmem:[%s0 + $0x60] sm:$0xff]
        %v4232 = vld [vmem:[%s0 + $0x68] sm:$0xff]
        %v4233 = vld [vmem:[%s0 + $0x70] sm:$0xff]
        %v4234 = vld [vmem:[%s0 + $0x78] sm:$0xff]
        %v4235 = vld [vmem:[%s0 + $0x80] sm:$0xff]
        %v4236 = vld [vmem:[%s0 + $0x88] sm:$0xff]
        %v4237 = vld [vmem:[%s0 + $0x90] sm:$0xff]
        %v4238 = vld [vmem:[%s0 + $0x98] sm:$0xff]
        %v4239 = vld [vmem:[%s0 + $0xa0] sm:$0xff]
        %v4240 = vld [vmem:[%s0 + $0xa8] sm:$0xff]
        %v4241 = vld [vmem:[%s0 + $0xb0] sm:$0xff]
        %v4242 = vld [vmem:[%s0 + $0xb8] sm:$0xff]
        %v4243 = vld [vmem:[%s0 + $0xc0] sm:$0xff]
        %v4244 = vld [vmem:[%s0 + $0xc8] sm:$0xff]
        %v4245 = vld [vmem:[%s0 + $0xd0] sm:$0xff]
        %v4246 = vld [vmem:[%s0 + $0xd8] sm:$0xff]
        %v4247 = vld [vmem:[%s0 + $0xe0] sm:$0xff]
        %v4248 = vld [vmem:[%s0 + $0xe8] sm:$0xff]
        %v4249 = vld [vmem:[%s0 + $0xf0] sm:$0xff]
        %v4250 = vld [vmem:[%s0 + $0xf8] sm:$0xff]
        %v4251 = vld [vmem:[%s0 + $0x100] sm:$0xff]
        %v4252 = vld [vmem:[%s0 + $0x108] sm:$0xff]
        %v4253 = vld [vmem:[%s0 + $0x110] sm:$0xff]
        %v4254 = vld [vmem:[%s0 + $0x118] sm:$0xff]
        %v4255 = vpack.c.bf16 %v4231, %v4227
        %v4256 = vpack.c.bf16 %v4232, %v4228
        %v4257 = vpack.c.bf16 %v4233, %v4229
        %v4258 = vpack.c.bf16 %v4234, %v4230
        %v4259 = vpack.c.bf16 %v4239, %v4235
        %v4260 = vpack.c.bf16 %v4240, %v4236
        %v4261 = vpack.c.bf16 %v4241, %v4237
        %v4262 = vpack.c.bf16 %v4242, %v4238
        %v4263 = vpack.c.bf16 %v4247, %v4243
        %v4264 = vpack.c.bf16 %v4248, %v4244
        %v4265 = vpack.c.bf16 %v4249, %v4245
        %v4266 = vpack.c.bf16 %v4250, %v4246
        %v4267 = vpack.c.bf16 %v4251, %v4251
        %v4268 = vpack.c.bf16 %v4252, %v4252
        %v4269 = vpack.c.bf16 %v4253, %v4253
        %v4270 = vpack.c.bf16 %v4254, %v4254
        %s4271 = scalar_lea.vmem %s138, 3072 [#allocation2]
        %v4272 = vld [vmem:[%s4271] sm:$0xff]
        %v4273 = vld [vmem:[%s4271 + $0x8] sm:$0xff]
        %v4274 = vld [vmem:[%s4271 + $0x10] sm:$0xff]
        %v4275 = vld [vmem:[%s4271 + $0x18] sm:$0xff]
        %v4276 = vld [vmem:[%s4271 + $0x20] sm:$0xff]
        %v4277 = vld [vmem:[%s4271 + $0x28] sm:$0xff]
        %v4278 = vld [vmem:[%s4271 + $0x30] sm:$0xff]
        %v4279 = vld [vmem:[%s4271 + $0x38] sm:$0xff]
        %v4280 = vld [vmem:[%s4271 + $0x40] sm:$0xff]
        %v4281 = vld [vmem:[%s4271 + $0x48] sm:$0xff]
        %v4282 = vld [vmem:[%s4271 + $0x50] sm:$0xff]
        %v4283 = vld [vmem:[%s4271 + $0x58] sm:$0xff]
        %v4284 = vld [vmem:[%s4271 + $0x60] sm:$0xff]
        %v4285 = vld [vmem:[%s4271 + $0x68] sm:$0xff]
        %v4286 = vld [vmem:[%s4271 + $0x70] sm:$0xff]
        %v4287 = vld [vmem:[%s4271 + $0x78] sm:$0xff]
        %v4288 = vld [vmem:[%s4271 + $0x80] sm:$0xff]
        %v4289 = vld [vmem:[%s4271 + $0x88] sm:$0xff]
        %v4290 = vld [vmem:[%s4271 + $0x90] sm:$0xff]
        %v4291 = vld [vmem:[%s4271 + $0x98] sm:$0xff]
        %v4292 = vld [vmem:[%s4271 + $0xa0] sm:$0xff]
        %v4293 = vld [vmem:[%s4271 + $0xa8] sm:$0xff]
        %v4294 = vld [vmem:[%s4271 + $0xb0] sm:$0xff]
        %v4295 = vld [vmem:[%s4271 + $0xb8] sm:$0xff]
        %v4296 = vld [vmem:[%s4271 + $0xc0] sm:$0xff]
        %v4297 = vld [vmem:[%s4271 + $0xc8] sm:$0xff]
        %v4298 = vld [vmem:[%s4271 + $0xd0] sm:$0xff]
        %v4299 = vld [vmem:[%s4271 + $0xd8] sm:$0xff]
        %v4300 = vld [vmem:[%s4271 + $0xe0] sm:$0xff]
        %v4301 = vld [vmem:[%s4271 + $0xe8] sm:$0xff]
        %v4302 = vld [vmem:[%s4271 + $0xf0] sm:$0xff]
        %v4303 = vld [vmem:[%s4271 + $0xf8] sm:$0xff]
        %v4304 = vld [vmem:[%s4271 + $0x100] sm:$0xff]
        %v4305 = vld [vmem:[%s4271 + $0x108] sm:$0xff]
        %v4306 = vld [vmem:[%s4271 + $0x110] sm:$0xff]
        %v4307 = vld [vmem:[%s4271 + $0x118] sm:$0xff]
        %v4308 = vld [vmem:[%s4271 + $0x120] sm:$0xff]
        %v4309 = vld [vmem:[%s4271 + $0x128] sm:$0xff]
        %v4310 = vld [vmem:[%s4271 + $0x130] sm:$0xff]
        %v4311 = vld [vmem:[%s4271 + $0x138] sm:$0xff]
        %v4312 = vld [vmem:[%s4271 + $0x140] sm:$0xff]
        %v4313 = vld [vmem:[%s4271 + $0x148] sm:$0xff]
        %v4314 = vld [vmem:[%s4271 + $0x150] sm:$0xff]
        %v4315 = vld [vmem:[%s4271 + $0x158] sm:$0xff]
        %v4316 = vld [vmem:[%s4271 + $0x160] sm:$0xff]
        %v4317 = vld [vmem:[%s4271 + $0x168] sm:$0xff]
        %v4318 = vld [vmem:[%s4271 + $0x170] sm:$0xff]
        %v4319 = vld [vmem:[%s4271 + $0x178] sm:$0xff]
        %v4320 = vld [vmem:[%s4271 + $0x180] sm:$0xff]
        %v4321 = vld [vmem:[%s4271 + $0x188] sm:$0xff]
        %v4322 = vld [vmem:[%s4271 + $0x190] sm:$0xff]
        %v4323 = vld [vmem:[%s4271 + $0x198] sm:$0xff]
        %v4324 = vld [vmem:[%s4271 + $0x1a0] sm:$0xff]
        %v4325 = vld [vmem:[%s4271 + $0x1a8] sm:$0xff]
        %v4326 = vld [vmem:[%s4271 + $0x1b0] sm:$0xff]
        %v4327 = vld [vmem:[%s4271 + $0x1b8] sm:$0xff]
        %v4328 = vld [vmem:[%s4271 + $0x1c0] sm:$0xff]
        %v4329 = vld [vmem:[%s4271 + $0x1c8] sm:$0xff]
        %v4330 = vld [vmem:[%s4271 + $0x1d0] sm:$0xff]
        %v4331 = vld [vmem:[%s4271 + $0x1d8] sm:$0xff]
        %v4332 = vld [vmem:[%s4271 + $0x1e0] sm:$0xff]
        %v4333 = vld [vmem:[%s4271 + $0x1e8] sm:$0xff]
        %v4334 = vld [vmem:[%s4271 + $0x1f0] sm:$0xff]
        %v4335 = vld [vmem:[%s4271 + $0x1f8] sm:$0xff]
        %v4400 = vunpack.c.l.b16 %v4272
        %v4401 = vunpack.c.h.b16 %v4272
        %v4402 = vunpack.c.l.b16 %v4273
        %v4403 = vunpack.c.h.b16 %v4273
        %v4404 = vunpack.c.l.b16 %v4274
        %v4405 = vunpack.c.h.b16 %v4274
        %v4406 = vunpack.c.l.b16 %v4275
        %v4407 = vunpack.c.h.b16 %v4275
        %v4408 = vunpack.c.l.b16 %v4276
        %v4409 = vunpack.c.h.b16 %v4276
        %v4410 = vunpack.c.l.b16 %v4277
        %v4411 = vunpack.c.h.b16 %v4277
        %v4412 = vunpack.c.l.b16 %v4278
        %v4413 = vunpack.c.h.b16 %v4278
        %v4414 = vunpack.c.l.b16 %v4279
        %v4415 = vunpack.c.h.b16 %v4279
        %v4416 = vunpack.c.l.b16 %v4280
        %v4417 = vunpack.c.h.b16 %v4280
        %v4418 = vunpack.c.l.b16 %v4281
        %v4419 = vunpack.c.h.b16 %v4281
        %v4420 = vunpack.c.l.b16 %v4282
        %v4421 = vunpack.c.h.b16 %v4282
        %v4422 = vunpack.c.l.b16 %v4283
        %v4423 = vunpack.c.h.b16 %v4283
        %v4424 = vunpack.c.l.b16 %v4284
        %v4425 = vunpack.c.h.b16 %v4284
        %v4426 = vunpack.c.l.b16 %v4285
        %v4427 = vunpack.c.h.b16 %v4285
        %v4428 = vunpack.c.l.b16 %v4286
        %v4429 = vunpack.c.h.b16 %v4286
        %v4430 = vunpack.c.l.b16 %v4287
        %v4431 = vunpack.c.h.b16 %v4287
        %v4432 = vunpack.c.l.b16 %v4288
        %v4433 = vunpack.c.h.b16 %v4288
        %v4434 = vunpack.c.l.b16 %v4289
        %v4435 = vunpack.c.h.b16 %v4289
        %v4436 = vunpack.c.l.b16 %v4290
        %v4437 = vunpack.c.h.b16 %v4290
        %v4438 = vunpack.c.l.b16 %v4291
        %v4439 = vunpack.c.h.b16 %v4291
        %v4440 = vunpack.c.l.b16 %v4292
        %v4441 = vunpack.c.h.b16 %v4292
        %v4442 = vunpack.c.l.b16 %v4293
        %v4443 = vunpack.c.h.b16 %v4293
        %v4444 = vunpack.c.l.b16 %v4294
        %v4445 = vunpack.c.h.b16 %v4294
        %v4446 = vunpack.c.l.b16 %v4295
        %v4447 = vunpack.c.h.b16 %v4295
        %v4448 = vunpack.c.l.b16 %v4296
        %v4449 = vunpack.c.h.b16 %v4296
        %v4450 = vunpack.c.l.b16 %v4297
        %v4451 = vunpack.c.h.b16 %v4297
        %v4452 = vunpack.c.l.b16 %v4298
        %v4453 = vunpack.c.h.b16 %v4298
        %v4454 = vunpack.c.l.b16 %v4299
        %v4455 = vunpack.c.h.b16 %v4299
        %v4456 = vunpack.c.l.b16 %v4300
        %v4457 = vunpack.c.h.b16 %v4300
        %v4458 = vunpack.c.l.b16 %v4301
        %v4459 = vunpack.c.h.b16 %v4301
        %v4460 = vunpack.c.l.b16 %v4302
        %v4461 = vunpack.c.h.b16 %v4302
        %v4462 = vunpack.c.l.b16 %v4303
        %v4463 = vunpack.c.h.b16 %v4303
        %v4464 = vunpack.c.l.b16 %v4304
        %v4465 = vunpack.c.h.b16 %v4304
        %v4466 = vunpack.c.l.b16 %v4305
        %v4467 = vunpack.c.h.b16 %v4305
        %v4468 = vunpack.c.l.b16 %v4306
        %v4469 = vunpack.c.h.b16 %v4306
        %v4470 = vunpack.c.l.b16 %v4307
        %v4471 = vunpack.c.h.b16 %v4307
        %v4472 = vunpack.c.l.b16 %v4308
        %v4473 = vunpack.c.h.b16 %v4308
        %v4474 = vunpack.c.l.b16 %v4309
        %v4475 = vunpack.c.h.b16 %v4309
        %v4476 = vunpack.c.l.b16 %v4310
        %v4477 = vunpack.c.h.b16 %v4310
        %v4478 = vunpack.c.l.b16 %v4311
        %v4479 = vunpack.c.h.b16 %v4311
        %v4480 = vunpack.c.l.b16 %v4312
        %v4481 = vunpack.c.h.b16 %v4312
        %v4482 = vunpack.c.l.b16 %v4313
        %v4483 = vunpack.c.h.b16 %v4313
        %v4484 = vunpack.c.l.b16 %v4314
        %v4485 = vunpack.c.h.b16 %v4314
        %v4486 = vunpack.c.l.b16 %v4315
        %v4487 = vunpack.c.h.b16 %v4315
        %v4488 = vunpack.c.l.b16 %v4316
        %v4489 = vunpack.c.h.b16 %v4316
        %v4490 = vunpack.c.l.b16 %v4317
        %v4491 = vunpack.c.h.b16 %v4317
        %v4492 = vunpack.c.l.b16 %v4318
        %v4493 = vunpack.c.h.b16 %v4318
        %v4494 = vunpack.c.l.b16 %v4319
        %v4495 = vunpack.c.h.b16 %v4319
        %v4496 = vunpack.c.l.b16 %v4320
        %v4497 = vunpack.c.h.b16 %v4320
        %v4498 = vunpack.c.l.b16 %v4321
        %v4499 = vunpack.c.h.b16 %v4321
        %v4500 = vunpack.c.l.b16 %v4322
        %v4501 = vunpack.c.h.b16 %v4322
        %v4502 = vunpack.c.l.b16 %v4323
        %v4503 = vunpack.c.h.b16 %v4323
        %v4504 = vunpack.c.l.b16 %v4324
        %v4505 = vunpack.c.h.b16 %v4324
        %v4506 = vunpack.c.l.b16 %v4325
        %v4507 = vunpack.c.h.b16 %v4325
        %v4508 = vunpack.c.l.b16 %v4326
        %v4509 = vunpack.c.h.b16 %v4326
        %v4510 = vunpack.c.l.b16 %v4327
        %v4511 = vunpack.c.h.b16 %v4327
        %v4512 = vunpack.c.l.b16 %v4328
        %v4513 = vunpack.c.h.b16 %v4328
        %v4514 = vunpack.c.l.b16 %v4329
        %v4515 = vunpack.c.h.b16 %v4329
        %v4516 = vunpack.c.l.b16 %v4330
        %v4517 = vunpack.c.h.b16 %v4330
        %v4518 = vunpack.c.l.b16 %v4331
        %v4519 = vunpack.c.h.b16 %v4331
        %v4520 = vunpack.c.l.b16 %v4332
        %v4521 = vunpack.c.h.b16 %v4332
        %v4522 = vunpack.c.l.b16 %v4333
        %v4523 = vunpack.c.h.b16 %v4333
        %v4524 = vunpack.c.l.b16 %v4334
        %v4525 = vunpack.c.h.b16 %v4334
        %v4526 = vunpack.c.l.b16 %v4335
        %v4527 = vunpack.c.h.b16 %v4335
        %v4528 = vpack.c.b16 %v4402, %v4400
        %v4529 = vpack.c.b16 %v4403, %v4401
        %v4530 = vpack.c.b16 %v4406, %v4404
        %v4531 = vpack.c.b16 %v4407, %v4405
        %v4532 = vpack.c.b16 %v4410, %v4408
        %v4533 = vpack.c.b16 %v4411, %v4409
        %v4534 = vpack.c.b16 %v4414, %v4412
        %v4535 = vpack.c.b16 %v4415, %v4413
        %v4536 = vpack.c.b16 %v4418, %v4416
        %v4537 = vpack.c.b16 %v4419, %v4417
        %v4538 = vpack.c.b16 %v4422, %v4420
        %v4539 = vpack.c.b16 %v4423, %v4421
        %v4540 = vpack.c.b16 %v4426, %v4424
        %v4541 = vpack.c.b16 %v4427, %v4425
        %v4542 = vpack.c.b16 %v4430, %v4428
        %v4543 = vpack.c.b16 %v4431, %v4429
        %v4544 = vpack.c.b16 %v4434, %v4432
        %v4545 = vpack.c.b16 %v4435, %v4433
        %v4546 = vpack.c.b16 %v4438, %v4436
        %v4547 = vpack.c.b16 %v4439, %v4437
        %v4548 = vpack.c.b16 %v4442, %v4440
        %v4549 = vpack.c.b16 %v4443, %v4441
        %v4550 = vpack.c.b16 %v4446, %v4444
        %v4551 = vpack.c.b16 %v4447, %v4445
        %v4552 = vpack.c.b16 %v4450, %v4448
        %v4553 = vpack.c.b16 %v4451, %v4449
        %v4554 = vpack.c.b16 %v4454, %v4452
        %v4555 = vpack.c.b16 %v4455, %v4453
        %v4556 = vpack.c.b16 %v4458, %v4456
        %v4557 = vpack.c.b16 %v4459, %v4457
        %v4558 = vpack.c.b16 %v4462, %v4460
        %v4559 = vpack.c.b16 %v4463, %v4461
        %v4560 = vpack.c.b16 %v4466, %v4464
        %v4561 = vpack.c.b16 %v4467, %v4465
        %v4562 = vpack.c.b16 %v4470, %v4468
        %v4563 = vpack.c.b16 %v4471, %v4469
        %v4564 = vpack.c.b16 %v4474, %v4472
        %v4565 = vpack.c.b16 %v4475, %v4473
        %v4566 = vpack.c.b16 %v4478, %v4476
        %v4567 = vpack.c.b16 %v4479, %v4477
        %v4568 = vpack.c.b16 %v4482, %v4480
        %v4569 = vpack.c.b16 %v4483, %v4481
        %v4570 = vpack.c.b16 %v4486, %v4484
        %v4571 = vpack.c.b16 %v4487, %v4485
        %v4572 = vpack.c.b16 %v4490, %v4488
        %v4573 = vpack.c.b16 %v4491, %v4489
        %v4574 = vpack.c.b16 %v4494, %v4492
        %v4575 = vpack.c.b16 %v4495, %v4493
        %v4576 = vpack.c.b16 %v4498, %v4496
        %v4577 = vpack.c.b16 %v4499, %v4497
        %v4578 = vpack.c.b16 %v4502, %v4500
        %v4579 = vpack.c.b16 %v4503, %v4501
        %v4580 = vpack.c.b16 %v4506, %v4504
        %v4581 = vpack.c.b16 %v4507, %v4505
        %v4582 = vpack.c.b16 %v4510, %v4508
        %v4583 = vpack.c.b16 %v4511, %v4509
        %v4584 = vpack.c.b16 %v4514, %v4512
        %v4585 = vpack.c.b16 %v4515, %v4513
        %v4586 = vpack.c.b16 %v4518, %v4516
        %v4587 = vpack.c.b16 %v4519, %v4517
        %v4588 = vpack.c.b16 %v4522, %v4520
        %v4589 = vpack.c.b16 %v4523, %v4521
        %v4590 = vpack.c.b16 %v4526, %v4524
        %v4591 = vpack.c.b16 %v4527, %v4525
        %4656 = vmatprep.subr.bf16.mxu0 %v4543
        %4657 = vmatpush1.bf16.msra.mxu0 %v4542
        %4658 = vmatprep.subr.bf16.mxu0 %v4541
        %4659 = vmatpush1.bf16.msra.mxu0 %v4540
        %4660 = vmatprep.subr.bf16.mxu0 %v4539
        %4661 = vmatpush1.bf16.msra.mxu0 %v4538
        %4662 = vmatprep.subr.bf16.mxu0 %v4537
        %4663 = vmatpush1.bf16.msra.mxu0 %v4536
        %4664 = vmatprep.subr.bf16.mxu0 %v4535
        %4665 = vmatpush1.bf16.msra.mxu0 %v4534
        %4666 = vmatprep.subr.bf16.mxu0 %v4533
        %4667 = vmatpush1.bf16.msra.mxu0 %v4532
        %4668 = vmatprep.subr.bf16.mxu0 %v4531
        %4669 = vmatpush1.bf16.msra.mxu0 %v4530
        %4670 = vmatprep.subr.bf16.mxu0 %v4529
        %4671 = vmatpush1.bf16.msra.mxu0 %v4528
        %4672 = vmatprep.subr.bf16.mxu0 %v4559
        %4673 = vmatpush2.bf16.msra.mxu0 %v4558
        %4674 = vmatprep.subr.bf16.mxu0 %v4557
        %4675 = vmatpush2.bf16.msra.mxu0 %v4556
        %4676 = vmatprep.subr.bf16.mxu0 %v4555
        %4677 = vmatpush2.bf16.msra.mxu0 %v4554
        %4678 = vmatprep.subr.bf16.mxu0 %v4553
        %4679 = vmatpush2.bf16.msra.mxu0 %v4552
        %4680 = vmatprep.subr.bf16.mxu0 %v4551
        %4681 = vmatpush2.bf16.msra.mxu0 %v4550
        %4682 = vmatprep.subr.bf16.mxu0 %v4549
        %4683 = vmatpush2.bf16.msra.mxu0 %v4548
        %4684 = vmatprep.subr.bf16.mxu0 %v4547
        %4685 = vmatpush2.bf16.msra.mxu0 %v4546
        %4686 = vmatprep.subr.bf16.mxu0 %v4545
        %4687 = vmatpush2.bf16.msra.mxu0 %v4544
        %4688 = vmatprep.mubr.bf16.mxu0 %v4256
        %4689 = vmatmul.mubr.bf16.gmra.mxu0 %v4255
        %v4690 = vpop.f32.mrf.mxu0
        %v4691 = vadd.f32 0.0, %v4690
        %v4692 = vpop.f32.mrf.mxu0
        %v4693 = vadd.f32 0.0, %v4692
        %v4694 = vpop.f32.mrf.mxu0
        %v4695 = vadd.f32 0.0, %v4694
        %v4696 = vpop.f32.mrf.mxu0
        %v4697 = vadd.f32 0.0, %v4696
        %4698 = vmatprep.mubr.bf16.mxu0 %v4260
        %4699 = vmatmul.mubr.bf16.gmra.mxu0 %v4259
        %v4700 = vpop.f32.mrf.mxu0
        %v4701 = vadd.f32 0.0, %v4700
        %v4702 = vpop.f32.mrf.mxu0
        %v4703 = vadd.f32 0.0, %v4702
        %v4704 = vpop.f32.mrf.mxu0
        %v4705 = vadd.f32 0.0, %v4704
        %v4706 = vpop.f32.mrf.mxu0
        %v4707 = vadd.f32 0.0, %v4706
        %4708 = vmatprep.mubr.bf16.mxu0 %v4264
        %4709 = vmatmul.mubr.bf16.gmra.mxu0 %v4263
        %v4710 = vpop.f32.mrf.mxu0
        %v4711 = vadd.f32 0.0, %v4710
        %v4712 = vpop.f32.mrf.mxu0
        %v4713 = vadd.f32 0.0, %v4712
        %v4714 = vpop.f32.mrf.mxu0
        %v4715 = vadd.f32 0.0, %v4714
        %v4716 = vpop.f32.mrf.mxu0
        %v4717 = vadd.f32 0.0, %v4716
        %4718 = vmatprep.mubr.bf16.mxu0 %v4268
        %4719 = vmatmul.mubr.bf16.gmra.mxu0 %v4267
        %v4720 = vpop.f32.mrf.mxu0
        %v4721 = vadd.f32 0.0, %v4720
        %v4722 = vpop.f32.mrf.mxu0
        %v4723 = vadd.f32 0.0, %v4722
        %v4724 = vpop.f32.mrf.mxu0
        %v4725 = vpop.f32.mrf.mxu0
        %4726 = vdwg.mxu0
        %4727 = vmatprep.subr.bf16.mxu0 %v4575
        %4728 = vmatpush1.bf16.msra.mxu0 %v4574
        %4729 = vmatprep.subr.bf16.mxu0 %v4573
        %4730 = vmatpush1.bf16.msra.mxu0 %v4572
        %4731 = vmatprep.subr.bf16.mxu0 %v4571
        %4732 = vmatpush1.bf16.msra.mxu0 %v4570
        %4733 = vmatprep.subr.bf16.mxu0 %v4569
        %4734 = vmatpush1.bf16.msra.mxu0 %v4568
        %4735 = vmatprep.subr.bf16.mxu0 %v4567
        %4736 = vmatpush1.bf16.msra.mxu0 %v4566
        %4737 = vmatprep.subr.bf16.mxu0 %v4565
        %4738 = vmatpush1.bf16.msra.mxu0 %v4564
        %4739 = vmatprep.subr.bf16.mxu0 %v4563
        %4740 = vmatpush1.bf16.msra.mxu0 %v4562
        %4741 = vmatprep.subr.bf16.mxu0 %v4561
        %4742 = vmatpush1.bf16.msra.mxu0 %v4560
        %4743 = vmatprep.subr.bf16.mxu0 %v4591
        %4744 = vmatpush2.bf16.msra.mxu0 %v4590
        %4745 = vmatprep.subr.bf16.mxu0 %v4589
        %4746 = vmatpush2.bf16.msra.mxu0 %v4588
        %4747 = vmatprep.subr.bf16.mxu0 %v4587
        %4748 = vmatpush2.bf16.msra.mxu0 %v4586
        %4749 = vmatprep.subr.bf16.mxu0 %v4585
        %4750 = vmatpush2.bf16.msra.mxu0 %v4584
        %4751 = vmatprep.subr.bf16.mxu0 %v4583
        %4752 = vmatpush2.bf16.msra.mxu0 %v4582
        %4753 = vmatprep.subr.bf16.mxu0 %v4581
        %4754 = vmatpush2.bf16.msra.mxu0 %v4580
        %4755 = vmatprep.subr.bf16.mxu0 %v4579
        %4756 = vmatpush2.bf16.msra.mxu0 %v4578
        %4757 = vmatprep.subr.bf16.mxu0 %v4577
        %4758 = vmatpush2.bf16.msra.mxu0 %v4576
        %4759 = vmatprep.mubr.bf16.mxu0 %v4258
        %4760 = vmatmul.mubr.bf16.gmra.mxu0 %v4257
        %v4761 = vpop.f32.mrf.mxu0
        %v4762 = vadd.f32 %v4691, %v4761
        %v4763 = vpop.f32.mrf.mxu0
        %v4764 = vadd.f32 %v4693, %v4763
        %v4765 = vpop.f32.mrf.mxu0
        %v4766 = vadd.f32 %v4695, %v4765
        %v4767 = vpop.f32.mrf.mxu0
        %v4768 = vadd.f32 %v4697, %v4767
        %4769 = vmatprep.mubr.bf16.mxu0 %v4262
        %4770 = vmatmul.mubr.bf16.gmra.mxu0 %v4261
        %v4771 = vpop.f32.mrf.mxu0
        %v4772 = vadd.f32 %v4701, %v4771
        %v4773 = vpop.f32.mrf.mxu0
        %v4774 = vadd.f32 %v4703, %v4773
        %v4775 = vpop.f32.mrf.mxu0
        %v4776 = vadd.f32 %v4705, %v4775
        %v4777 = vpop.f32.mrf.mxu0
        %v4778 = vadd.f32 %v4707, %v4777
        %4779 = vmatprep.mubr.bf16.mxu0 %v4266
        %4780 = vmatmul.mubr.bf16.gmra.mxu0 %v4265
        %v4781 = vpop.f32.mrf.mxu0
        %v4782 = vadd.f32 %v4711, %v4781
        %v4783 = vpop.f32.mrf.mxu0
        %v4784 = vadd.f32 %v4713, %v4783
        %v4785 = vpop.f32.mrf.mxu0
        %v4786 = vadd.f32 %v4715, %v4785
        %v4787 = vpop.f32.mrf.mxu0
        %v4788 = vadd.f32 %v4717, %v4787
        %4789 = vmatprep.mubr.bf16.mxu0 %v4270
        %4790 = vmatmul.mubr.bf16.gmra.mxu0 %v4269
        %v4791 = vpop.f32.mrf.mxu0
        %v4792 = vadd.f32 %v4721, %v4791
        %v4793 = vpop.f32.mrf.mxu0
        %v4794 = vadd.f32 %v4723, %v4793
        %v4795 = vpop.f32.mrf.mxu0
        %v4796 = vpop.f32.mrf.mxu0
        %4797 = vdwg.mxu0
        %v4798 = vld [vmem:[%s157] sm:$0xff]
        %v4799 = vld [vmem:[%s157 + $0x8] sm:$0xff]
        %v4800 = vld [vmem:[%s157 + $0x10] sm:$0xff]
        %v4801 = vld [vmem:[%s157 + $0x18] sm:$0xff]
        %v4802 = vld [vmem:[%s157 + $0x20] sm:$0xff]
        %v4803 = vld [vmem:[%s157 + $0x28] sm:$0xff]
        %v4804 = vld [vmem:[%s157 + $0x30] sm:$0xff]
        %v4805 = vld [vmem:[%s157 + $0x38] sm:$0xff]
        %v4806 = vld [vmem:[%s157 + $0x40] sm:$0xff]
        %v4807 = vld [vmem:[%s157 + $0x48] sm:$0xff]
        %v4808 = vld [vmem:[%s157 + $0x50] sm:$0xff]
        %v4809 = vld [vmem:[%s157 + $0x58] sm:$0xff]
        %v4810 = vld [vmem:[%s157 + $0x60] sm:$0xff]
        %v4811 = vld [vmem:[%s157 + $0x68] sm:$0xff]
        %v4812 = vadd.f32 %v4798, %v4762
        %v4813 = vadd.f32 %v4799, %v4764
        %v4814 = vadd.f32 %v4800, %v4766
        %v4815 = vadd.f32 %v4801, %v4768
        %v4816 = vadd.f32 %v4802, %v4772
        %v4817 = vadd.f32 %v4803, %v4774
        %v4818 = vadd.f32 %v4804, %v4776
        %v4819 = vadd.f32 %v4805, %v4778
        %v4820 = vadd.f32 %v4806, %v4782
        %v4821 = vadd.f32 %v4807, %v4784
        %v4822 = vadd.f32 %v4808, %v4786
        %v4823 = vadd.f32 %v4809, %v4788
        %v4824 = vadd.f32 %v4810, %v4792
        %v4825 = vadd.f32 %v4811, %v4794
        %4826 = vst [vmem:[%s157] sm:$0xff] %v4812
        %4827 = vst [vmem:[%s157 + $0x8] sm:$0xff] %v4813
        %4828 = vst [vmem:[%s157 + $0x10] sm:$0xff] %v4814
        %4829 = vst [vmem:[%s157 + $0x18] sm:$0xff] %v4815
        %4830 = vst [vmem:[%s157 + $0x20] sm:$0xff] %v4816
        %4831 = vst [vmem:[%s157 + $0x28] sm:$0xff] %v4817
        %4832 = vst [vmem:[%s157 + $0x30] sm:$0xff] %v4818
        %4833 = vst [vmem:[%s157 + $0x38] sm:$0xff] %v4819
        %4834 = vst [vmem:[%s157 + $0x40] sm:$0xff] %v4820
        %4835 = vst [vmem:[%s157 + $0x48] sm:$0xff] %v4821
        %4836 = vst [vmem:[%s157 + $0x50] sm:$0xff] %v4822
        %4837 = vst [vmem:[%s157 + $0x58] sm:$0xff] %v4823
        %4838 = vst [vmem:[%s157 + $0x60] sm:$0xff] %v4824
        %4839 = vst [vmem:[%s157 + $0x68] sm:$0xff] %v4825
        %v4840 = vld [vmem:[%s0 + $0x40] sm:$0xfe]
        %v4841 = vld [vmem:[%s0 + $0x48] sm:$0xfe]
        %v4842 = vld [vmem:[%s0 + $0x50] sm:$0xfe]
        %v4843 = vld [vmem:[%s0 + $0x58] sm:$0xfe]
        %v4844 = vld [vmem:[%s0 + $0x60] sm:$0xff]
        %v4845 = vld [vmem:[%s0 + $0x68] sm:$0xff]
        %v4846 = vld [vmem:[%s0 + $0x70] sm:$0xff]
        %v4847 = vld [vmem:[%s0 + $0x78] sm:$0xff]
        %v4848 = vld [vmem:[%s0 + $0x80] sm:$0xff]
        %v4849 = vld [vmem:[%s0 + $0x88] sm:$0xff]
        %v4850 = vld [vmem:[%s0 + $0x90] sm:$0xff]
        %v4851 = vld [vmem:[%s0 + $0x98] sm:$0xff]
        %v4852 = vld [vmem:[%s0 + $0xa0] sm:$0xff]
        %v4853 = vld [vmem:[%s0 + $0xa8] sm:$0xff]
        %v4854 = vld [vmem:[%s0 + $0xb0] sm:$0xff]
        %v4855 = vld [vmem:[%s0 + $0xb8] sm:$0xff]
        %v4856 = vld [vmem:[%s0 + $0xc0] sm:$0xff]
        %v4857 = vld [vmem:[%s0 + $0xc8] sm:$0xff]
        %v4858 = vld [vmem:[%s0 + $0xd0] sm:$0xff]
        %v4859 = vld [vmem:[%s0 + $0xd8] sm:$0xff]
        %v4860 = vld [vmem:[%s0 + $0xe0] sm:$0xff]
        %v4861 = vld [vmem:[%s0 + $0xe8] sm:$0xff]
        %v4862 = vld [vmem:[%s0 + $0xf0] sm:$0xff]
        %v4863 = vld [vmem:[%s0 + $0xf8] sm:$0xff]
        %v4864 = vld [vmem:[%s0 + $0x100] sm:$0xff]
        %v4865 = vld [vmem:[%s0 + $0x108] sm:$0xff]
        %v4866 = vld [vmem:[%s0 + $0x110] sm:$0xff]
        %v4867 = vld [vmem:[%s0 + $0x118] sm:$0xff]
        %v4868 = vld [vmem:[%s0 + $0x120] sm:$0x1]
        %v4869 = vld [vmem:[%s0 + $0x128] sm:$0x1]
        %v4870 = vld [vmem:[%s0 + $0x130] sm:$0x1]
        %v4871 = vld [vmem:[%s0 + $0x138] sm:$0x1]
        %v4872 = vpack.c.bf16 %v4844, %v4840
        %v4873 = vpack.c.bf16 %v4845, %v4841
        %v4874 = vpack.c.bf16 %v4846, %v4842
        %v4875 = vpack.c.bf16 %v4847, %v4843
        %v4876 = vpack.c.bf16 %v4852, %v4848
        %v4877 = vpack.c.bf16 %v4853, %v4849
        %v4878 = vpack.c.bf16 %v4854, %v4850
        %v4879 = vpack.c.bf16 %v4855, %v4851
        %v4880 = vpack.c.bf16 %v4860, %v4856
        %v4881 = vpack.c.bf16 %v4861, %v4857
        %v4882 = vpack.c.bf16 %v4862, %v4858
        %v4883 = vpack.c.bf16 %v4863, %v4859
        %v4884 = vpack.c.bf16 %v4868, %v4864
        %v4885 = vpack.c.bf16 %v4869, %v4865
        %v4886 = vpack.c.bf16 %v4870, %v4866
        %v4887 = vpack.c.bf16 %v4871, %v4867
        %s4888 = scalar_lea.vmem %s138, 3584 [#allocation2]
        %v4889 = vld [vmem:[%s4888] sm:$0xff]
        %v4890 = vld [vmem:[%s4888 + $0x8] sm:$0xff]
        %v4891 = vld [vmem:[%s4888 + $0x10] sm:$0xff]
        %v4892 = vld [vmem:[%s4888 + $0x18] sm:$0xff]
        %v4893 = vld [vmem:[%s4888 + $0x20] sm:$0xff]
        %v4894 = vld [vmem:[%s4888 + $0x28] sm:$0xff]
        %v4895 = vld [vmem:[%s4888 + $0x30] sm:$0xff]
        %v4896 = vld [vmem:[%s4888 + $0x38] sm:$0xff]
        %v4897 = vld [vmem:[%s4888 + $0x40] sm:$0xff]
        %v4898 = vld [vmem:[%s4888 + $0x48] sm:$0xff]
        %v4899 = vld [vmem:[%s4888 + $0x50] sm:$0xff]
        %v4900 = vld [vmem:[%s4888 + $0x58] sm:$0xff]
        %v4901 = vld [vmem:[%s4888 + $0x60] sm:$0xff]
        %v4902 = vld [vmem:[%s4888 + $0x68] sm:$0xff]
        %v4903 = vld [vmem:[%s4888 + $0x70] sm:$0xff]
        %v4904 = vld [vmem:[%s4888 + $0x78] sm:$0xff]
        %v4905 = vld [vmem:[%s4888 + $0x80] sm:$0xff]
        %v4906 = vld [vmem:[%s4888 + $0x88] sm:$0xff]
        %v4907 = vld [vmem:[%s4888 + $0x90] sm:$0xff]
        %v4908 = vld [vmem:[%s4888 + $0x98] sm:$0xff]
        %v4909 = vld [vmem:[%s4888 + $0xa0] sm:$0xff]
        %v4910 = vld [vmem:[%s4888 + $0xa8] sm:$0xff]
        %v4911 = vld [vmem:[%s4888 + $0xb0] sm:$0xff]
        %v4912 = vld [vmem:[%s4888 + $0xb8] sm:$0xff]
        %v4913 = vld [vmem:[%s4888 + $0xc0] sm:$0xff]
        %v4914 = vld [vmem:[%s4888 + $0xc8] sm:$0xff]
        %v4915 = vld [vmem:[%s4888 + $0xd0] sm:$0xff]
        %v4916 = vld [vmem:[%s4888 + $0xd8] sm:$0xff]
        %v4917 = vld [vmem:[%s4888 + $0xe0] sm:$0xff]
        %v4918 = vld [vmem:[%s4888 + $0xe8] sm:$0xff]
        %v4919 = vld [vmem:[%s4888 + $0xf0] sm:$0xff]
        %v4920 = vld [vmem:[%s4888 + $0xf8] sm:$0xff]
        %v4921 = vld [vmem:[%s4888 + $0x100] sm:$0xff]
        %v4922 = vld [vmem:[%s4888 + $0x108] sm:$0xff]
        %v4923 = vld [vmem:[%s4888 + $0x110] sm:$0xff]
        %v4924 = vld [vmem:[%s4888 + $0x118] sm:$0xff]
        %v4925 = vld [vmem:[%s4888 + $0x120] sm:$0xff]
        %v4926 = vld [vmem:[%s4888 + $0x128] sm:$0xff]
        %v4927 = vld [vmem:[%s4888 + $0x130] sm:$0xff]
        %v4928 = vld [vmem:[%s4888 + $0x138] sm:$0xff]
        %v4929 = vld [vmem:[%s4888 + $0x140] sm:$0xff]
        %v4930 = vld [vmem:[%s4888 + $0x148] sm:$0xff]
        %v4931 = vld [vmem:[%s4888 + $0x150] sm:$0xff]
        %v4932 = vld [vmem:[%s4888 + $0x158] sm:$0xff]
        %v4933 = vld [vmem:[%s4888 + $0x160] sm:$0xff]
        %v4934 = vld [vmem:[%s4888 + $0x168] sm:$0xff]
        %v4935 = vld [vmem:[%s4888 + $0x170] sm:$0xff]
        %v4936 = vld [vmem:[%s4888 + $0x178] sm:$0xff]
        %v4937 = vld [vmem:[%s4888 + $0x180] sm:$0xff]
        %v4938 = vld [vmem:[%s4888 + $0x188] sm:$0xff]
        %v4939 = vld [vmem:[%s4888 + $0x190] sm:$0xff]
        %v4940 = vld [vmem:[%s4888 + $0x198] sm:$0xff]
        %v4941 = vld [vmem:[%s4888 + $0x1a0] sm:$0xff]
        %v4942 = vld [vmem:[%s4888 + $0x1a8] sm:$0xff]
        %v4943 = vld [vmem:[%s4888 + $0x1b0] sm:$0xff]
        %v4944 = vld [vmem:[%s4888 + $0x1b8] sm:$0xff]
        %v4945 = vld [vmem:[%s4888 + $0x1c0] sm:$0xff]
        %v4946 = vld [vmem:[%s4888 + $0x1c8] sm:$0xff]
        %v4947 = vld [vmem:[%s4888 + $0x1d0] sm:$0xff]
        %v4948 = vld [vmem:[%s4888 + $0x1d8] sm:$0xff]
        %v4949 = vld [vmem:[%s4888 + $0x1e0] sm:$0xff]
        %v4950 = vld [vmem:[%s4888 + $0x1e8] sm:$0xff]
        %v4951 = vld [vmem:[%s4888 + $0x1f0] sm:$0xff]
        %v4952 = vld [vmem:[%s4888 + $0x1f8] sm:$0xff]
        %v4954 = vshrl.u32 %v4872, 16
        %v4956 = vshll.u32 %v4872, 16
        %v4958 = vrot.slane %v4956, 1
        %v4959 = vor.u32 %v4954, %v4958
        %v4961 = vshll.u32 %v4876, 16
        %v4963 = vrot.slane %v4961, 1
        %v4964 = vsel %vm857, %v4959, %v4963
        %v4966 = vshrl.u32 %v4873, 16
        %v4968 = vshll.u32 %v4873, 16
        %v4970 = vrot.slane %v4968, 1
        %v4971 = vor.u32 %v4966, %v4970
        %v4973 = vshll.u32 %v4877, 16
        %v4975 = vrot.slane %v4973, 1
        %v4976 = vsel %vm857, %v4971, %v4975
        %v4978 = vshrl.u32 %v4874, 16
        %v4980 = vshll.u32 %v4874, 16
        %v4982 = vrot.slane %v4980, 1
        %v4983 = vor.u32 %v4978, %v4982
        %v4985 = vshll.u32 %v4878, 16
        %v4987 = vrot.slane %v4985, 1
        %v4988 = vsel %vm857, %v4983, %v4987
        %v4990 = vshrl.u32 %v4875, 16
        %v4992 = vshll.u32 %v4875, 16
        %v4994 = vrot.slane %v4992, 1
        %v4995 = vor.u32 %v4990, %v4994
        %v4997 = vshll.u32 %v4879, 16
        %v4999 = vrot.slane %v4997, 1
        %v5000 = vsel %vm857, %v4995, %v4999
        %v5001 = vshrl.u32 %v4876, 16
        %v5003 = vor.u32 %v5001, %v4963
        %v5005 = vshll.u32 %v4880, 16
        %v5007 = vrot.slane %v5005, 1
        %v5008 = vsel %vm857, %v5003, %v5007
        %v5009 = vshrl.u32 %v4877, 16
        %v5011 = vor.u32 %v5009, %v4975
        %v5013 = vshll.u32 %v4881, 16
        %v5015 = vrot.slane %v5013, 1
        %v5016 = vsel %vm857, %v5011, %v5015
        %v5017 = vshrl.u32 %v4878, 16
        %v5019 = vor.u32 %v5017, %v4987
        %v5021 = vshll.u32 %v4882, 16
        %v5023 = vrot.slane %v5021, 1
        %v5024 = vsel %vm857, %v5019, %v5023
        %v5025 = vshrl.u32 %v4879, 16
        %v5027 = vor.u32 %v5025, %v4999
        %v5029 = vshll.u32 %v4883, 16
        %v5031 = vrot.slane %v5029, 1
        %v5032 = vsel %vm857, %v5027, %v5031
        %v5033 = vshrl.u32 %v4880, 16
        %v5035 = vor.u32 %v5033, %v5007
        %v5037 = vshll.u32 %v4884, 16
        %v5039 = vrot.slane %v5037, 1
        %v5040 = vsel %vm857, %v5035, %v5039
        %v5041 = vshrl.u32 %v4881, 16
        %v5043 = vor.u32 %v5041, %v5015
        %v5045 = vshll.u32 %v4885, 16
        %v5047 = vrot.slane %v5045, 1
        %v5048 = vsel %vm857, %v5043, %v5047
        %v5049 = vshrl.u32 %v4882, 16
        %v5051 = vor.u32 %v5049, %v5023
        %v5053 = vshll.u32 %v4886, 16
        %v5055 = vrot.slane %v5053, 1
        %v5056 = vsel %vm857, %v5051, %v5055
        %v5057 = vshrl.u32 %v4883, 16
        %v5059 = vor.u32 %v5057, %v5031
        %v5061 = vshll.u32 %v4887, 16
        %v5063 = vrot.slane %v5061, 1
        %v5064 = vsel %vm857, %v5059, %v5063
        %v5065 = vshrl.u32 %v4884, 16
        %v5067 = vor.u32 %v5065, %v5039
        %v5068 = vshrl.u32 %v4885, 16
        %v5070 = vor.u32 %v5068, %v5047
        %v5071 = vshrl.u32 %v4886, 16
        %v5073 = vor.u32 %v5071, %v5055
        %v5074 = vshrl.u32 %v4887, 16
        %v5076 = vor.u32 %v5074, %v5063
        %v5157 = vunpack.c.l.b16 %v4889
        %v5158 = vunpack.c.h.b16 %v4889
        %v5159 = vunpack.c.l.b16 %v4890
        %v5160 = vunpack.c.h.b16 %v4890
        %v5161 = vunpack.c.l.b16 %v4891
        %v5162 = vunpack.c.h.b16 %v4891
        %v5163 = vunpack.c.l.b16 %v4892
        %v5164 = vunpack.c.h.b16 %v4892
        %v5165 = vunpack.c.l.b16 %v4893
        %v5166 = vunpack.c.h.b16 %v4893
        %v5167 = vunpack.c.l.b16 %v4894
        %v5168 = vunpack.c.h.b16 %v4894
        %v5169 = vunpack.c.l.b16 %v4895
        %v5170 = vunpack.c.h.b16 %v4895
        %v5171 = vunpack.c.l.b16 %v4896
        %v5172 = vunpack.c.h.b16 %v4896
        %v5173 = vunpack.c.l.b16 %v4897
        %v5174 = vunpack.c.h.b16 %v4897
        %v5175 = vunpack.c.l.b16 %v4898
        %v5176 = vunpack.c.h.b16 %v4898
        %v5177 = vunpack.c.l.b16 %v4899
        %v5178 = vunpack.c.h.b16 %v4899
        %v5179 = vunpack.c.l.b16 %v4900
        %v5180 = vunpack.c.h.b16 %v4900
        %v5181 = vunpack.c.l.b16 %v4901
        %v5182 = vunpack.c.h.b16 %v4901
        %v5183 = vunpack.c.l.b16 %v4902
        %v5184 = vunpack.c.h.b16 %v4902
        %v5185 = vunpack.c.l.b16 %v4903
        %v5186 = vunpack.c.h.b16 %v4903
        %v5187 = vunpack.c.l.b16 %v4904
        %v5188 = vunpack.c.h.b16 %v4904
        %v5189 = vunpack.c.l.b16 %v4905
        %v5190 = vunpack.c.h.b16 %v4905
        %v5191 = vunpack.c.l.b16 %v4906
        %v5192 = vunpack.c.h.b16 %v4906
        %v5193 = vunpack.c.l.b16 %v4907
        %v5194 = vunpack.c.h.b16 %v4907
        %v5195 = vunpack.c.l.b16 %v4908
        %v5196 = vunpack.c.h.b16 %v4908
        %v5197 = vunpack.c.l.b16 %v4909
        %v5198 = vunpack.c.h.b16 %v4909
        %v5199 = vunpack.c.l.b16 %v4910
        %v5200 = vunpack.c.h.b16 %v4910
        %v5201 = vunpack.c.l.b16 %v4911
        %v5202 = vunpack.c.h.b16 %v4911
        %v5203 = vunpack.c.l.b16 %v4912
        %v5204 = vunpack.c.h.b16 %v4912
        %v5205 = vunpack.c.l.b16 %v4913
        %v5206 = vunpack.c.h.b16 %v4913
        %v5207 = vunpack.c.l.b16 %v4914
        %v5208 = vunpack.c.h.b16 %v4914
        %v5209 = vunpack.c.l.b16 %v4915
        %v5210 = vunpack.c.h.b16 %v4915
        %v5211 = vunpack.c.l.b16 %v4916
        %v5212 = vunpack.c.h.b16 %v4916
        %v5213 = vunpack.c.l.b16 %v4917
        %v5214 = vunpack.c.h.b16 %v4917
        %v5215 = vunpack.c.l.b16 %v4918
        %v5216 = vunpack.c.h.b16 %v4918
        %v5217 = vunpack.c.l.b16 %v4919
        %v5218 = vunpack.c.h.b16 %v4919
        %v5219 = vunpack.c.l.b16 %v4920
        %v5220 = vunpack.c.h.b16 %v4920
        %v5221 = vunpack.c.l.b16 %v4921
        %v5222 = vunpack.c.h.b16 %v4921
        %v5223 = vunpack.c.l.b16 %v4922
        %v5224 = vunpack.c.h.b16 %v4922
        %v5225 = vunpack.c.l.b16 %v4923
        %v5226 = vunpack.c.h.b16 %v4923
        %v5227 = vunpack.c.l.b16 %v4924
        %v5228 = vunpack.c.h.b16 %v4924
        %v5229 = vunpack.c.l.b16 %v4925
        %v5230 = vunpack.c.h.b16 %v4925
        %v5231 = vunpack.c.l.b16 %v4926
        %v5232 = vunpack.c.h.b16 %v4926
        %v5233 = vunpack.c.l.b16 %v4927
        %v5234 = vunpack.c.h.b16 %v4927
        %v5235 = vunpack.c.l.b16 %v4928
        %v5236 = vunpack.c.h.b16 %v4928
        %v5237 = vunpack.c.l.b16 %v4929
        %v5238 = vunpack.c.h.b16 %v4929
        %v5239 = vunpack.c.l.b16 %v4930
        %v5240 = vunpack.c.h.b16 %v4930
        %v5241 = vunpack.c.l.b16 %v4931
        %v5242 = vunpack.c.h.b16 %v4931
        %v5243 = vunpack.c.l.b16 %v4932
        %v5244 = vunpack.c.h.b16 %v4932
        %v5245 = vunpack.c.l.b16 %v4933
        %v5246 = vunpack.c.h.b16 %v4933
        %v5247 = vunpack.c.l.b16 %v4934
        %v5248 = vunpack.c.h.b16 %v4934
        %v5249 = vunpack.c.l.b16 %v4935
        %v5250 = vunpack.c.h.b16 %v4935
        %v5251 = vunpack.c.l.b16 %v4936
        %v5252 = vunpack.c.h.b16 %v4936
        %v5253 = vunpack.c.l.b16 %v4937
        %v5254 = vunpack.c.h.b16 %v4937
        %v5255 = vunpack.c.l.b16 %v4938
        %v5256 = vunpack.c.h.b16 %v4938
        %v5257 = vunpack.c.l.b16 %v4939
        %v5258 = vunpack.c.h.b16 %v4939
        %v5259 = vunpack.c.l.b16 %v4940
        %v5260 = vunpack.c.h.b16 %v4940
        %v5261 = vunpack.c.l.b16 %v4941
        %v5262 = vunpack.c.h.b16 %v4941
        %v5263 = vunpack.c.l.b16 %v4942
        %v5264 = vunpack.c.h.b16 %v4942
        %v5265 = vunpack.c.l.b16 %v4943
        %v5266 = vunpack.c.h.b16 %v4943
        %v5267 = vunpack.c.l.b16 %v4944
        %v5268 = vunpack.c.h.b16 %v4944
        %v5269 = vunpack.c.l.b16 %v4945
        %v5270 = vunpack.c.h.b16 %v4945
        %v5271 = vunpack.c.l.b16 %v4946
        %v5272 = vunpack.c.h.b16 %v4946
        %v5273 = vunpack.c.l.b16 %v4947
        %v5274 = vunpack.c.h.b16 %v4947
        %v5275 = vunpack.c.l.b16 %v4948
        %v5276 = vunpack.c.h.b16 %v4948
        %v5277 = vunpack.c.l.b16 %v4949
        %v5278 = vunpack.c.h.b16 %v4949
        %v5279 = vunpack.c.l.b16 %v4950
        %v5280 = vunpack.c.h.b16 %v4950
        %v5281 = vunpack.c.l.b16 %v4951
        %v5282 = vunpack.c.h.b16 %v4951
        %v5283 = vunpack.c.l.b16 %v4952
        %v5284 = vunpack.c.h.b16 %v4952
        %v5285 = vpack.c.b16 %v5159, %v5157
        %v5286 = vpack.c.b16 %v5160, %v5158
        %v5287 = vpack.c.b16 %v5163, %v5161
        %v5288 = vpack.c.b16 %v5164, %v5162
        %v5289 = vpack.c.b16 %v5167, %v5165
        %v5290 = vpack.c.b16 %v5168, %v5166
        %v5291 = vpack.c.b16 %v5171, %v5169
        %v5292 = vpack.c.b16 %v5172, %v5170
        %v5293 = vpack.c.b16 %v5175, %v5173
        %v5294 = vpack.c.b16 %v5176, %v5174
        %v5295 = vpack.c.b16 %v5179, %v5177
        %v5296 = vpack.c.b16 %v5180, %v5178
        %v5297 = vpack.c.b16 %v5183, %v5181
        %v5298 = vpack.c.b16 %v5184, %v5182
        %v5299 = vpack.c.b16 %v5187, %v5185
        %v5300 = vpack.c.b16 %v5188, %v5186
        %v5301 = vpack.c.b16 %v5191, %v5189
        %v5302 = vpack.c.b16 %v5192, %v5190
        %v5303 = vpack.c.b16 %v5195, %v5193
        %v5304 = vpack.c.b16 %v5196, %v5194
        %v5305 = vpack.c.b16 %v5199, %v5197
        %v5306 = vpack.c.b16 %v5200, %v5198
        %v5307 = vpack.c.b16 %v5203, %v5201
        %v5308 = vpack.c.b16 %v5204, %v5202
        %v5309 = vpack.c.b16 %v5207, %v5205
        %v5310 = vpack.c.b16 %v5208, %v5206
        %v5311 = vpack.c.b16 %v5211, %v5209
        %v5312 = vpack.c.b16 %v5212, %v5210
        %v5313 = vpack.c.b16 %v5215, %v5213
        %v5314 = vpack.c.b16 %v5216, %v5214
        %v5315 = vpack.c.b16 %v5219, %v5217
        %v5316 = vpack.c.b16 %v5220, %v5218
        %v5317 = vpack.c.b16 %v5223, %v5221
        %v5318 = vpack.c.b16 %v5224, %v5222
        %v5319 = vpack.c.b16 %v5227, %v5225
        %v5320 = vpack.c.b16 %v5228, %v5226
        %v5321 = vpack.c.b16 %v5231, %v5229
        %v5322 = vpack.c.b16 %v5232, %v5230
        %v5323 = vpack.c.b16 %v5235, %v5233
        %v5324 = vpack.c.b16 %v5236, %v5234
        %v5325 = vpack.c.b16 %v5239, %v5237
        %v5326 = vpack.c.b16 %v5240, %v5238
        %v5327 = vpack.c.b16 %v5243, %v5241
        %v5328 = vpack.c.b16 %v5244, %v5242
        %v5329 = vpack.c.b16 %v5247, %v5245
        %v5330 = vpack.c.b16 %v5248, %v5246
        %v5331 = vpack.c.b16 %v5251, %v5249
        %v5332 = vpack.c.b16 %v5252, %v5250
        %v5333 = vpack.c.b16 %v5255, %v5253
        %v5334 = vpack.c.b16 %v5256, %v5254
        %v5335 = vpack.c.b16 %v5259, %v5257
        %v5336 = vpack.c.b16 %v5260, %v5258
        %v5337 = vpack.c.b16 %v5263, %v5261
        %v5338 = vpack.c.b16 %v5264, %v5262
        %v5339 = vpack.c.b16 %v5267, %v5265
        %v5340 = vpack.c.b16 %v5268, %v5266
        %v5341 = vpack.c.b16 %v5271, %v5269
        %v5342 = vpack.c.b16 %v5272, %v5270
        %v5343 = vpack.c.b16 %v5275, %v5273
        %v5344 = vpack.c.b16 %v5276, %v5274
        %v5345 = vpack.c.b16 %v5279, %v5277
        %v5346 = vpack.c.b16 %v5280, %v5278
        %v5347 = vpack.c.b16 %v5283, %v5281
        %v5348 = vpack.c.b16 %v5284, %v5282
        %5413 = vmatprep.subr.bf16.mxu0 %v5300
        %5414 = vmatpush1.bf16.msra.mxu0 %v5299
        %5415 = vmatprep.subr.bf16.mxu0 %v5298
        %5416 = vmatpush1.bf16.msra.mxu0 %v5297
        %5417 = vmatprep.subr.bf16.mxu0 %v5296
        %5418 = vmatpush1.bf16.msra.mxu0 %v5295
        %5419 = vmatprep.subr.bf16.mxu0 %v5294
        %5420 = vmatpush1.bf16.msra.mxu0 %v5293
        %5421 = vmatprep.subr.bf16.mxu0 %v5292
        %5422 = vmatpush1.bf16.msra.mxu0 %v5291
        %5423 = vmatprep.subr.bf16.mxu0 %v5290
        %5424 = vmatpush1.bf16.msra.mxu0 %v5289
        %5425 = vmatprep.subr.bf16.mxu0 %v5288
        %5426 = vmatpush1.bf16.msra.mxu0 %v5287
        %5427 = vmatprep.subr.bf16.mxu0 %v5286
        %5428 = vmatpush1.bf16.msra.mxu0 %v5285
        %5429 = vmatprep.subr.bf16.mxu0 %v5316
        %5430 = vmatpush2.bf16.msra.mxu0 %v5315
        %5431 = vmatprep.subr.bf16.mxu0 %v5314
        %5432 = vmatpush2.bf16.msra.mxu0 %v5313
        %5433 = vmatprep.subr.bf16.mxu0 %v5312
        %5434 = vmatpush2.bf16.msra.mxu0 %v5311
        %5435 = vmatprep.subr.bf16.mxu0 %v5310
        %5436 = vmatpush2.bf16.msra.mxu0 %v5309
        %5437 = vmatprep.subr.bf16.mxu0 %v5308
        %5438 = vmatpush2.bf16.msra.mxu0 %v5307
        %5439 = vmatprep.subr.bf16.mxu0 %v5306
        %5440 = vmatpush2.bf16.msra.mxu0 %v5305
        %5441 = vmatprep.subr.bf16.mxu0 %v5304
        %5442 = vmatpush2.bf16.msra.mxu0 %v5303
        %5443 = vmatprep.subr.bf16.mxu0 %v5302
        %5444 = vmatpush2.bf16.msra.mxu0 %v5301
        %5445 = vmatprep.mubr.bf16.mxu0 %v4976
        %5446 = vmatmul.mubr.bf16.gmra.mxu0 %v4964
        %v5447 = vpop.f32.mrf.mxu0
        %v5448 = vadd.f32 0.0, %v5447
        %v5449 = vpop.f32.mrf.mxu0
        %v5450 = vadd.f32 0.0, %v5449
        %v5451 = vpop.f32.mrf.mxu0
        %v5452 = vadd.f32 0.0, %v5451
        %v5453 = vpop.f32.mrf.mxu0
        %v5454 = vadd.f32 0.0, %v5453
        %5455 = vmatprep.mubr.bf16.mxu0 %v5016
        %5456 = vmatmul.mubr.bf16.gmra.mxu0 %v5008
        %v5457 = vpop.f32.mrf.mxu0
        %v5458 = vadd.f32 0.0, %v5457
        %v5459 = vpop.f32.mrf.mxu0
        %v5460 = vadd.f32 0.0, %v5459
        %v5461 = vpop.f32.mrf.mxu0
        %v5462 = vadd.f32 0.0, %v5461
        %v5463 = vpop.f32.mrf.mxu0
        %v5464 = vadd.f32 0.0, %v5463
        %5465 = vmatprep.mubr.bf16.mxu0 %v5048
        %5466 = vmatmul.mubr.bf16.gmra.mxu0 %v5040
        %v5467 = vpop.f32.mrf.mxu0
        %v5468 = vadd.f32 0.0, %v5467
        %v5469 = vpop.f32.mrf.mxu0
        %v5470 = vadd.f32 0.0, %v5469
        %v5471 = vpop.f32.mrf.mxu0
        %v5472 = vadd.f32 0.0, %v5471
        %v5473 = vpop.f32.mrf.mxu0
        %v5474 = vadd.f32 0.0, %v5473
        %5475 = vmatprep.mubr.bf16.mxu0 %v5070
        %5476 = vmatmul.mubr.bf16.gmra.mxu0 %v5067
        %v5477 = vpop.f32.mrf.mxu0
        %v5478 = vadd.f32 0.0, %v5477
        %v5479 = vpop.f32.mrf.mxu0
        %v5480 = vadd.f32 0.0, %v5479
        %v5481 = vpop.f32.mrf.mxu0
        %v5482 = vpop.f32.mrf.mxu0
        %5483 = vdwg.mxu0
        %5484 = vmatprep.subr.bf16.mxu0 %v5332
        %5485 = vmatpush1.bf16.msra.mxu0 %v5331
        %5486 = vmatprep.subr.bf16.mxu0 %v5330
        %5487 = vmatpush1.bf16.msra.mxu0 %v5329
        %5488 = vmatprep.subr.bf16.mxu0 %v5328
        %5489 = vmatpush1.bf16.msra.mxu0 %v5327
        %5490 = vmatprep.subr.bf16.mxu0 %v5326
        %5491 = vmatpush1.bf16.msra.mxu0 %v5325
        %5492 = vmatprep.subr.bf16.mxu0 %v5324
        %5493 = vmatpush1.bf16.msra.mxu0 %v5323
        %5494 = vmatprep.subr.bf16.mxu0 %v5322
        %5495 = vmatpush1.bf16.msra.mxu0 %v5321
        %5496 = vmatprep.subr.bf16.mxu0 %v5320
        %5497 = vmatpush1.bf16.msra.mxu0 %v5319
        %5498 = vmatprep.subr.bf16.mxu0 %v5318
        %5499 = vmatpush1.bf16.msra.mxu0 %v5317
        %5500 = vmatprep.subr.bf16.mxu0 %v5348
        %5501 = vmatpush2.bf16.msra.mxu0 %v5347
        %5502 = vmatprep.subr.bf16.mxu0 %v5346
        %5503 = vmatpush2.bf16.msra.mxu0 %v5345
        %5504 = vmatprep.subr.bf16.mxu0 %v5344
        %5505 = vmatpush2.bf16.msra.mxu0 %v5343
        %5506 = vmatprep.subr.bf16.mxu0 %v5342
        %5507 = vmatpush2.bf16.msra.mxu0 %v5341
        %5508 = vmatprep.subr.bf16.mxu0 %v5340
        %5509 = vmatpush2.bf16.msra.mxu0 %v5339
        %5510 = vmatprep.subr.bf16.mxu0 %v5338
        %5511 = vmatpush2.bf16.msra.mxu0 %v5337
        %5512 = vmatprep.subr.bf16.mxu0 %v5336
        %5513 = vmatpush2.bf16.msra.mxu0 %v5335
        %5514 = vmatprep.subr.bf16.mxu0 %v5334
        %5515 = vmatpush2.bf16.msra.mxu0 %v5333
        %5516 = vmatprep.mubr.bf16.mxu0 %v5000
        %5517 = vmatmul.mubr.bf16.gmra.mxu0 %v4988
        %v5518 = vpop.f32.mrf.mxu0
        %v5519 = vadd.f32 %v5448, %v5518
        %v5520 = vpop.f32.mrf.mxu0
        %v5521 = vadd.f32 %v5450, %v5520
        %v5522 = vpop.f32.mrf.mxu0
        %v5523 = vadd.f32 %v5452, %v5522
        %v5524 = vpop.f32.mrf.mxu0
        %v5525 = vadd.f32 %v5454, %v5524
        %5526 = vmatprep.mubr.bf16.mxu0 %v5032
        %5527 = vmatmul.mubr.bf16.gmra.mxu0 %v5024
        %v5528 = vpop.f32.mrf.mxu0
        %v5529 = vadd.f32 %v5458, %v5528
        %v5530 = vpop.f32.mrf.mxu0
        %v5531 = vadd.f32 %v5460, %v5530
        %v5532 = vpop.f32.mrf.mxu0
        %v5533 = vadd.f32 %v5462, %v5532
        %v5534 = vpop.f32.mrf.mxu0
        %v5535 = vadd.f32 %v5464, %v5534
        %5536 = vmatprep.mubr.bf16.mxu0 %v5064
        %5537 = vmatmul.mubr.bf16.gmra.mxu0 %v5056
        %v5538 = vpop.f32.mrf.mxu0
        %v5539 = vadd.f32 %v5468, %v5538
        %v5540 = vpop.f32.mrf.mxu0
        %v5541 = vadd.f32 %v5470, %v5540
        %v5542 = vpop.f32.mrf.mxu0
        %v5543 = vadd.f32 %v5472, %v5542
        %v5544 = vpop.f32.mrf.mxu0
        %v5545 = vadd.f32 %v5474, %v5544
        %5546 = vmatprep.mubr.bf16.mxu0 %v5076
        %5547 = vmatmul.mubr.bf16.gmra.mxu0 %v5073
        %v5548 = vpop.f32.mrf.mxu0
        %v5549 = vadd.f32 %v5478, %v5548
        %v5550 = vpop.f32.mrf.mxu0
        %v5551 = vadd.f32 %v5480, %v5550
        %v5552 = vpop.f32.mrf.mxu0
        %v5553 = vpop.f32.mrf.mxu0
        %5554 = vdwg.mxu0
        %v5555 = vld [vmem:[%s157] sm:$0xff]
        %v5556 = vld [vmem:[%s157 + $0x8] sm:$0xff]
        %v5557 = vld [vmem:[%s157 + $0x10] sm:$0xff]
        %v5558 = vld [vmem:[%s157 + $0x18] sm:$0xff]
        %v5559 = vld [vmem:[%s157 + $0x20] sm:$0xff]
        %v5560 = vld [vmem:[%s157 + $0x28] sm:$0xff]
        %v5561 = vld [vmem:[%s157 + $0x30] sm:$0xff]
        %v5562 = vld [vmem:[%s157 + $0x38] sm:$0xff]
        %v5563 = vld [vmem:[%s157 + $0x40] sm:$0xff]
        %v5564 = vld [vmem:[%s157 + $0x48] sm:$0xff]
        %v5565 = vld [vmem:[%s157 + $0x50] sm:$0xff]
        %v5566 = vld [vmem:[%s157 + $0x58] sm:$0xff]
        %v5567 = vld [vmem:[%s157 + $0x60] sm:$0xff]
        %v5568 = vld [vmem:[%s157 + $0x68] sm:$0xff]
        %v5569 = vadd.f32 %v5555, %v5519
        %v5570 = vadd.f32 %v5556, %v5521
        %v5571 = vadd.f32 %v5557, %v5523
        %v5572 = vadd.f32 %v5558, %v5525
        %v5573 = vadd.f32 %v5559, %v5529
        %v5574 = vadd.f32 %v5560, %v5531
        %v5575 = vadd.f32 %v5561, %v5533
        %v5576 = vadd.f32 %v5562, %v5535
        %v5577 = vadd.f32 %v5563, %v5539
        %v5578 = vadd.f32 %v5564, %v5541
        %v5579 = vadd.f32 %v5565, %v5543
        %v5580 = vadd.f32 %v5566, %v5545
        %v5581 = vadd.f32 %v5567, %v5549
        %v5582 = vadd.f32 %v5568, %v5551
        %5583 = vst [vmem:[%s157] sm:$0xff] %v5569
        %5584 = vst [vmem:[%s157 + $0x8] sm:$0xff] %v5570
        %5585 = vst [vmem:[%s157 + $0x10] sm:$0xff] %v5571
        %5586 = vst [vmem:[%s157 + $0x18] sm:$0xff] %v5572
        %5587 = vst [vmem:[%s157 + $0x20] sm:$0xff] %v5573
        %5588 = vst [vmem:[%s157 + $0x28] sm:$0xff] %v5574
        %5589 = vst [vmem:[%s157 + $0x30] sm:$0xff] %v5575
        %5590 = vst [vmem:[%s157 + $0x38] sm:$0xff] %v5576
        %5591 = vst [vmem:[%s157 + $0x40] sm:$0xff] %v5577
        %5592 = vst [vmem:[%s157 + $0x48] sm:$0xff] %v5578
        %5593 = vst [vmem:[%s157 + $0x50] sm:$0xff] %v5579
        %5594 = vst [vmem:[%s157 + $0x58] sm:$0xff] %v5580
        %5595 = vst [vmem:[%s157 + $0x60] sm:$0xff] %v5581
        %5596 = vst [vmem:[%s157 + $0x68] sm:$0xff] %v5582
        %v5597 = vld [vmem:[%s0 + $0x40] sm:$0xfc]
        %v5598 = vld [vmem:[%s0 + $0x48] sm:$0xfc]
        %v5599 = vld [vmem:[%s0 + $0x50] sm:$0xfc]
        %v5600 = vld [vmem:[%s0 + $0x58] sm:$0xfc]
        %v5601 = vld [vmem:[%s0 + $0x60] sm:$0xff]
        %v5602 = vld [vmem:[%s0 + $0x68] sm:$0xff]
        %v5603 = vld [vmem:[%s0 + $0x70] sm:$0xff]
        %v5604 = vld [vmem:[%s0 + $0x78] sm:$0xff]
        %v5605 = vld [vmem:[%s0 + $0x80] sm:$0xff]
        %v5606 = vld [vmem:[%s0 + $0x88] sm:$0xff]
        %v5607 = vld [vmem:[%s0 + $0x90] sm:$0xff]
        %v5608 = vld [vmem:[%s0 + $0x98] sm:$0xff]
        %v5609 = vld [vmem:[%s0 + $0xa0] sm:$0xff]
        %v5610 = vld [vmem:[%s0 + $0xa8] sm:$0xff]
        %v5611 = vld [vmem:[%s0 + $0xb0] sm:$0xff]
        %v5612 = vld [vmem:[%s0 + $0xb8] sm:$0xff]
        %v5613 = vld [vmem:[%s0 + $0xc0] sm:$0xff]
        %v5614 = vld [vmem:[%s0 + $0xc8] sm:$0xff]
        %v5615 = vld [vmem:[%s0 + $0xd0] sm:$0xff]
        %v5616 = vld [vmem:[%s0 + $0xd8] sm:$0xff]
        %v5617 = vld [vmem:[%s0 + $0xe0] sm:$0xff]
        %v5618 = vld [vmem:[%s0 + $0xe8] sm:$0xff]
        %v5619 = vld [vmem:[%s0 + $0xf0] sm:$0xff]
        %v5620 = vld [vmem:[%s0 + $0xf8] sm:$0xff]
        %v5621 = vld [vmem:[%s0 + $0x100] sm:$0xff]
        %v5622 = vld [vmem:[%s0 + $0x108] sm:$0xff]
        %v5623 = vld [vmem:[%s0 + $0x110] sm:$0xff]
        %v5624 = vld [vmem:[%s0 + $0x118] sm:$0xff]
        %v5625 = vld [vmem:[%s0 + $0x120] sm:$0x3]
        %v5626 = vld [vmem:[%s0 + $0x128] sm:$0x3]
        %v5627 = vld [vmem:[%s0 + $0x130] sm:$0x3]
        %v5628 = vld [vmem:[%s0 + $0x138] sm:$0x3]
        %v5629 = vpack.c.bf16 %v5601, %v5597
        %v5630 = vpack.c.bf16 %v5602, %v5598
        %v5631 = vpack.c.bf16 %v5603, %v5599
        %v5632 = vpack.c.bf16 %v5604, %v5600
        %v5633 = vpack.c.bf16 %v5609, %v5605
        %v5634 = vpack.c.bf16 %v5610, %v5606
        %v5635 = vpack.c.bf16 %v5611, %v5607
        %v5636 = vpack.c.bf16 %v5612, %v5608
        %v5637 = vpack.c.bf16 %v5617, %v5613
        %v5638 = vpack.c.bf16 %v5618, %v5614
        %v5639 = vpack.c.bf16 %v5619, %v5615
        %v5640 = vpack.c.bf16 %v5620, %v5616
        %v5641 = vpack.c.bf16 %v5625, %v5621
        %v5642 = vpack.c.bf16 %v5626, %v5622
        %v5643 = vpack.c.bf16 %v5627, %v5623
        %v5644 = vpack.c.bf16 %v5628, %v5624
        %s5645 = scalar_lea.vmem %s138, 4096 [#allocation2]
        %v5646 = vld [vmem:[%s5645] sm:$0xff]
        %v5647 = vld [vmem:[%s5645 + $0x8] sm:$0xff]
        %v5648 = vld [vmem:[%s5645 + $0x10] sm:$0xff]
        %v5649 = vld [vmem:[%s5645 + $0x18] sm:$0xff]
        %v5650 = vld [vmem:[%s5645 + $0x20] sm:$0xff]
        %v5651 = vld [vmem:[%s5645 + $0x28] sm:$0xff]
        %v5652 = vld [vmem:[%s5645 + $0x30] sm:$0xff]
        %v5653 = vld [vmem:[%s5645 + $0x38] sm:$0xff]
        %v5654 = vld [vmem:[%s5645 + $0x40] sm:$0xff]
        %v5655 = vld [vmem:[%s5645 + $0x48] sm:$0xff]
        %v5656 = vld [vmem:[%s5645 + $0x50] sm:$0xff]
        %v5657 = vld [vmem:[%s5645 + $0x58] sm:$0xff]
        %v5658 = vld [vmem:[%s5645 + $0x60] sm:$0xff]
        %v5659 = vld [vmem:[%s5645 + $0x68] sm:$0xff]
        %v5660 = vld [vmem:[%s5645 + $0x70] sm:$0xff]
        %v5661 = vld [vmem:[%s5645 + $0x78] sm:$0xff]
        %v5662 = vld [vmem:[%s5645 + $0x80] sm:$0xff]
        %v5663 = vld [vmem:[%s5645 + $0x88] sm:$0xff]
        %v5664 = vld [vmem:[%s5645 + $0x90] sm:$0xff]
        %v5665 = vld [vmem:[%s5645 + $0x98] sm:$0xff]
        %v5666 = vld [vmem:[%s5645 + $0xa0] sm:$0xff]
        %v5667 = vld [vmem:[%s5645 + $0xa8] sm:$0xff]
        %v5668 = vld [vmem:[%s5645 + $0xb0] sm:$0xff]
        %v5669 = vld [vmem:[%s5645 + $0xb8] sm:$0xff]
        %v5670 = vld [vmem:[%s5645 + $0xc0] sm:$0xff]
        %v5671 = vld [vmem:[%s5645 + $0xc8] sm:$0xff]
        %v5672 = vld [vmem:[%s5645 + $0xd0] sm:$0xff]
        %v5673 = vld [vmem:[%s5645 + $0xd8] sm:$0xff]
        %v5674 = vld [vmem:[%s5645 + $0xe0] sm:$0xff]
        %v5675 = vld [vmem:[%s5645 + $0xe8] sm:$0xff]
        %v5676 = vld [vmem:[%s5645 + $0xf0] sm:$0xff]
        %v5677 = vld [vmem:[%s5645 + $0xf8] sm:$0xff]
        %v5678 = vld [vmem:[%s5645 + $0x100] sm:$0xff]
        %v5679 = vld [vmem:[%s5645 + $0x108] sm:$0xff]
        %v5680 = vld [vmem:[%s5645 + $0x110] sm:$0xff]
        %v5681 = vld [vmem:[%s5645 + $0x118] sm:$0xff]
        %v5682 = vld [vmem:[%s5645 + $0x120] sm:$0xff]
        %v5683 = vld [vmem:[%s5645 + $0x128] sm:$0xff]
        %v5684 = vld [vmem:[%s5645 + $0x130] sm:$0xff]
        %v5685 = vld [vmem:[%s5645 + $0x138] sm:$0xff]
        %v5686 = vld [vmem:[%s5645 + $0x140] sm:$0xff]
        %v5687 = vld [vmem:[%s5645 + $0x148] sm:$0xff]
        %v5688 = vld [vmem:[%s5645 + $0x150] sm:$0xff]
        %v5689 = vld [vmem:[%s5645 + $0x158] sm:$0xff]
        %v5690 = vld [vmem:[%s5645 + $0x160] sm:$0xff]
        %v5691 = vld [vmem:[%s5645 + $0x168] sm:$0xff]
        %v5692 = vld [vmem:[%s5645 + $0x170] sm:$0xff]
        %v5693 = vld [vmem:[%s5645 + $0x178] sm:$0xff]
        %v5694 = vld [vmem:[%s5645 + $0x180] sm:$0xff]
        %v5695 = vld [vmem:[%s5645 + $0x188] sm:$0xff]
        %v5696 = vld [vmem:[%s5645 + $0x190] sm:$0xff]
        %v5697 = vld [vmem:[%s5645 + $0x198] sm:$0xff]
        %v5698 = vld [vmem:[%s5645 + $0x1a0] sm:$0xff]
        %v5699 = vld [vmem:[%s5645 + $0x1a8] sm:$0xff]
        %v5700 = vld [vmem:[%s5645 + $0x1b0] sm:$0xff]
        %v5701 = vld [vmem:[%s5645 + $0x1b8] sm:$0xff]
        %v5702 = vld [vmem:[%s5645 + $0x1c0] sm:$0xff]
        %v5703 = vld [vmem:[%s5645 + $0x1c8] sm:$0xff]
        %v5704 = vld [vmem:[%s5645 + $0x1d0] sm:$0xff]
        %v5705 = vld [vmem:[%s5645 + $0x1d8] sm:$0xff]
        %v5706 = vld [vmem:[%s5645 + $0x1e0] sm:$0xff]
        %v5707 = vld [vmem:[%s5645 + $0x1e8] sm:$0xff]
        %v5708 = vld [vmem:[%s5645 + $0x1f0] sm:$0xff]
        %v5709 = vld [vmem:[%s5645 + $0x1f8] sm:$0xff]
        %v5726 = vrot.slane %v5629, 1
        %v5727 = vrot.slane %v5633, 1
        %v5728 = vsel %vm1631, %v5726, %v5727
        %v5729 = vrot.slane %v5630, 1
        %v5730 = vrot.slane %v5634, 1
        %v5731 = vsel %vm1631, %v5729, %v5730
        %v5732 = vrot.slane %v5631, 1
        %v5733 = vrot.slane %v5635, 1
        %v5734 = vsel %vm1631, %v5732, %v5733
        %v5735 = vrot.slane %v5632, 1
        %v5736 = vrot.slane %v5636, 1
        %v5737 = vsel %vm1631, %v5735, %v5736
        %v5738 = vrot.slane %v5637, 1
        %v5739 = vsel %vm1631, %v5727, %v5738
        %v5740 = vrot.slane %v5638, 1
        %v5741 = vsel %vm1631, %v5730, %v5740
        %v5742 = vrot.slane %v5639, 1
        %v5743 = vsel %vm1631, %v5733, %v5742
        %v5744 = vrot.slane %v5640, 1
        %v5745 = vsel %vm1631, %v5736, %v5744
        %v5746 = vrot.slane %v5641, 1
        %v5747 = vsel %vm1631, %v5738, %v5746
        %v5748 = vrot.slane %v5642, 1
        %v5749 = vsel %vm1631, %v5740, %v5748
        %v5750 = vrot.slane %v5643, 1
        %v5751 = vsel %vm1631, %v5742, %v5750
        %v5752 = vrot.slane %v5644, 1
        %v5753 = vsel %vm1631, %v5744, %v5752
        %v5834 = vunpack.c.l.b16 %v5646
        %v5835 = vunpack.c.h.b16 %v5646
        %v5836 = vunpack.c.l.b16 %v5647
        %v5837 = vunpack.c.h.b16 %v5647
        %v5838 = vunpack.c.l.b16 %v5648
        %v5839 = vunpack.c.h.b16 %v5648
        %v5840 = vunpack.c.l.b16 %v5649
        %v5841 = vunpack.c.h.b16 %v5649
        %v5842 = vunpack.c.l.b16 %v5650
        %v5843 = vunpack.c.h.b16 %v5650
        %v5844 = vunpack.c.l.b16 %v5651
        %v5845 = vunpack.c.h.b16 %v5651
        %v5846 = vunpack.c.l.b16 %v5652
        %v5847 = vunpack.c.h.b16 %v5652
        %v5848 = vunpack.c.l.b16 %v5653
        %v5849 = vunpack.c.h.b16 %v5653
        %v5850 = vunpack.c.l.b16 %v5654
        %v5851 = vunpack.c.h.b16 %v5654
        %v5852 = vunpack.c.l.b16 %v5655
        %v5853 = vunpack.c.h.b16 %v5655
        %v5854 = vunpack.c.l.b16 %v5656
        %v5855 = vunpack.c.h.b16 %v5656
        %v5856 = vunpack.c.l.b16 %v5657
        %v5857 = vunpack.c.h.b16 %v5657
        %v5858 = vunpack.c.l.b16 %v5658
        %v5859 = vunpack.c.h.b16 %v5658
        %v5860 = vunpack.c.l.b16 %v5659
        %v5861 = vunpack.c.h.b16 %v5659
        %v5862 = vunpack.c.l.b16 %v5660
        %v5863 = vunpack.c.h.b16 %v5660
        %v5864 = vunpack.c.l.b16 %v5661
        %v5865 = vunpack.c.h.b16 %v5661
        %v5866 = vunpack.c.l.b16 %v5662
        %v5867 = vunpack.c.h.b16 %v5662
        %v5868 = vunpack.c.l.b16 %v5663
        %v5869 = vunpack.c.h.b16 %v5663
        %v5870 = vunpack.c.l.b16 %v5664
        %v5871 = vunpack.c.h.b16 %v5664
        %v5872 = vunpack.c.l.b16 %v5665
        %v5873 = vunpack.c.h.b16 %v5665
        %v5874 = vunpack.c.l.b16 %v5666
        %v5875 = vunpack.c.h.b16 %v5666
        %v5876 = vunpack.c.l.b16 %v5667
        %v5877 = vunpack.c.h.b16 %v5667
        %v5878 = vunpack.c.l.b16 %v5668
        %v5879 = vunpack.c.h.b16 %v5668
        %v5880 = vunpack.c.l.b16 %v5669
        %v5881 = vunpack.c.h.b16 %v5669
        %v5882 = vunpack.c.l.b16 %v5670
        %v5883 = vunpack.c.h.b16 %v5670
        %v5884 = vunpack.c.l.b16 %v5671
        %v5885 = vunpack.c.h.b16 %v5671
        %v5886 = vunpack.c.l.b16 %v5672
        %v5887 = vunpack.c.h.b16 %v5672
        %v5888 = vunpack.c.l.b16 %v5673
        %v5889 = vunpack.c.h.b16 %v5673
        %v5890 = vunpack.c.l.b16 %v5674
        %v5891 = vunpack.c.h.b16 %v5674
        %v5892 = vunpack.c.l.b16 %v5675
        %v5893 = vunpack.c.h.b16 %v5675
        %v5894 = vunpack.c.l.b16 %v5676
        %v5895 = vunpack.c.h.b16 %v5676
        %v5896 = vunpack.c.l.b16 %v5677
        %v5897 = vunpack.c.h.b16 %v5677
        %v5898 = vunpack.c.l.b16 %v5678
        %v5899 = vunpack.c.h.b16 %v5678
        %v5900 = vunpack.c.l.b16 %v5679
        %v5901 = vunpack.c.h.b16 %v5679
        %v5902 = vunpack.c.l.b16 %v5680
        %v5903 = vunpack.c.h.b16 %v5680
        %v5904 = vunpack.c.l.b16 %v5681
        %v5905 = vunpack.c.h.b16 %v5681
        %v5906 = vunpack.c.l.b16 %v5682
        %v5907 = vunpack.c.h.b16 %v5682
        %v5908 = vunpack.c.l.b16 %v5683
        %v5909 = vunpack.c.h.b16 %v5683
        %v5910 = vunpack.c.l.b16 %v5684
        %v5911 = vunpack.c.h.b16 %v5684
        %v5912 = vunpack.c.l.b16 %v5685
        %v5913 = vunpack.c.h.b16 %v5685
        %v5914 = vunpack.c.l.b16 %v5686
        %v5915 = vunpack.c.h.b16 %v5686
        %v5916 = vunpack.c.l.b16 %v5687
        %v5917 = vunpack.c.h.b16 %v5687
        %v5918 = vunpack.c.l.b16 %v5688
        %v5919 = vunpack.c.h.b16 %v5688
        %v5920 = vunpack.c.l.b16 %v5689
        %v5921 = vunpack.c.h.b16 %v5689
        %v5922 = vunpack.c.l.b16 %v5690
        %v5923 = vunpack.c.h.b16 %v5690
        %v5924 = vunpack.c.l.b16 %v5691
        %v5925 = vunpack.c.h.b16 %v5691
        %v5926 = vunpack.c.l.b16 %v5692
        %v5927 = vunpack.c.h.b16 %v5692
        %v5928 = vunpack.c.l.b16 %v5693
        %v5929 = vunpack.c.h.b16 %v5693
        %v5930 = vunpack.c.l.b16 %v5694
        %v5931 = vunpack.c.h.b16 %v5694
        %v5932 = vunpack.c.l.b16 %v5695
        %v5933 = vunpack.c.h.b16 %v5695
        %v5934 = vunpack.c.l.b16 %v5696
        %v5935 = vunpack.c.h.b16 %v5696
        %v5936 = vunpack.c.l.b16 %v5697
        %v5937 = vunpack.c.h.b16 %v5697
        %v5938 = vunpack.c.l.b16 %v5698
        %v5939 = vunpack.c.h.b16 %v5698
        %v5940 = vunpack.c.l.b16 %v5699
        %v5941 = vunpack.c.h.b16 %v5699
        %v5942 = vunpack.c.l.b16 %v5700
        %v5943 = vunpack.c.h.b16 %v5700
        %v5944 = vunpack.c.l.b16 %v5701
        %v5945 = vunpack.c.h.b16 %v5701
        %v5946 = vunpack.c.l.b16 %v5702
        %v5947 = vunpack.c.h.b16 %v5702
        %v5948 = vunpack.c.l.b16 %v5703
        %v5949 = vunpack.c.h.b16 %v5703
        %v5950 = vunpack.c.l.b16 %v5704
        %v5951 = vunpack.c.h.b16 %v5704
        %v5952 = vunpack.c.l.b16 %v5705
        %v5953 = vunpack.c.h.b16 %v5705
        %v5954 = vunpack.c.l.b16 %v5706
        %v5955 = vunpack.c.h.b16 %v5706
        %v5956 = vunpack.c.l.b16 %v5707
        %v5957 = vunpack.c.h.b16 %v5707
        %v5958 = vunpack.c.l.b16 %v5708
        %v5959 = vunpack.c.h.b16 %v5708
        %v5960 = vunpack.c.l.b16 %v5709
        %v5961 = vunpack.c.h.b16 %v5709
        %v5962 = vpack.c.b16 %v5836, %v5834
        %v5963 = vpack.c.b16 %v5837, %v5835
        %v5964 = vpack.c.b16 %v5840, %v5838
        %v5965 = vpack.c.b16 %v5841, %v5839
        %v5966 = vpack.c.b16 %v5844, %v5842
        %v5967 = vpack.c.b16 %v5845, %v5843
        %v5968 = vpack.c.b16 %v5848, %v5846
        %v5969 = vpack.c.b16 %v5849, %v5847
        %v5970 = vpack.c.b16 %v5852, %v5850
        %v5971 = vpack.c.b16 %v5853, %v5851
        %v5972 = vpack.c.b16 %v5856, %v5854
        %v5973 = vpack.c.b16 %v5857, %v5855
        %v5974 = vpack.c.b16 %v5860, %v5858
        %v5975 = vpack.c.b16 %v5861, %v5859
        %v5976 = vpack.c.b16 %v5864, %v5862
        %v5977 = vpack.c.b16 %v5865, %v5863
        %v5978 = vpack.c.b16 %v5868, %v5866
        %v5979 = vpack.c.b16 %v5869, %v5867
        %v5980 = vpack.c.b16 %v5872, %v5870
        %v5981 = vpack.c.b16 %v5873, %v5871
        %v5982 = vpack.c.b16 %v5876, %v5874
        %v5983 = vpack.c.b16 %v5877, %v5875
        %v5984 = vpack.c.b16 %v5880, %v5878
        %v5985 = vpack.c.b16 %v5881, %v5879
        %v5986 = vpack.c.b16 %v5884, %v5882
        %v5987 = vpack.c.b16 %v5885, %v5883
        %v5988 = vpack.c.b16 %v5888, %v5886
        %v5989 = vpack.c.b16 %v5889, %v5887
        %v5990 = vpack.c.b16 %v5892, %v5890
        %v5991 = vpack.c.b16 %v5893, %v5891
        %v5992 = vpack.c.b16 %v5896, %v5894
        %v5993 = vpack.c.b16 %v5897, %v5895
        %v5994 = vpack.c.b16 %v5900, %v5898
        %v5995 = vpack.c.b16 %v5901, %v5899
        %v5996 = vpack.c.b16 %v5904, %v5902
        %v5997 = vpack.c.b16 %v5905, %v5903
        %v5998 = vpack.c.b16 %v5908, %v5906
        %v5999 = vpack.c.b16 %v5909, %v5907
        %v6000 = vpack.c.b16 %v5912, %v5910
        %v6001 = vpack.c.b16 %v5913, %v5911
        %v6002 = vpack.c.b16 %v5916, %v5914
        %v6003 = vpack.c.b16 %v5917, %v5915
        %v6004 = vpack.c.b16 %v5920, %v5918
        %v6005 = vpack.c.b16 %v5921, %v5919
        %v6006 = vpack.c.b16 %v5924, %v5922
        %v6007 = vpack.c.b16 %v5925, %v5923
        %v6008 = vpack.c.b16 %v5928, %v5926
        %v6009 = vpack.c.b16 %v5929, %v5927
        %v6010 = vpack.c.b16 %v5932, %v5930
        %v6011 = vpack.c.b16 %v5933, %v5931
        %v6012 = vpack.c.b16 %v5936, %v5934
        %v6013 = vpack.c.b16 %v5937, %v5935
        %v6014 = vpack.c.b16 %v5940, %v5938
        %v6015 = vpack.c.b16 %v5941, %v5939
        %v6016 = vpack.c.b16 %v5944, %v5942
        %v6017 = vpack.c.b16 %v5945, %v5943
        %v6018 = vpack.c.b16 %v5948, %v5946
        %v6019 = vpack.c.b16 %v5949, %v5947
        %v6020 = vpack.c.b16 %v5952, %v5950
        %v6021 = vpack.c.b16 %v5953, %v5951
        %v6022 = vpack.c.b16 %v5956, %v5954
        %v6023 = vpack.c.b16 %v5957, %v5955
        %v6024 = vpack.c.b16 %v5960, %v5958
        %v6025 = vpack.c.b16 %v5961, %v5959
        %6090 = vmatprep.subr.bf16.mxu0 %v5977
        %6091 = vmatpush1.bf16.msra.mxu0 %v5976
        %6092 = vmatprep.subr.bf16.mxu0 %v5975
        %6093 = vmatpush1.bf16.msra.mxu0 %v5974
        %6094 = vmatprep.subr.bf16.mxu0 %v5973
        %6095 = vmatpush1.bf16.msra.mxu0 %v5972
        %6096 = vmatprep.subr.bf16.mxu0 %v5971
        %6097 = vmatpush1.bf16.msra.mxu0 %v5970
        %6098 = vmatprep.subr.bf16.mxu0 %v5969
        %6099 = vmatpush1.bf16.msra.mxu0 %v5968
        %6100 = vmatprep.subr.bf16.mxu0 %v5967
        %6101 = vmatpush1.bf16.msra.mxu0 %v5966
        %6102 = vmatprep.subr.bf16.mxu0 %v5965
        %6103 = vmatpush1.bf16.msra.mxu0 %v5964
        %6104 = vmatprep.subr.bf16.mxu0 %v5963
        %6105 = vmatpush1.bf16.msra.mxu0 %v5962
        %6106 = vmatprep.subr.bf16.mxu0 %v5993
        %6107 = vmatpush2.bf16.msra.mxu0 %v5992
        %6108 = vmatprep.subr.bf16.mxu0 %v5991
        %6109 = vmatpush2.bf16.msra.mxu0 %v5990
        %6110 = vmatprep.subr.bf16.mxu0 %v5989
        %6111 = vmatpush2.bf16.msra.mxu0 %v5988
        %6112 = vmatprep.subr.bf16.mxu0 %v5987
        %6113 = vmatpush2.bf16.msra.mxu0 %v5986
        %6114 = vmatprep.subr.bf16.mxu0 %v5985
        %6115 = vmatpush2.bf16.msra.mxu0 %v5984
        %6116 = vmatprep.subr.bf16.mxu0 %v5983
        %6117 = vmatpush2.bf16.msra.mxu0 %v5982
        %6118 = vmatprep.subr.bf16.mxu0 %v5981
        %6119 = vmatpush2.bf16.msra.mxu0 %v5980
        %6120 = vmatprep.subr.bf16.mxu0 %v5979
        %6121 = vmatpush2.bf16.msra.mxu0 %v5978
        %6122 = vmatprep.mubr.bf16.mxu0 %v5731
        %6123 = vmatmul.mubr.bf16.gmra.mxu0 %v5728
        %v6124 = vpop.f32.mrf.mxu0
        %v6125 = vadd.f32 0.0, %v6124
        %v6126 = vpop.f32.mrf.mxu0
        %v6127 = vadd.f32 0.0, %v6126
        %v6128 = vpop.f32.mrf.mxu0
        %v6129 = vadd.f32 0.0, %v6128
        %v6130 = vpop.f32.mrf.mxu0
        %v6131 = vadd.f32 0.0, %v6130
        %6132 = vmatprep.mubr.bf16.mxu0 %v5741
        %6133 = vmatmul.mubr.bf16.gmra.mxu0 %v5739
        %v6134 = vpop.f32.mrf.mxu0
        %v6135 = vadd.f32 0.0, %v6134
        %v6136 = vpop.f32.mrf.mxu0
        %v6137 = vadd.f32 0.0, %v6136
        %v6138 = vpop.f32.mrf.mxu0
        %v6139 = vadd.f32 0.0, %v6138
        %v6140 = vpop.f32.mrf.mxu0
        %v6141 = vadd.f32 0.0, %v6140
        %6142 = vmatprep.mubr.bf16.mxu0 %v5749
        %6143 = vmatmul.mubr.bf16.gmra.mxu0 %v5747
        %v6144 = vpop.f32.mrf.mxu0
        %v6145 = vadd.f32 0.0, %v6144
        %v6146 = vpop.f32.mrf.mxu0
        %v6147 = vadd.f32 0.0, %v6146
        %v6148 = vpop.f32.mrf.mxu0
        %v6149 = vadd.f32 0.0, %v6148
        %v6150 = vpop.f32.mrf.mxu0
        %v6151 = vadd.f32 0.0, %v6150
        %6152 = vmatprep.mubr.bf16.mxu0 %v5748
        %6153 = vmatmul.mubr.bf16.gmra.mxu0 %v5746
        %v6154 = vpop.f32.mrf.mxu0
        %v6155 = vadd.f32 0.0, %v6154
        %v6156 = vpop.f32.mrf.mxu0
        %v6157 = vadd.f32 0.0, %v6156
        %v6158 = vpop.f32.mrf.mxu0
        %v6159 = vpop.f32.mrf.mxu0
        %6160 = vdwg.mxu0
        %6161 = vmatprep.subr.bf16.mxu0 %v6009
        %6162 = vmatpush1.bf16.msra.mxu0 %v6008
        %6163 = vmatprep.subr.bf16.mxu0 %v6007
        %6164 = vmatpush1.bf16.msra.mxu0 %v6006
        %6165 = vmatprep.subr.bf16.mxu0 %v6005
        %6166 = vmatpush1.bf16.msra.mxu0 %v6004
        %6167 = vmatprep.subr.bf16.mxu0 %v6003
        %6168 = vmatpush1.bf16.msra.mxu0 %v6002
        %6169 = vmatprep.subr.bf16.mxu0 %v6001
        %6170 = vmatpush1.bf16.msra.mxu0 %v6000
        %6171 = vmatprep.subr.bf16.mxu0 %v5999
        %6172 = vmatpush1.bf16.msra.mxu0 %v5998
        %6173 = vmatprep.subr.bf16.mxu0 %v5997
        %6174 = vmatpush1.bf16.msra.mxu0 %v5996
        %6175 = vmatprep.subr.bf16.mxu0 %v5995
        %6176 = vmatpush1.bf16.msra.mxu0 %v5994
        %6177 = vmatprep.subr.bf16.mxu0 %v6025
        %6178 = vmatpush2.bf16.msra.mxu0 %v6024
        %6179 = vmatprep.subr.bf16.mxu0 %v6023
        %6180 = vmatpush2.bf16.msra.mxu0 %v6022
        %6181 = vmatprep.subr.bf16.mxu0 %v6021
        %6182 = vmatpush2.bf16.msra.mxu0 %v6020
        %6183 = vmatprep.subr.bf16.mxu0 %v6019
        %6184 = vmatpush2.bf16.msra.mxu0 %v6018
        %6185 = vmatprep.subr.bf16.mxu0 %v6017
        %6186 = vmatpush2.bf16.msra.mxu0 %v6016
        %6187 = vmatprep.subr.bf16.mxu0 %v6015
        %6188 = vmatpush2.bf16.msra.mxu0 %v6014
        %6189 = vmatprep.subr.bf16.mxu0 %v6013
        %6190 = vmatpush2.bf16.msra.mxu0 %v6012
        %6191 = vmatprep.subr.bf16.mxu0 %v6011
        %6192 = vmatpush2.bf16.msra.mxu0 %v6010
        %6193 = vmatprep.mubr.bf16.mxu0 %v5737
        %6194 = vmatmul.mubr.bf16.gmra.mxu0 %v5734
        %v6195 = vpop.f32.mrf.mxu0
        %v6196 = vadd.f32 %v6125, %v6195
        %v6197 = vpop.f32.mrf.mxu0
        %v6198 = vadd.f32 %v6127, %v6197
        %v6199 = vpop.f32.mrf.mxu0
        %v6200 = vadd.f32 %v6129, %v6199
        %v6201 = vpop.f32.mrf.mxu0
        %v6202 = vadd.f32 %v6131, %v6201
        %6203 = vmatprep.mubr.bf16.mxu0 %v5745
        %6204 = vmatmul.mubr.bf16.gmra.mxu0 %v5743
        %v6205 = vpop.f32.mrf.mxu0
        %v6206 = vadd.f32 %v6135, %v6205
        %v6207 = vpop.f32.mrf.mxu0
        %v6208 = vadd.f32 %v6137, %v6207
        %v6209 = vpop.f32.mrf.mxu0
        %v6210 = vadd.f32 %v6139, %v6209
        %v6211 = vpop.f32.mrf.mxu0
        %v6212 = vadd.f32 %v6141, %v6211
        %6213 = vmatprep.mubr.bf16.mxu0 %v5753
        %6214 = vmatmul.mubr.bf16.gmra.mxu0 %v5751
        %v6215 = vpop.f32.mrf.mxu0
        %v6216 = vadd.f32 %v6145, %v6215
        %v6217 = vpop.f32.mrf.mxu0
        %v6218 = vadd.f32 %v6147, %v6217
        %v6219 = vpop.f32.mrf.mxu0
        %v6220 = vadd.f32 %v6149, %v6219
        %v6221 = vpop.f32.mrf.mxu0
        %v6222 = vadd.f32 %v6151, %v6221
        %6223 = vmatprep.mubr.bf16.mxu0 %v5752
        %6224 = vmatmul.mubr.bf16.gmra.mxu0 %v5750
        %v6225 = vpop.f32.mrf.mxu0
        %v6226 = vadd.f32 %v6155, %v6225
        %v6227 = vpop.f32.mrf.mxu0
        %v6228 = vadd.f32 %v6157, %v6227
        %v6229 = vpop.f32.mrf.mxu0
        %v6230 = vpop.f32.mrf.mxu0
        %6231 = vdwg.mxu0
        %v6232 = vld [vmem:[%s157] sm:$0xff]
        %v6233 = vld [vmem:[%s157 + $0x8] sm:$0xff]
        %v6234 = vld [vmem:[%s157 + $0x10] sm:$0xff]
        %v6235 = vld [vmem:[%s157 + $0x18] sm:$0xff]
        %v6236 = vld [vmem:[%s157 + $0x20] sm:$0xff]
        %v6237 = vld [vmem:[%s157 + $0x28] sm:$0xff]
        %v6238 = vld [vmem:[%s157 + $0x30] sm:$0xff]
        %v6239 = vld [vmem:[%s157 + $0x38] sm:$0xff]
        %v6240 = vld [vmem:[%s157 + $0x40] sm:$0xff]
        %v6241 = vld [vmem:[%s157 + $0x48] sm:$0xff]
        %v6242 = vld [vmem:[%s157 + $0x50] sm:$0xff]
        %v6243 = vld [vmem:[%s157 + $0x58] sm:$0xff]
        %v6244 = vld [vmem:[%s157 + $0x60] sm:$0xff]
        %v6245 = vld [vmem:[%s157 + $0x68] sm:$0xff]
        %v6246 = vadd.f32 %v6232, %v6196
        %v6247 = vadd.f32 %v6233, %v6198
        %v6248 = vadd.f32 %v6234, %v6200
        %v6249 = vadd.f32 %v6235, %v6202
        %v6250 = vadd.f32 %v6236, %v6206
        %v6251 = vadd.f32 %v6237, %v6208
        %v6252 = vadd.f32 %v6238, %v6210
        %v6253 = vadd.f32 %v6239, %v6212
        %v6254 = vadd.f32 %v6240, %v6216
        %v6255 = vadd.f32 %v6241, %v6218
        %v6256 = vadd.f32 %v6242, %v6220
        %v6257 = vadd.f32 %v6243, %v6222
        %v6258 = vadd.f32 %v6244, %v6226
        %v6259 = vadd.f32 %v6245, %v6228
        %6260 = vst [vmem:[%s157] sm:$0xff] %v6246
        %6261 = vst [vmem:[%s157 + $0x8] sm:$0xff] %v6247
        %6262 = vst [vmem:[%s157 + $0x10] sm:$0xff] %v6248
        %6263 = vst [vmem:[%s157 + $0x18] sm:$0xff] %v6249
        %6264 = vst [vmem:[%s157 + $0x20] sm:$0xff] %v6250
        %6265 = vst [vmem:[%s157 + $0x28] sm:$0xff] %v6251
        %6266 = vst [vmem:[%s157 + $0x30] sm:$0xff] %v6252
        %6267 = vst [vmem:[%s157 + $0x38] sm:$0xff] %v6253
        %6268 = vst [vmem:[%s157 + $0x40] sm:$0xff] %v6254
        %6269 = vst [vmem:[%s157 + $0x48] sm:$0xff] %v6255
        %6270 = vst [vmem:[%s157 + $0x50] sm:$0xff] %v6256
        %6271 = vst [vmem:[%s157 + $0x58] sm:$0xff] %v6257
        %6272 = vst [vmem:[%s157 + $0x60] sm:$0xff] %v6258
        %6273 = vst [vmem:[%s157 + $0x68] sm:$0xff] %v6259
        %s6274 = sand.u32 %s71, 1
        %s6275 = sand.u32 %s71, 1
        %s6276 = smul.addr %s6275, 112
        %s6277 = scalar_lea.vmem [#allocation4], %s6276
        // Predicated region
        $region33: #{relu_conv2d.1} parent=27 // pred_check
          %p6278 = pneg %p81
        $region34: #{relu_conv2d.1} parent=27 // pred_check_branch
          %6280 = sbr.rel (%p6278) target = $region36
        $region35: #{relu_conv2d.1} parent=27 // pred_region
          %s6281 = smul.u32 2, %s16
          %s6282 = smul.addr %s6281, 8
          %s6283 = scalar_lea.vmem %s2, %s6282
          // Predicated region
          $region37: #{relu_conv2d.1} parent=35 // pred_check
            _
          $region38: #{relu_conv2d.1} parent=35 // pred_check_branch
            %6285 = sbr.rel (0) target = $region40
          $region39: #{relu_conv2d.1} parent=35 // pred_region
            // Predicated region
            $region41: #{relu_conv2d.1} parent=39 // pred_check
              _
            $region42: #{relu_conv2d.1} parent=39 // pred_check_branch
              %6287 = sbr.rel (0) target = $region44
            $region43: #{relu_conv2d.1} parent=39 // pred_region
              loop: start=0, step=1, limit=1
              $region45: #{relu_conv2d.1} parent=43 // loop_pre_header
                _
              $region46: #{relu_conv2d.1} parent=43 // loop_header
                %s6289 = sphi 0, %s6293
                %p6290 = scmp.ge.s32.totalorder %s6289, 1
                %s6294 = sphi %s6277, %s6277
                %s6295 = sphi %s6283, %s6283
              $region47: #{relu_conv2d.1} parent=43 // loop_header_branch
                %6292 = sbr.rel (%p6290) target = $region51
              $region48: #{relu_conv2d.1} parent=43 // loop_body
                %v6296 = vld [vmem:[%s6294] sm:$0xff]
                %6297 = vst [vmem:[%s6295] sm:$0xff] %v6296
                %v6298 = vld [vmem:[%s6294 + $0x8] sm:$0xff]
                %6299 = vst [vmem:[%s6295 + $0x8] sm:$0xff] %v6298
                %v6300 = vld [vmem:[%s6294 + $0x10] sm:$0xff]
                %6301 = vst [vmem:[%s6295 + $0x20] sm:$0xff] %v6300
                %v6302 = vld [vmem:[%s6294 + $0x18] sm:$0xff]
                %6303 = vst [vmem:[%s6295 + $0x28] sm:$0xff] %v6302
                %v6304 = vld [vmem:[%s6294 + $0x20] sm:$0xff]
                %6305 = vst [vmem:[%s6295 + $0x40] sm:$0xff] %v6304
                %v6306 = vld [vmem:[%s6294 + $0x28] sm:$0xff]
                %6307 = vst [vmem:[%s6295 + $0x48] sm:$0xff] %v6306
                %v6308 = vld [vmem:[%s6294 + $0x30] sm:$0xff]
                %6309 = vst [vmem:[%s6295 + $0x60] sm:$0xff] %v6308
                %v6310 = vld [vmem:[%s6294 + $0x38] sm:$0xff]
                %6311 = vst [vmem:[%s6295 + $0x68] sm:$0xff] %v6310
                %v6312 = vld [vmem:[%s6294 + $0x40] sm:$0xff]
                %6313 = vst [vmem:[%s6295 + $0x80] sm:$0xff] %v6312
                %v6314 = vld [vmem:[%s6294 + $0x48] sm:$0xff]
                %6315 = vst [vmem:[%s6295 + $0x88] sm:$0xff] %v6314
                %v6316 = vld [vmem:[%s6294 + $0x50] sm:$0xff]
                %6317 = vst [vmem:[%s6295 + $0xa0] sm:$0xff] %v6316
                %v6318 = vld [vmem:[%s6294 + $0x58] sm:$0xff]
                %6319 = vst [vmem:[%s6295 + $0xa8] sm:$0xff] %v6318
                %v6320 = vld [vmem:[%s6294 + $0x60] sm:$0xff]
                %6321 = vst [vmem:[%s6295 + $0xc0] sm:$0xff] %v6320
                %v6322 = vld [vmem:[%s6294 + $0x68] sm:$0xff]
                %6323 = vst [vmem:[%s6295 + $0xc8] sm:$0xff] %v6322
              $region49: #{relu_conv2d.1} parent=43 // loop_footer
                %s6293 = sadd.s32 1, %s6289
              $region50: #{relu_conv2d.1} parent=43 // loop_footer_branch
                %6288 = sbr.rel target = $region46
              $region51: #{relu_conv2d.1} parent=43 // loop_exit
                _
            $region44: #{relu_conv2d.1} parent=39 // pred_fallthru
              _
            // Predicated region
            $region52: #{relu_conv2d.1} parent=39 // pred_check
              _
            $region53: #{relu_conv2d.1} parent=39 // pred_check_branch
              %6325 = sbr.rel target = $region55
            $region54: #{relu_conv2d.1} parent=39 // pred_region
              _
            $region55: #{relu_conv2d.1} parent=39 // pred_fallthru
              _
          $region40: #{relu_conv2d.1} parent=35 // pred_fallthru
            _
          %6326 = vnop
        $region36: #{relu_conv2d.1} parent=27 // pred_fallthru
          _
      $region28: #{relu_conv2d.1} parent=5 // pred_fallthru
        _
      %p6327 = scmp.le.s32.totalorder 2, %s11
      // Predicated region
      $region56: #{relu_conv2d.1} parent=5 // pred_check
        %p6328 = pneg %p6327
      $region57: #{relu_conv2d.1} parent=5 // pred_check_branch
        %6330 = sbr.rel (%p6328) target = $region59
      $region58: #{relu_conv2d.1} parent=5 // pred_region
        %s6331 = ssub.s32 %s11, 2
        // Predicated region
        $region60: #{relu_conv2d.1} parent=58 // pred_check
          %p6332 = pneg %p87
        $region61: #{relu_conv2d.1} parent=58 // pred_check_branch
          %6334 = sbr.rel (%p6332) target = $region63
        $region62: #{relu_conv2d.1} parent=58 // pred_region
          %s6335 = sand.u32 %s72, 1
          %s6336 = sand.u32 %s72, 1
          %s6337 = smul.addr %s6336, 112
          %s6338 = scalar_lea.vmem [#allocation4], %s6337
        $region63: #{relu_conv2d.1} parent=58 // pred_fallthru
          _
      $region59: #{relu_conv2d.1} parent=5 // pred_fallthru
        _
    $region6: #{relu_conv2d.1} parent=1 // loop_footer
      %s15 = sadd.s32 1, %s11
    $region7: #{relu_conv2d.1} parent=1 // loop_footer_branch
      %10 = sbr.rel target = $region3
    $region8: #{relu_conv2d.1} parent=1 // loop_exit
      _
    %6339 = vsyncpa [#allocation3], 1
    %s6340 = scalar_lea.sflag [#allocation3], 1
    %6341 = vsyncpa %s6340, 1

</llo_original>
